<compile_context>
chip_gen: v7x
topology: tpu7x:2x2x1
jax: 0.10.0
libtpu: 0.0.40
codegen_flags: <defaults>
</compile_context>

<pallas_src>
import functools
import math

import jax
import jax.numpy as jnp
from jax.experimental import pallas as pl
from jax.experimental.pallas import tpu as pltpu


# ---------------------------------------------------------------------------
# Fused whole-network Pallas kernel (one grid step == one batch element)
# ---------------------------------------------------------------------------
def _ptcnn_fused_kernel(x_ref, *refs, num_stages):
    """refs layout: per stage [w1, wd, w2, bn, t_stride2, t_stride1]; last ref = out_ref.

      w1, wd : (3, C_out, C_in)   per-tap conv weights (conv1 / downsample shortcut)
      w2     : (3, C_out, C_out)  per-tap conv2 weights
      bn     : (6, C_out, 1)      [scale1, shift1, scale_d, shift_d, scale2, shift2]
      t_s2   : (3, L, L_out)      0/1 tap-selection matrices (stride 2, pad 1)
      t_s1   : (3, L_out, L_out)  0/1 tap-selection matrices (stride 1, pad 1)
    """
    out_ref = refs[-1]
    stage_refs = refs[:-1]

    x = x_ref[0].astype(jnp.float32)                        # (C_in, L)

    for si in range(num_stages):
        w1, wd, w2, bn, t2, t1 = stage_refs[6 * si: 6 * si + 6]

        # Shared strided "im2col" of x (selection matmuls fold pad + stride + tap shift).
        xt = [jnp.dot(x, t2[t], preferred_element_type=jnp.float32)      # (C_in, L_out)
              for t in range(3)]

        # conv1 (stride 2) + BN1 + ReLU
        h = (jnp.dot(w1[0], xt[0], preferred_element_type=jnp.float32)
             + jnp.dot(w1[1], xt[1], preferred_element_type=jnp.float32)
             + jnp.dot(w1[2], xt[2], preferred_element_type=jnp.float32))  # (C_out, L_out)
        h = jnp.maximum(h * bn[0] + bn[1], 0.0)

        # downsample shortcut: conv (stride 2) + BN (no ReLU) — reuses xt
        iden = (jnp.dot(wd[0], xt[0], preferred_element_type=jnp.float32)
                + jnp.dot(wd[1], xt[1], preferred_element_type=jnp.float32)
                + jnp.dot(wd[2], xt[2], preferred_element_type=jnp.float32))
        iden = iden * bn[2] + bn[3]

        # conv2 (stride 1) + BN2, residual add, ReLU
        ht = [jnp.dot(h, t1[t], preferred_element_type=jnp.float32)
              for t in range(3)]
        o = (jnp.dot(w2[0], ht[0], preferred_element_type=jnp.float32)
             + jnp.dot(w2[1], ht[1], preferred_element_type=jnp.float32)
             + jnp.dot(w2[2], ht[2], preferred_element_type=jnp.float32))
        o = o * bn[4] + bn[5]
        x = jnp.maximum(o + iden, 0.0)                      # (C_out, L_out)

    # pool == 'global': torch.mean(x, 1) — cross-sublane reduce fused into the epilogue.
    out_ref[0] = jnp.mean(x, axis=0, keepdims=True).astype(out_ref.dtype)


# ---------------------------------------------------------------------------
# Host-side glue (constants built once; no HBM im2col of activations)
# ---------------------------------------------------------------------------
def _tap_matrices(l_in, l_out, stride, dtype=jnp.float32):
    """(3, l_in, l_out) 0/1 selection matrices: T[t, i, j] = (i == stride*j + t - 1).

    Out-of-range rows simply have no 1s, which models the zero padding."""
    i = jnp.arange(l_in)[:, None]
    j = jnp.arange(l_out)[None, :]
    return jnp.stack([(i == stride * j + t - 1).astype(dtype) for t in range(3)], axis=0)


def _fold_bn(bn, bias, eps=1e-5):
    gamma, beta, mean, var = bn
    scale = gamma / jnp.sqrt(var + eps)
    shift = beta - mean * scale + bias * scale              # conv bias folded in
    return scale, shift


def ptcnn_forward(x, params, eps=1e-5):
    """PTCNN forward (pool='global', blocks=1): (N, C, L) -> (N, L_final)."""
    n, c_in0, l_cur = x.shape
    const3 = lambda i: (0, 0, 0)

    inputs = [x]
    in_specs = [pl.BlockSpec((1, c_in0, l_cur), lambda i: (i, 0, 0))]

    for p in params:
        c_out = p["w1"].shape[0]
        l_out = (l_cur - 1) // 2 + 1                        # k=3, pad=1, stride=2

        w1 = jnp.transpose(p["w1"], (2, 0, 1))              # (3, C_out, C_in)
        wd = jnp.transpose(p["wd"], (2, 0, 1))
        w2 = jnp.transpose(p["w2"], (2, 0, 1))              # (3, C_out, C_out)

        s1, sh1 = _fold_bn(p["bn1"], p["b1"], eps)
        sd, shd = _fold_bn(p["bnd"], p["bd"], eps)
        s2, sh2 = _fold_bn(p["bn2"], p["b2"], eps)
        bn_pack = jnp.stack([s1, sh1, sd, shd, s2, sh2], axis=0).reshape(6, c_out, 1)

        t2 = _tap_matrices(l_cur, l_out, stride=2)          # (3, L, L_out)
        t1 = _tap_matrices(l_out, l_out, stride=1)          # (3, L_out, L_out)

        for arr in (w1, wd, w2, bn_pack, t2, t1):
            inputs.append(arr)
            in_specs.append(pl.BlockSpec(arr.shape, const3))  # grid-invariant: DMA'd once

        l_cur = l_out

    out = pl.pallas_call(
        functools.partial(_ptcnn_fused_kernel, num_stages=len(params)),
        out_shape=jax.ShapeDtypeStruct((n, 1, l_cur), x.dtype),
        grid=(n,),
        in_specs=in_specs,
        out_specs=pl.BlockSpec((1, 1, l_cur), lambda i: (i, 0, 0)),
        compiler_params=pltpu.CompilerParams(dimension_semantics=("parallel",)),
    )(*inputs)
    return out.reshape(n, l_cur)


# ---------------------------------------------------------------------------
# PTCNN model construction (pool='global', blocks=1)
# ---------------------------------------------------------------------------
def ptcnn_num_stages(max_tree_len):
    nb = 0
    i = max_tree_len / 8
    while i / 4 > 1:
        i /= 4
        nb += 1
    nb += 1
    return int(nb)


def init_block_params(key, c_in, c_out):
    ks = jax.random.split(key, 15)

    def conv_w(k, co, ci):
        return jax.random.normal(k, (co, ci, 3), jnp.float32) / jnp.sqrt(3.0 * ci)

    def conv_b(k, co):
        return 0.1 * jax.random.normal(k, (co,), jnp.float32)

    def bn(k0, k1, k2, k3, co):
        gamma = 1.0 + 0.1 * jax.random.normal(k0, (co,), jnp.float32)
        beta = 0.1 * jax.random.normal(k1, (co,), jnp.float32)
        mean = 0.1 * jax.random.normal(k2, (co,), jnp.float32)
        var = 1.0 + 0.1 * jnp.abs(jax.random.normal(k3, (co,), jnp.float32))
        return (gamma, beta, mean, var)

    return dict(
        w1=conv_w(ks[0], c_out, c_in), b1=conv_b(ks[1], c_out),
        bn1=bn(ks[2], ks[3], ks[4], ks[5], c_out),
        w2=conv_w(ks[6], c_out, c_out), b2=conv_b(ks[7], c_out),
        bn2=bn(ks[8], ks[9], ks[10], ks[11], c_out),
        wd=conv_w(ks[12], c_out, c_in), bd=conv_b(ks[13], c_out),
        bnd=bn(*jax.random.split(ks[14], 4), c_out),
    )


# ---------------------------------------------------------------------------
# Pure-JAX reference (lax.conv) for correctness checking
# ---------------------------------------------------------------------------
def _ref_conv_bn(x, w, b, bn, stride, relu, residual=None, eps=1e-5):
    gamma, beta, mean, var = bn
    y = jax.lax.conv_general_dilated(
        x, w, window_strides=(stride,), padding=((1, 1),),
        dimension_numbers=("NCH", "OIH", "NCH"))
    y = y + b[None, :, None]
    y = (y - mean[None, :, None]) / jnp.sqrt(var[None, :, None] + eps)
    y = y * gamma[None, :, None] + beta[None, :, None]
    if residual is not None:
        y = y + residual
        relu = True
    if relu:
        y = jnp.maximum(y, 0.0)
    return y


def ptcnn_ref(x, params):
    for p in params:
        identity = _ref_conv_bn(x, p["wd"], p["bd"], p["bnd"], 2, False)
        out = _ref_conv_bn(x, p["w1"], p["b1"], p["bn1"], 2, True)
        out = _ref_conv_bn(out, p["w2"], p["b2"], p["bn2"], 1, False,
                           residual=identity)
        x = out
    return jnp.mean(x, axis=1)


# ---------------------------------------------------------------------------
if __name__ == "__main__":
    feature_d, max_tree_len, fst_p = 4, 64, 8   # small shapes
    key = jax.random.PRNGKey(0)
    kx, kp = jax.random.split(key)
    x = jax.random.normal(kx, (2, feature_d, max_tree_len), jnp.float32)

    nb = ptcnn_num_stages(max_tree_len)         # = 2 stages for max_tree_len=64
    params = []
    c_in, c_out = feature_d, fst_p
    pkeys = jax.random.split(kp, nb)
    for bi in range(nb):
        params.append(init_block_params(pkeys[bi], c_in, c_out))
        c_in, c_out = c_out, fst_p * 2

    out = jax.block_until_ready(ptcnn_forward(x, params))

    expected_dim = math.ceil(max_tree_len / 2 ** nb)   # PTCNN.out_dim (global pool)
    assert out.shape == (2, expected_dim), out.shape

    ref = ptcnn_ref(x, params)
    assert jnp.allclose(out, ref, rtol=1e-4, atol=1e-4), float(jnp.max(jnp.abs(out - ref)))

    print("KERNEL_OK")
</pallas_src>

<mosaic_0001>
module attributes {stable_mosaic.version = 11 : i64} {
  func.func @_ptcnn_fused_kernel(%arg0: i32, %arg1: memref<1x4x64xf32, #tpu.memory_space<vmem>>, %arg2: memref<3x8x4xf32, #tpu.memory_space<vmem>>, %arg3: memref<3x8x4xf32, #tpu.memory_space<vmem>>, %arg4: memref<3x8x8xf32, #tpu.memory_space<vmem>>, %arg5: memref<6x8x1xf32, #tpu.memory_space<vmem>>, %arg6: memref<3x64x32xf32, #tpu.memory_space<vmem>>, %arg7: memref<3x32x32xf32, #tpu.memory_space<vmem>>, %arg8: memref<3x16x8xf32, #tpu.memory_space<vmem>>, %arg9: memref<3x16x8xf32, #tpu.memory_space<vmem>>, %arg10: memref<3x16x16xf32, #tpu.memory_space<vmem>>, %arg11: memref<6x16x1xf32, #tpu.memory_space<vmem>>, %arg12: memref<3x32x16xf32, #tpu.memory_space<vmem>>, %arg13: memref<3x16x16xf32, #tpu.memory_space<vmem>>, %arg14: memref<1x1x16xf32, #tpu.memory_space<vmem>>) attributes {dimension_semantics = [#tpu.dimension_semantics<parallel>], iteration_bounds = array<i64: 2>, scalar_prefetch = 0 : i64, scratch_operands = 0 : i64, tpu.core_type = #tpu.core_type<tc>, window_params = [{transform_indices = @transform_0, window_bounds = array<i64: 1, 4, 64>}, {pipeline_mode = #tpu.pipeline_mode<synchronous>, transform_indices = @transform_1, window_bounds = array<i64: 3, 8, 4>}, {pipeline_mode = #tpu.pipeline_mode<synchronous>, transform_indices = @transform_2, window_bounds = array<i64: 3, 8, 4>}, {pipeline_mode = #tpu.pipeline_mode<synchronous>, transform_indices = @transform_3, window_bounds = array<i64: 3, 8, 8>}, {pipeline_mode = #tpu.pipeline_mode<synchronous>, transform_indices = @transform_4, window_bounds = array<i64: 6, 8, 1>}, {pipeline_mode = #tpu.pipeline_mode<synchronous>, transform_indices = @transform_5, window_bounds = array<i64: 3, 64, 32>}, {pipeline_mode = #tpu.pipeline_mode<synchronous>, transform_indices = @transform_6, window_bounds = array<i64: 3, 32, 32>}, {pipeline_mode = #tpu.pipeline_mode<synchronous>, transform_indices = @transform_7, window_bounds = array<i64: 3, 16, 8>}, {pipeline_mode = #tpu.pipeline_mode<synchronous>, transform_indices = @transform_8, window_bounds = array<i64: 3, 16, 8>}, {pipeline_mode = #tpu.pipeline_mode<synchronous>, transform_indices = @transform_9, window_bounds = array<i64: 3, 16, 16>}, {pipeline_mode = #tpu.pipeline_mode<synchronous>, transform_indices = @transform_10, window_bounds = array<i64: 6, 16, 1>}, {pipeline_mode = #tpu.pipeline_mode<synchronous>, transform_indices = @transform_11, window_bounds = array<i64: 3, 32, 16>}, {pipeline_mode = #tpu.pipeline_mode<synchronous>, transform_indices = @transform_12, window_bounds = array<i64: 3, 16, 16>}, {transform_indices = @transform_13, window_bounds = array<i64: 1, 1, 16>}]} {
    %c0 = arith.constant 0 : index
    %c0_0 = arith.constant 0 : index
    %c0_1 = arith.constant 0 : index
    %0 = vector.load %arg1[%c0, %c0_0, %c0_1] : memref<1x4x64xf32, #tpu.memory_space<vmem>>, vector<1x4x64xf32>
    %1 = vector.shape_cast %0 : vector<1x4x64xf32> to vector<4x64xf32>
    %c0_2 = arith.constant 0 : index
    %c0_3 = arith.constant 0 : index
    %c0_4 = arith.constant 0 : index
    %2 = vector.load %arg6[%c0_2, %c0_3, %c0_4] : memref<3x64x32xf32, #tpu.memory_space<vmem>>, vector<1x64x32xf32>
    %3 = vector.shape_cast %2 : vector<1x64x32xf32> to vector<64x32xf32>
    %cst = arith.constant dense<0.000000e+00> : vector<4x32xf32>
    %4 = tpu.matmul %1, %3, %cst {dimension_numbers = #tpu.dot_dimension_numbers<[1], [0], [0], [1], [0, 0, 1, 1], [], []>} : vector<4x64xf32>, vector<64x32xf32>, vector<4x32xf32> -> vector<4x32xf32>
    %c1 = arith.constant 1 : index
    %c0_5 = arith.constant 0 : index
    %c0_6 = arith.constant 0 : index
    %5 = vector.load %arg6[%c1, %c0_5, %c0_6] : memref<3x64x32xf32, #tpu.memory_space<vmem>>, vector<1x64x32xf32>
    %6 = vector.shape_cast %5 : vector<1x64x32xf32> to vector<64x32xf32>
    %cst_7 = arith.constant dense<0.000000e+00> : vector<4x32xf32>
    %7 = tpu.matmul %1, %6, %cst_7 {dimension_numbers = #tpu.dot_dimension_numbers<[1], [0], [0], [1], [0, 0, 1, 1], [], []>} : vector<4x64xf32>, vector<64x32xf32>, vector<4x32xf32> -> vector<4x32xf32>
    %c2 = arith.constant 2 : index
    %c0_8 = arith.constant 0 : index
    %c0_9 = arith.constant 0 : index
    %8 = vector.load %arg6[%c2, %c0_8, %c0_9] : memref<3x64x32xf32, #tpu.memory_space<vmem>>, vector<1x64x32xf32>
    %9 = vector.shape_cast %8 : vector<1x64x32xf32> to vector<64x32xf32>
    %cst_10 = arith.constant dense<0.000000e+00> : vector<4x32xf32>
    %10 = tpu.matmul %1, %9, %cst_10 {dimension_numbers = #tpu.dot_dimension_numbers<[1], [0], [0], [1], [0, 0, 1, 1], [], []>} : vector<4x64xf32>, vector<64x32xf32>, vector<4x32xf32> -> vector<4x32xf32>
    %c0_11 = arith.constant 0 : index
    %c0_12 = arith.constant 0 : index
    %c0_13 = arith.constant 0 : index
    %11 = vector.load %arg2[%c0_11, %c0_12, %c0_13] : memref<3x8x4xf32, #tpu.memory_space<vmem>>, vector<1x8x4xf32>
    %12 = vector.shape_cast %11 : vector<1x8x4xf32> to vector<8x4xf32>
    %cst_14 = arith.constant dense<0.000000e+00> : vector<8x32xf32>
    %13 = tpu.matmul %12, %4, %cst_14 {dimension_numbers = #tpu.dot_dimension_numbers<[1], [0], [0], [1], [0, 0, 1, 1], [], []>} : vector<8x4xf32>, vector<4x32xf32>, vector<8x32xf32> -> vector<8x32xf32>
    %c1_15 = arith.constant 1 : index
    %c0_16 = arith.constant 0 : index
    %c0_17 = arith.constant 0 : index
    %14 = vector.load %arg2[%c1_15, %c0_16, %c0_17] : memref<3x8x4xf32, #tpu.memory_space<vmem>>, vector<1x8x4xf32>
    %15 = vector.shape_cast %14 : vector<1x8x4xf32> to vector<8x4xf32>
    %cst_18 = arith.constant dense<0.000000e+00> : vector<8x32xf32>
    %16 = tpu.matmul %15, %7, %cst_18 {dimension_numbers = #tpu.dot_dimension_numbers<[1], [0], [0], [1], [0, 0, 1, 1], [], []>} : vector<8x4xf32>, vector<4x32xf32>, vector<8x32xf32> -> vector<8x32xf32>
    %17 = arith.addf %13, %16 : vector<8x32xf32>
    %c2_19 = arith.constant 2 : index
    %c0_20 = arith.constant 0 : index
    %c0_21 = arith.constant 0 : index
    %18 = vector.load %arg2[%c2_19, %c0_20, %c0_21] : memref<3x8x4xf32, #tpu.memory_space<vmem>>, vector<1x8x4xf32>
    %19 = vector.shape_cast %18 : vector<1x8x4xf32> to vector<8x4xf32>
    %cst_22 = arith.constant dense<0.000000e+00> : vector<8x32xf32>
    %20 = tpu.matmul %19, %10, %cst_22 {dimension_numbers = #tpu.dot_dimension_numbers<[1], [0], [0], [1], [0, 0, 1, 1], [], []>} : vector<8x4xf32>, vector<4x32xf32>, vector<8x32xf32> -> vector<8x32xf32>
    %21 = arith.addf %17, %20 : vector<8x32xf32>
    %c0_23 = arith.constant 0 : index
    %c0_24 = arith.constant 0 : index
    %c0_25 = arith.constant 0 : index
    %22 = vector.load %arg5[%c0_23, %c0_24, %c0_25] : memref<6x8x1xf32, #tpu.memory_space<vmem>>, vector<1x8x1xf32>
    %23 = vector.shape_cast %22 : vector<1x8x1xf32> to vector<8x1xf32>
    %24 = vector.broadcast %23 : vector<8x1xf32> to vector<8x32xf32>
    %25 = arith.mulf %21, %24 : vector<8x32xf32>
    %c1_26 = arith.constant 1 : index
    %c0_27 = arith.constant 0 : index
    %c0_28 = arith.constant 0 : index
    %26 = vector.load %arg5[%c1_26, %c0_27, %c0_28] : memref<6x8x1xf32, #tpu.memory_space<vmem>>, vector<1x8x1xf32>
    %27 = vector.shape_cast %26 : vector<1x8x1xf32> to vector<8x1xf32>
    %28 = vector.broadcast %27 : vector<8x1xf32> to vector<8x32xf32>
    %29 = arith.addf %25, %28 : vector<8x32xf32>
    %cst_29 = arith.constant 0.000000e+00 : f32
    %30 = vector.broadcast %cst_29 : f32 to vector<8x32xf32>
    %31 = arith.maximumf %29, %30 : vector<8x32xf32>
    %c0_30 = arith.constant 0 : index
    %c0_31 = arith.constant 0 : index
    %c0_32 = arith.constant 0 : index
    %32 = vector.load %arg3[%c0_30, %c0_31, %c0_32] : memref<3x8x4xf32, #tpu.memory_space<vmem>>, vector<1x8x4xf32>
    %33 = vector.shape_cast %32 : vector<1x8x4xf32> to vector<8x4xf32>
    %cst_33 = arith.constant dense<0.000000e+00> : vector<8x32xf32>
    %34 = tpu.matmul %33, %4, %cst_33 {dimension_numbers = #tpu.dot_dimension_numbers<[1], [0], [0], [1], [0, 0, 1, 1], [], []>} : vector<8x4xf32>, vector<4x32xf32>, vector<8x32xf32> -> vector<8x32xf32>
    %c1_34 = arith.constant 1 : index
    %c0_35 = arith.constant 0 : index
    %c0_36 = arith.constant 0 : index
    %35 = vector.load %arg3[%c1_34, %c0_35, %c0_36] : memref<3x8x4xf32, #tpu.memory_space<vmem>>, vector<1x8x4xf32>
    %36 = vector.shape_cast %35 : vector<1x8x4xf32> to vector<8x4xf32>
    %cst_37 = arith.constant dense<0.000000e+00> : vector<8x32xf32>
    %37 = tpu.matmul %36, %7, %cst_37 {dimension_numbers = #tpu.dot_dimension_numbers<[1], [0], [0], [1], [0, 0, 1, 1], [], []>} : vector<8x4xf32>, vector<4x32xf32>, vector<8x32xf32> -> vector<8x32xf32>
    %38 = arith.addf %34, %37 : vector<8x32xf32>
    %c2_38 = arith.constant 2 : index
    %c0_39 = arith.constant 0 : index
    %c0_40 = arith.constant 0 : index
    %39 = vector.load %arg3[%c2_38, %c0_39, %c0_40] : memref<3x8x4xf32, #tpu.memory_space<vmem>>, vector<1x8x4xf32>
    %40 = vector.shape_cast %39 : vector<1x8x4xf32> to vector<8x4xf32>
    %cst_41 = arith.constant dense<0.000000e+00> : vector<8x32xf32>
    %41 = tpu.matmul %40, %10, %cst_41 {dimension_numbers = #tpu.dot_dimension_numbers<[1], [0], [0], [1], [0, 0, 1, 1], [], []>} : vector<8x4xf32>, vector<4x32xf32>, vector<8x32xf32> -> vector<8x32xf32>
    %42 = arith.addf %38, %41 : vector<8x32xf32>
    %c2_42 = arith.constant 2 : index
    %c0_43 = arith.constant 0 : index
    %c0_44 = arith.constant 0 : index
    %43 = vector.load %arg5[%c2_42, %c0_43, %c0_44] : memref<6x8x1xf32, #tpu.memory_space<vmem>>, vector<1x8x1xf32>
    %44 = vector.shape_cast %43 : vector<1x8x1xf32> to vector<8x1xf32>
    %45 = vector.broadcast %44 : vector<8x1xf32> to vector<8x32xf32>
    %46 = arith.mulf %42, %45 : vector<8x32xf32>
    %c3 = arith.constant 3 : index
    %c0_45 = arith.constant 0 : index
    %c0_46 = arith.constant 0 : index
    %47 = vector.load %arg5[%c3, %c0_45, %c0_46] : memref<6x8x1xf32, #tpu.memory_space<vmem>>, vector<1x8x1xf32>
    %48 = vector.shape_cast %47 : vector<1x8x1xf32> to vector<8x1xf32>
    %49 = vector.broadcast %48 : vector<8x1xf32> to vector<8x32xf32>
    %50 = arith.addf %46, %49 : vector<8x32xf32>
    %c0_47 = arith.constant 0 : index
    %c0_48 = arith.constant 0 : index
    %c0_49 = arith.constant 0 : index
    %51 = vector.load %arg7[%c0_47, %c0_48, %c0_49] : memref<3x32x32xf32, #tpu.memory_space<vmem>>, vector<1x32x32xf32>
    %52 = vector.shape_cast %51 : vector<1x32x32xf32> to vector<32x32xf32>
    %cst_50 = arith.constant dense<0.000000e+00> : vector<8x32xf32>
    %53 = tpu.matmul %31, %52, %cst_50 {dimension_numbers = #tpu.dot_dimension_numbers<[1], [0], [0], [1], [0, 0, 1, 1], [], []>} : vector<8x32xf32>, vector<32x32xf32>, vector<8x32xf32> -> vector<8x32xf32>
    %c1_51 = arith.constant 1 : index
    %c0_52 = arith.constant 0 : index
    %c0_53 = arith.constant 0 : index
    %54 = vector.load %arg7[%c1_51, %c0_52, %c0_53] : memref<3x32x32xf32, #tpu.memory_space<vmem>>, vector<1x32x32xf32>
    %55 = vector.shape_cast %54 : vector<1x32x32xf32> to vector<32x32xf32>
    %cst_54 = arith.constant dense<0.000000e+00> : vector<8x32xf32>
    %56 = tpu.matmul %31, %55, %cst_54 {dimension_numbers = #tpu.dot_dimension_numbers<[1], [0], [0], [1], [0, 0, 1, 1], [], []>} : vector<8x32xf32>, vector<32x32xf32>, vector<8x32xf32> -> vector<8x32xf32>
    %c2_55 = arith.constant 2 : index
    %c0_56 = arith.constant 0 : index
    %c0_57 = arith.constant 0 : index
    %57 = vector.load %arg7[%c2_55, %c0_56, %c0_57] : memref<3x32x32xf32, #tpu.memory_space<vmem>>, vector<1x32x32xf32>
    %58 = vector.shape_cast %57 : vector<1x32x32xf32> to vector<32x32xf32>
    %cst_58 = arith.constant dense<0.000000e+00> : vector<8x32xf32>
    %59 = tpu.matmul %31, %58, %cst_58 {dimension_numbers = #tpu.dot_dimension_numbers<[1], [0], [0], [1], [0, 0, 1, 1], [], []>} : vector<8x32xf32>, vector<32x32xf32>, vector<8x32xf32> -> vector<8x32xf32>
    %c0_59 = arith.constant 0 : index
    %c0_60 = arith.constant 0 : index
    %c0_61 = arith.constant 0 : index
    %60 = vector.load %arg4[%c0_59, %c0_60, %c0_61] : memref<3x8x8xf32, #tpu.memory_space<vmem>>, vector<1x8x8xf32>
    %61 = vector.shape_cast %60 : vector<1x8x8xf32> to vector<8x8xf32>
    %cst_62 = arith.constant dense<0.000000e+00> : vector<8x32xf32>
    %62 = tpu.matmul %61, %53, %cst_62 {dimension_numbers = #tpu.dot_dimension_numbers<[1], [0], [0], [1], [0, 0, 1, 1], [], []>} : vector<8x8xf32>, vector<8x32xf32>, vector<8x32xf32> -> vector<8x32xf32>
    %c1_63 = arith.constant 1 : index
    %c0_64 = arith.constant 0 : index
    %c0_65 = arith.constant 0 : index
    %63 = vector.load %arg4[%c1_63, %c0_64, %c0_65] : memref<3x8x8xf32, #tpu.memory_space<vmem>>, vector<1x8x8xf32>
    %64 = vector.shape_cast %63 : vector<1x8x8xf32> to vector<8x8xf32>
    %cst_66 = arith.constant dense<0.000000e+00> : vector<8x32xf32>
    %65 = tpu.matmul %64, %56, %cst_66 {dimension_numbers = #tpu.dot_dimension_numbers<[1], [0], [0], [1], [0, 0, 1, 1], [], []>} : vector<8x8xf32>, vector<8x32xf32>, vector<8x32xf32> -> vector<8x32xf32>
    %66 = arith.addf %62, %65 : vector<8x32xf32>
    %c2_67 = arith.constant 2 : index
    %c0_68 = arith.constant 0 : index
    %c0_69 = arith.constant 0 : index
    %67 = vector.load %arg4[%c2_67, %c0_68, %c0_69] : memref<3x8x8xf32, #tpu.memory_space<vmem>>, vector<1x8x8xf32>
    %68 = vector.shape_cast %67 : vector<1x8x8xf32> to vector<8x8xf32>
    %cst_70 = arith.constant dense<0.000000e+00> : vector<8x32xf32>
    %69 = tpu.matmul %68, %59, %cst_70 {dimension_numbers = #tpu.dot_dimension_numbers<[1], [0], [0], [1], [0, 0, 1, 1], [], []>} : vector<8x8xf32>, vector<8x32xf32>, vector<8x32xf32> -> vector<8x32xf32>
    %70 = arith.addf %66, %69 : vector<8x32xf32>
    %c4 = arith.constant 4 : index
    %c0_71 = arith.constant 0 : index
    %c0_72 = arith.constant 0 : index
    %71 = vector.load %arg5[%c4, %c0_71, %c0_72] : memref<6x8x1xf32, #tpu.memory_space<vmem>>, vector<1x8x1xf32>
    %72 = vector.shape_cast %71 : vector<1x8x1xf32> to vector<8x1xf32>
    %73 = vector.broadcast %72 : vector<8x1xf32> to vector<8x32xf32>
    %74 = arith.mulf %70, %73 : vector<8x32xf32>
    %c5 = arith.constant 5 : index
    %c0_73 = arith.constant 0 : index
    %c0_74 = arith.constant 0 : index
    %75 = vector.load %arg5[%c5, %c0_73, %c0_74] : memref<6x8x1xf32, #tpu.memory_space<vmem>>, vector<1x8x1xf32>
    %76 = vector.shape_cast %75 : vector<1x8x1xf32> to vector<8x1xf32>
    %77 = vector.broadcast %76 : vector<8x1xf32> to vector<8x32xf32>
    %78 = arith.addf %74, %77 : vector<8x32xf32>
    %79 = arith.addf %78, %50 : vector<8x32xf32>
    %cst_75 = arith.constant 0.000000e+00 : f32
    %80 = vector.broadcast %cst_75 : f32 to vector<8x32xf32>
    %81 = arith.maximumf %79, %80 : vector<8x32xf32>
    %c0_76 = arith.constant 0 : index
    %c0_77 = arith.constant 0 : index
    %c0_78 = arith.constant 0 : index
    %82 = vector.load %arg12[%c0_76, %c0_77, %c0_78] : memref<3x32x16xf32, #tpu.memory_space<vmem>>, vector<1x32x16xf32>
    %83 = vector.shape_cast %82 : vector<1x32x16xf32> to vector<32x16xf32>
    %cst_79 = arith.constant dense<0.000000e+00> : vector<8x16xf32>
    %84 = tpu.matmul %81, %83, %cst_79 {dimension_numbers = #tpu.dot_dimension_numbers<[1], [0], [0], [1], [0, 0, 1, 1], [], []>} : vector<8x32xf32>, vector<32x16xf32>, vector<8x16xf32> -> vector<8x16xf32>
    %c1_80 = arith.constant 1 : index
    %c0_81 = arith.constant 0 : index
    %c0_82 = arith.constant 0 : index
    %85 = vector.load %arg12[%c1_80, %c0_81, %c0_82] : memref<3x32x16xf32, #tpu.memory_space<vmem>>, vector<1x32x16xf32>
    %86 = vector.shape_cast %85 : vector<1x32x16xf32> to vector<32x16xf32>
    %cst_83 = arith.constant dense<0.000000e+00> : vector<8x16xf32>
    %87 = tpu.matmul %81, %86, %cst_83 {dimension_numbers = #tpu.dot_dimension_numbers<[1], [0], [0], [1], [0, 0, 1, 1], [], []>} : vector<8x32xf32>, vector<32x16xf32>, vector<8x16xf32> -> vector<8x16xf32>
    %c2_84 = arith.constant 2 : index
    %c0_85 = arith.constant 0 : index
    %c0_86 = arith.constant 0 : index
    %88 = vector.load %arg12[%c2_84, %c0_85, %c0_86] : memref<3x32x16xf32, #tpu.memory_space<vmem>>, vector<1x32x16xf32>
    %89 = vector.shape_cast %88 : vector<1x32x16xf32> to vector<32x16xf32>
    %cst_87 = arith.constant dense<0.000000e+00> : vector<8x16xf32>
    %90 = tpu.matmul %81, %89, %cst_87 {dimension_numbers = #tpu.dot_dimension_numbers<[1], [0], [0], [1], [0, 0, 1, 1], [], []>} : vector<8x32xf32>, vector<32x16xf32>, vector<8x16xf32> -> vector<8x16xf32>
    %c0_88 = arith.constant 0 : index
    %c0_89 = arith.constant 0 : index
    %c0_90 = arith.constant 0 : index
    %91 = vector.load %arg8[%c0_88, %c0_89, %c0_90] : memref<3x16x8xf32, #tpu.memory_space<vmem>>, vector<1x16x8xf32>
    %92 = vector.shape_cast %91 : vector<1x16x8xf32> to vector<16x8xf32>
    %cst_91 = arith.constant dense<0.000000e+00> : vector<16x16xf32>
    %93 = tpu.matmul %92, %84, %cst_91 {dimension_numbers = #tpu.dot_dimension_numbers<[1], [0], [0], [1], [0, 0, 1, 1], [], []>} : vector<16x8xf32>, vector<8x16xf32>, vector<16x16xf32> -> vector<16x16xf32>
    %c1_92 = arith.constant 1 : index
    %c0_93 = arith.constant 0 : index
    %c0_94 = arith.constant 0 : index
    %94 = vector.load %arg8[%c1_92, %c0_93, %c0_94] : memref<3x16x8xf32, #tpu.memory_space<vmem>>, vector<1x16x8xf32>
    %95 = vector.shape_cast %94 : vector<1x16x8xf32> to vector<16x8xf32>
    %cst_95 = arith.constant dense<0.000000e+00> : vector<16x16xf32>
    %96 = tpu.matmul %95, %87, %cst_95 {dimension_numbers = #tpu.dot_dimension_numbers<[1], [0], [0], [1], [0, 0, 1, 1], [], []>} : vector<16x8xf32>, vector<8x16xf32>, vector<16x16xf32> -> vector<16x16xf32>
    %97 = arith.addf %93, %96 : vector<16x16xf32>
    %c2_96 = arith.constant 2 : index
    %c0_97 = arith.constant 0 : index
    %c0_98 = arith.constant 0 : index
    %98 = vector.load %arg8[%c2_96, %c0_97, %c0_98] : memref<3x16x8xf32, #tpu.memory_space<vmem>>, vector<1x16x8xf32>
    %99 = vector.shape_cast %98 : vector<1x16x8xf32> to vector<16x8xf32>
    %cst_99 = arith.constant dense<0.000000e+00> : vector<16x16xf32>
    %100 = tpu.matmul %99, %90, %cst_99 {dimension_numbers = #tpu.dot_dimension_numbers<[1], [0], [0], [1], [0, 0, 1, 1], [], []>} : vector<16x8xf32>, vector<8x16xf32>, vector<16x16xf32> -> vector<16x16xf32>
    %101 = arith.addf %97, %100 : vector<16x16xf32>
    %c0_100 = arith.constant 0 : index
    %c0_101 = arith.constant 0 : index
    %c0_102 = arith.constant 0 : index
    %102 = vector.load %arg11[%c0_100, %c0_101, %c0_102] : memref<6x16x1xf32, #tpu.memory_space<vmem>>, vector<1x16x1xf32>
    %103 = vector.shape_cast %102 : vector<1x16x1xf32> to vector<16x1xf32>
    %104 = vector.broadcast %103 : vector<16x1xf32> to vector<16x16xf32>
    %105 = arith.mulf %101, %104 : vector<16x16xf32>
    %c1_103 = arith.constant 1 : index
    %c0_104 = arith.constant 0 : index
    %c0_105 = arith.constant 0 : index
    %106 = vector.load %arg11[%c1_103, %c0_104, %c0_105] : memref<6x16x1xf32, #tpu.memory_space<vmem>>, vector<1x16x1xf32>
    %107 = vector.shape_cast %106 : vector<1x16x1xf32> to vector<16x1xf32>
    %108 = vector.broadcast %107 : vector<16x1xf32> to vector<16x16xf32>
    %109 = arith.addf %105, %108 : vector<16x16xf32>
    %cst_106 = arith.constant 0.000000e+00 : f32
    %110 = vector.broadcast %cst_106 : f32 to vector<16x16xf32>
    %111 = arith.maximumf %109, %110 : vector<16x16xf32>
    %c0_107 = arith.constant 0 : index
    %c0_108 = arith.constant 0 : index
    %c0_109 = arith.constant 0 : index
    %112 = vector.load %arg9[%c0_107, %c0_108, %c0_109] : memref<3x16x8xf32, #tpu.memory_space<vmem>>, vector<1x16x8xf32>
    %113 = vector.shape_cast %112 : vector<1x16x8xf32> to vector<16x8xf32>
    %cst_110 = arith.constant dense<0.000000e+00> : vector<16x16xf32>
    %114 = tpu.matmul %113, %84, %cst_110 {dimension_numbers = #tpu.dot_dimension_numbers<[1], [0], [0], [1], [0, 0, 1, 1], [], []>} : vector<16x8xf32>, vector<8x16xf32>, vector<16x16xf32> -> vector<16x16xf32>
    %c1_111 = arith.constant 1 : index
    %c0_112 = arith.constant 0 : index
    %c0_113 = arith.constant 0 : index
    %115 = vector.load %arg9[%c1_111, %c0_112, %c0_113] : memref<3x16x8xf32, #tpu.memory_space<vmem>>, vector<1x16x8xf32>
    %116 = vector.shape_cast %115 : vector<1x16x8xf32> to vector<16x8xf32>
    %cst_114 = arith.constant dense<0.000000e+00> : vector<16x16xf32>
    %117 = tpu.matmul %116, %87, %cst_114 {dimension_numbers = #tpu.dot_dimension_numbers<[1], [0], [0], [1], [0, 0, 1, 1], [], []>} : vector<16x8xf32>, vector<8x16xf32>, vector<16x16xf32> -> vector<16x16xf32>
    %118 = arith.addf %114, %117 : vector<16x16xf32>
    %c2_115 = arith.constant 2 : index
    %c0_116 = arith.constant 0 : index
    %c0_117 = arith.constant 0 : index
    %119 = vector.load %arg9[%c2_115, %c0_116, %c0_117] : memref<3x16x8xf32, #tpu.memory_space<vmem>>, vector<1x16x8xf32>
    %120 = vector.shape_cast %119 : vector<1x16x8xf32> to vector<16x8xf32>
    %cst_118 = arith.constant dense<0.000000e+00> : vector<16x16xf32>
    %121 = tpu.matmul %120, %90, %cst_118 {dimension_numbers = #tpu.dot_dimension_numbers<[1], [0], [0], [1], [0, 0, 1, 1], [], []>} : vector<16x8xf32>, vector<8x16xf32>, vector<16x16xf32> -> vector<16x16xf32>
    %122 = arith.addf %118, %121 : vector<16x16xf32>
    %c2_119 = arith.constant 2 : index
    %c0_120 = arith.constant 0 : index
    %c0_121 = arith.constant 0 : index
    %123 = vector.load %arg11[%c2_119, %c0_120, %c0_121] : memref<6x16x1xf32, #tpu.memory_space<vmem>>, vector<1x16x1xf32>
    %124 = vector.shape_cast %123 : vector<1x16x1xf32> to vector<16x1xf32>
    %125 = vector.broadcast %124 : vector<16x1xf32> to vector<16x16xf32>
    %126 = arith.mulf %122, %125 : vector<16x16xf32>
    %c3_122 = arith.constant 3 : index
    %c0_123 = arith.constant 0 : index
    %c0_124 = arith.constant 0 : index
    %127 = vector.load %arg11[%c3_122, %c0_123, %c0_124] : memref<6x16x1xf32, #tpu.memory_space<vmem>>, vector<1x16x1xf32>
    %128 = vector.shape_cast %127 : vector<1x16x1xf32> to vector<16x1xf32>
    %129 = vector.broadcast %128 : vector<16x1xf32> to vector<16x16xf32>
    %130 = arith.addf %126, %129 : vector<16x16xf32>
    %c0_125 = arith.constant 0 : index
    %c0_126 = arith.constant 0 : index
    %c0_127 = arith.constant 0 : index
    %131 = vector.load %arg13[%c0_125, %c0_126, %c0_127] : memref<3x16x16xf32, #tpu.memory_space<vmem>>, vector<1x16x16xf32>
    %132 = vector.shape_cast %131 : vector<1x16x16xf32> to vector<16x16xf32>
    %cst_128 = arith.constant dense<0.000000e+00> : vector<16x16xf32>
    %133 = tpu.matmul %111, %132, %cst_128 {dimension_numbers = #tpu.dot_dimension_numbers<[1], [0], [0], [1], [0, 0, 1, 1], [], []>} : vector<16x16xf32>, vector<16x16xf32>, vector<16x16xf32> -> vector<16x16xf32>
    %c1_129 = arith.constant 1 : index
    %c0_130 = arith.constant 0 : index
    %c0_131 = arith.constant 0 : index
    %134 = vector.load %arg13[%c1_129, %c0_130, %c0_131] : memref<3x16x16xf32, #tpu.memory_space<vmem>>, vector<1x16x16xf32>
    %135 = vector.shape_cast %134 : vector<1x16x16xf32> to vector<16x16xf32>
    %cst_132 = arith.constant dense<0.000000e+00> : vector<16x16xf32>
    %136 = tpu.matmul %111, %135, %cst_132 {dimension_numbers = #tpu.dot_dimension_numbers<[1], [0], [0], [1], [0, 0, 1, 1], [], []>} : vector<16x16xf32>, vector<16x16xf32>, vector<16x16xf32> -> vector<16x16xf32>
    %c2_133 = arith.constant 2 : index
    %c0_134 = arith.constant 0 : index
    %c0_135 = arith.constant 0 : index
    %137 = vector.load %arg13[%c2_133, %c0_134, %c0_135] : memref<3x16x16xf32, #tpu.memory_space<vmem>>, vector<1x16x16xf32>
    %138 = vector.shape_cast %137 : vector<1x16x16xf32> to vector<16x16xf32>
    %cst_136 = arith.constant dense<0.000000e+00> : vector<16x16xf32>
    %139 = tpu.matmul %111, %138, %cst_136 {dimension_numbers = #tpu.dot_dimension_numbers<[1], [0], [0], [1], [0, 0, 1, 1], [], []>} : vector<16x16xf32>, vector<16x16xf32>, vector<16x16xf32> -> vector<16x16xf32>
    %c0_137 = arith.constant 0 : index
    %c0_138 = arith.constant 0 : index
    %c0_139 = arith.constant 0 : index
    %140 = vector.load %arg10[%c0_137, %c0_138, %c0_139] : memref<3x16x16xf32, #tpu.memory_space<vmem>>, vector<1x16x16xf32>
    %141 = vector.shape_cast %140 : vector<1x16x16xf32> to vector<16x16xf32>
    %cst_140 = arith.constant dense<0.000000e+00> : vector<16x16xf32>
    %142 = tpu.matmul %141, %133, %cst_140 {dimension_numbers = #tpu.dot_dimension_numbers<[1], [0], [0], [1], [0, 0, 1, 1], [], []>} : vector<16x16xf32>, vector<16x16xf32>, vector<16x16xf32> -> vector<16x16xf32>
    %c1_141 = arith.constant 1 : index
    %c0_142 = arith.constant 0 : index
    %c0_143 = arith.constant 0 : index
    %143 = vector.load %arg10[%c1_141, %c0_142, %c0_143] : memref<3x16x16xf32, #tpu.memory_space<vmem>>, vector<1x16x16xf32>
    %144 = vector.shape_cast %143 : vector<1x16x16xf32> to vector<16x16xf32>
    %cst_144 = arith.constant dense<0.000000e+00> : vector<16x16xf32>
    %145 = tpu.matmul %144, %136, %cst_144 {dimension_numbers = #tpu.dot_dimension_numbers<[1], [0], [0], [1], [0, 0, 1, 1], [], []>} : vector<16x16xf32>, vector<16x16xf32>, vector<16x16xf32> -> vector<16x16xf32>
    %146 = arith.addf %142, %145 : vector<16x16xf32>
    %c2_145 = arith.constant 2 : index
    %c0_146 = arith.constant 0 : index
    %c0_147 = arith.constant 0 : index
    %147 = vector.load %arg10[%c2_145, %c0_146, %c0_147] : memref<3x16x16xf32, #tpu.memory_space<vmem>>, vector<1x16x16xf32>
    %148 = vector.shape_cast %147 : vector<1x16x16xf32> to vector<16x16xf32>
    %cst_148 = arith.constant dense<0.000000e+00> : vector<16x16xf32>
    %149 = tpu.matmul %148, %139, %cst_148 {dimension_numbers = #tpu.dot_dimension_numbers<[1], [0], [0], [1], [0, 0, 1, 1], [], []>} : vector<16x16xf32>, vector<16x16xf32>, vector<16x16xf32> -> vector<16x16xf32>
    %150 = arith.addf %146, %149 : vector<16x16xf32>
    %c4_149 = arith.constant 4 : index
    %c0_150 = arith.constant 0 : index
    %c0_151 = arith.constant 0 : index
    %151 = vector.load %arg11[%c4_149, %c0_150, %c0_151] : memref<6x16x1xf32, #tpu.memory_space<vmem>>, vector<1x16x1xf32>
    %152 = vector.shape_cast %151 : vector<1x16x1xf32> to vector<16x1xf32>
    %153 = vector.broadcast %152 : vector<16x1xf32> to vector<16x16xf32>
    %154 = arith.mulf %150, %153 : vector<16x16xf32>
    %c5_152 = arith.constant 5 : index
    %c0_153 = arith.constant 0 : index
    %c0_154 = arith.constant 0 : index
    %155 = vector.load %arg11[%c5_152, %c0_153, %c0_154] : memref<6x16x1xf32, #tpu.memory_space<vmem>>, vector<1x16x1xf32>
    %156 = vector.shape_cast %155 : vector<1x16x1xf32> to vector<16x1xf32>
    %157 = vector.broadcast %156 : vector<16x1xf32> to vector<16x16xf32>
    %158 = arith.addf %154, %157 : vector<16x16xf32>
    %159 = arith.addf %158, %130 : vector<16x16xf32>
    %cst_155 = arith.constant 0.000000e+00 : f32
    %160 = vector.broadcast %cst_155 : f32 to vector<16x16xf32>
    %161 = arith.maximumf %159, %160 : vector<16x16xf32>
    %cst_156 = arith.constant dense<0.000000e+00> : vector<16xf32>
    %162 = vector.multi_reduction <add>, %161, %cst_156 [0] : vector<16x16xf32> to vector<16xf32>
    %163 = vector.shape_cast %162 : vector<16xf32> to vector<1x16xf32>
    %cst_157 = arith.constant 1.600000e+01 : f32
    %164 = vector.broadcast %cst_157 : f32 to vector<1x16xf32>
    %165 = arith.divf %163, %164 : vector<1x16xf32>
    %c0_158 = arith.constant 0 : index
    %c0_159 = arith.constant 0 : index
    %c0_160 = arith.constant 0 : index
    %166 = vector.load %arg14[%c0_158, %c0_159, %c0_160] : memref<1x1x16xf32, #tpu.memory_space<vmem>>, vector<1x1x16xf32>
    %167 = vector.shape_cast %166 : vector<1x1x16xf32> to vector<1x16xf32>
    %168 = vector.shape_cast %165 : vector<1x16xf32> to vector<1x1x16xf32>
    tpu.vector_store %arg14[%c0_158, %c0_159, %c0_160], %168 {strides = array<i32>} : memref<1x1x16xf32, #tpu.memory_space<vmem>>, vector<1x1x16xf32>,
    return
  }
  func.func @transform_0(%arg0: i32) -> (i32, i32, i32) {
    %c0_i32 = arith.constant 0 : i32
    %c0_i32_0 = arith.constant 0 : i32
    %c0_i32_1 = arith.constant 0 : i32
    return %arg0, %c0_i32, %c0_i32_0 : i32, i32, i32
  }
  func.func @transform_1(%arg0: i32) -> (i32, i32, i32) {
    %c0_i32 = arith.constant 0 : i32
    %c0_i32_0 = arith.constant 0 : i32
    %c0_i32_1 = arith.constant 0 : i32
    %c0_i32_2 = arith.constant 0 : i32
    return %c0_i32, %c0_i32_0, %c0_i32_1 : i32, i32, i32
  }
  func.func @transform_2(%arg0: i32) -> (i32, i32, i32) {
    %c0_i32 = arith.constant 0 : i32
    %c0_i32_0 = arith.constant 0 : i32
    %c0_i32_1 = arith.constant 0 : i32
    %c0_i32_2 = arith.constant 0 : i32
    return %c0_i32, %c0_i32_0, %c0_i32_1 : i32, i32, i32
  }
  func.func @transform_3(%arg0: i32) -> (i32, i32, i32) {
    %c0_i32 = arith.constant 0 : i32
    %c0_i32_0 = arith.constant 0 : i32
    %c0_i32_1 = arith.constant 0 : i32
    %c0_i32_2 = arith.constant 0 : i32
    return %c0_i32, %c0_i32_0, %c0_i32_1 : i32, i32, i32
  }
  func.func @transform_4(%arg0: i32) -> (i32, i32, i32) {
    %c0_i32 = arith.constant 0 : i32
    %c0_i32_0 = arith.constant 0 : i32
    %c0_i32_1 = arith.constant 0 : i32
    %c0_i32_2 = arith.constant 0 : i32
    return %c0_i32, %c0_i32_0, %c0_i32_1 : i32, i32, i32
  }
  func.func @transform_5(%arg0: i32) -> (i32, i32, i32) {
    %c0_i32 = arith.constant 0 : i32
    %c0_i32_0 = arith.constant 0 : i32
    %c0_i32_1 = arith.constant 0 : i32
    %c0_i32_2 = arith.constant 0 : i32
    return %c0_i32, %c0_i32_0, %c0_i32_1 : i32, i32, i32
  }
  func.func @transform_6(%arg0: i32) -> (i32, i32, i32) {
    %c0_i32 = arith.constant 0 : i32
    %c0_i32_0 = arith.constant 0 : i32
    %c0_i32_1 = arith.constant 0 : i32
    %c0_i32_2 = arith.constant 0 : i32
    return %c0_i32, %c0_i32_0, %c0_i32_1 : i32, i32, i32
  }
  func.func @transform_7(%arg0: i32) -> (i32, i32, i32) {
    %c0_i32 = arith.constant 0 : i32
    %c0_i32_0 = arith.constant 0 : i32
    %c0_i32_1 = arith.constant 0 : i32
    %c0_i32_2 = arith.constant 0 : i32
    return %c0_i32, %c0_i32_0, %c0_i32_1 : i32, i32, i32
  }
  func.func @transform_8(%arg0: i32) -> (i32, i32, i32) {
    %c0_i32 = arith.constant 0 : i32
    %c0_i32_0 = arith.constant 0 : i32
    %c0_i32_1 = arith.constant 0 : i32
    %c0_i32_2 = arith.constant 0 : i32
    return %c0_i32, %c0_i32_0, %c0_i32_1 : i32, i32, i32
  }
  func.func @transform_9(%arg0: i32) -> (i32, i32, i32) {
    %c0_i32 = arith.constant 0 : i32
    %c0_i32_0 = arith.constant 0 : i32
    %c0_i32_1 = arith.constant 0 : i32
    %c0_i32_2 = arith.constant 0 : i32
    return %c0_i32, %c0_i32_0, %c0_i32_1 : i32, i32, i32
  }
  func.func @transform_10(%arg0: i32) -> (i32, i32, i32) {
    %c0_i32 = arith.constant 0 : i32
    %c0_i32_0 = arith.constant 0 : i32
    %c0_i32_1 = arith.constant 0 : i32
    %c0_i32_2 = arith.constant 0 : i32
    return %c0_i32, %c0_i32_0, %c0_i32_1 : i32, i32, i32
  }
  func.func @transform_11(%arg0: i32) -> (i32, i32, i32) {
    %c0_i32 = arith.constant 0 : i32
    %c0_i32_0 = arith.constant 0 : i32
    %c0_i32_1 = arith.constant 0 : i32
    %c0_i32_2 = arith.constant 0 : i32
    return %c0_i32, %c0_i32_0, %c0_i32_1 : i32, i32, i32
  }
  func.func @transform_12(%arg0: i32) -> (i32, i32, i32) {
    %c0_i32 = arith.constant 0 : i32
    %c0_i32_0 = arith.constant 0 : i32
    %c0_i32_1 = arith.constant 0 : i32
    %c0_i32_2 = arith.constant 0 : i32
    return %c0_i32, %c0_i32_0, %c0_i32_1 : i32, i32, i32
  }
  func.func @transform_13(%arg0: i32) -> (i32, i32, i32) {
    %c0_i32 = arith.constant 0 : i32
    %c0_i32_0 = arith.constant 0 : i32
    %c0_i32_1 = arith.constant 0 : i32
    return %arg0, %c0_i32, %c0_i32_0 : i32, i32, i32
  }
}

</mosaic_0001>

<llo_original>
// kernel: tpu_custom_call.1
$region0: #{tpu_custom_call.1}
  #allocation0 [shape = 'u32[]', space=smem, size = 0x4, offset = 0x4, fixed_abs, tag = 'smem constant byte address 0x4 - core index']
  #allocation1 [shape = 'u32[144,128]{1,0:T(1,128)}', space=vmem, size = 0x12000, scoped, tag = 'internal scratch']
  %s0 = inlined_call_operand.vmem [shape: f32[2,4,64], index: 0, kind: input, shape index: {}]
  %s1 = inlined_call_operand.vmem [shape: f32[3,8,4], index: 1, kind: input, shape index: {}]
  %s2 = inlined_call_operand.vmem [shape: f32[3,8,4], index: 2, kind: input, shape index: {}]
  %s3 = inlined_call_operand.vmem [shape: f32[3,8,8], index: 3, kind: input, shape index: {}]
  %s4 = inlined_call_operand.vmem [shape: f32[6,8,1], index: 4, kind: input, shape index: {}]
  %s5 = inlined_call_operand.vmem [shape: f32[3,64,32], index: 5, kind: input, shape index: {}]
  %s6 = inlined_call_operand.vmem [shape: f32[3,32,32], index: 6, kind: input, shape index: {}]
  %s7 = inlined_call_operand.vmem [shape: f32[3,16,8], index: 7, kind: input, shape index: {}]
  %s8 = inlined_call_operand.vmem [shape: f32[3,16,8], index: 8, kind: input, shape index: {}]
  %s9 = inlined_call_operand.vmem [shape: f32[3,16,16], index: 9, kind: input, shape index: {}]
  %s10 = inlined_call_operand.vmem [shape: f32[6,16,1], index: 10, kind: input, shape index: {}]
  %s11 = inlined_call_operand.vmem [shape: f32[3,32,16], index: 11, kind: input, shape index: {}]
  %s12 = inlined_call_operand.vmem [shape: f32[3,16,16], index: 12, kind: input, shape index: {}]
  %s13 = inlined_call_operand.hbm [shape: f32[2,1,16], index: 13, kind: output, shape index: {}]
  %s14 = sld [smem:[#allocation0]]
  $region85: #{tpu_custom_call.1} parent=0
    _
  %s16 = ssub.s32 1, %s14
  %s17 = scalar_select 0, %s16, %s14
  $region1: #{tpu_custom_call.1} parent=0
    #allocation2 [shape = 'u8[1024]{0}', space=vmem, size = 0x400, scoped, tag = 'output window, operand 0']
    #allocation3 [shape = 's32[2]{0}', space=sflag, size = 0x8, scoped, tag = 'scoped memory for tpu_custom_call.1']
    %18 = vsyncpa [#allocation3], 0
    %s19 = scalar_lea.sflag [#allocation3], 1
    %20 = vsyncpa %s19, 0
    loop: start=0, step=1, limit=4
    $region2: #{tpu_custom_call.1} parent=1 // loop_pre_header
      _
    $region3: #{tpu_custom_call.1} parent=1 // loop_header
      %s22 = sphi 0, %s26
      %p23 = scmp.ge.s32.totalorder %s22, 4
      %s32 = sphi 0, %s34
      %s35 = sphi 0, %s32
      %s36 = sphi 0, %s35
      %s52 = sphi 0, %s36
      %s56 = sphi 0, %s56
      %s58 = sphi 0, %s56
      %s59 = sphi 0, %s58
      %s73 = sphi 0, %s59
      %s77 = sphi 0, %s77
      %s79 = sphi 0, %s77
      %s80 = sphi 0, %s79
      %s94 = sphi 0, %s80
      %s98 = sphi 0, %s98
      %s100 = sphi 0, %s98
      %s101 = sphi 0, %s100
      %s115 = sphi 0, %s101
      %s119 = sphi 0, %s119
      %s121 = sphi 0, %s119
      %s122 = sphi 0, %s121
      %s136 = sphi 0, %s122
      %s140 = sphi 0, %s140
      %s142 = sphi 0, %s140
      %s143 = sphi 0, %s142
      %s157 = sphi 0, %s143
      %s161 = sphi 0, %s161
      %s163 = sphi 0, %s161
      %s164 = sphi 0, %s163
      %s178 = sphi 0, %s164
      %s182 = sphi 0, %s182
      %s184 = sphi 0, %s182
      %s185 = sphi 0, %s184
      %s199 = sphi 0, %s185
      %s203 = sphi 0, %s203
      %s205 = sphi 0, %s203
      %s206 = sphi 0, %s205
      %s220 = sphi 0, %s206
      %s224 = sphi 0, %s224
      %s226 = sphi 0, %s224
      %s227 = sphi 0, %s226
      %s241 = sphi 0, %s227
      %s245 = sphi 0, %s245
      %s247 = sphi 0, %s245
      %s248 = sphi 0, %s247
      %s262 = sphi 0, %s248
      %s266 = sphi 0, %s266
      %s268 = sphi 0, %s266
      %s269 = sphi 0, %s268
      %s283 = sphi 0, %s269
      %s287 = sphi 0, %s287
      %s289 = sphi 0, %s287
      %s290 = sphi 0, %s289
      %s304 = sphi 0, %s290
      %s310 = sphi 0, %s312
      %s313 = sphi 0, %s310
      %s314 = sphi 0, %s313
      %s330 = sphi 0, %s314
    $region4: #{tpu_custom_call.1} parent=1 // loop_header_branch
      %25 = sbr.rel (%p23) target = $region8
    $region5: #{tpu_custom_call.1} parent=1 // loop_body
      %s27 = ssub.s32 %s22, 1
      %s28 = ssub.s32 %s22, 2
      %s29 = sadd.s32 %s22, 1
      %s30 = ssub.s32 %s22, %s29
      %p31 = scmp.eq.s32.totalorder %s30, 0
      %s33 = sadd.s32 %s32, 1
      %s34 = scalar_select %p31, %s32, %s33
      %p37 = pneg %p31
      %p38 = scmp.eq.s32.totalorder %s22, 1
      %p39 = por %p37, %p38
      %p40 = scmp.ne.s32.totalorder %s32, %s35
      %p41 = scmp.eq.s32.totalorder %s22, 0
      %p42 = por %p40, %p41
      %p43 = scmp.ne.s32.totalorder %s32, %s35
      %p44 = scmp.eq.s32.totalorder %s27, 1
      %p45 = por %p43, %p44
      %p46 = scmp.ne.s32.totalorder %s35, %s36
      %p47 = scmp.eq.s32.totalorder %s27, 0
      %p48 = por %p46, %p47
      %p49 = scmp.ne.s32.totalorder %s35, %s36
      %p50 = scmp.eq.s32.totalorder %s28, 1
      %p51 = por %p49, %p50
      %p53 = scmp.ne.s32.totalorder %s36, %s52
      %p54 = scmp.eq.s32.totalorder %s28, 0
      %p55 = por %p53, %p54
      %s57 = sadd.s32 %s56, 1
      %p60 = scmp.eq.s32.totalorder %s22, 1
      %p61 = scmp.ne.s32.totalorder %s56, %s58
      %p62 = scmp.eq.s32.totalorder %s22, 0
      %p63 = por %p61, %p62
      %p64 = scmp.ne.s32.totalorder %s56, %s58
      %p65 = scmp.eq.s32.totalorder %s27, 1
      %p66 = por %p64, %p65
      %p67 = scmp.ne.s32.totalorder %s58, %s59
      %p68 = scmp.eq.s32.totalorder %s27, 0
      %p69 = por %p67, %p68
      %p70 = scmp.ne.s32.totalorder %s58, %s59
      %p71 = scmp.eq.s32.totalorder %s28, 1
      %p72 = por %p70, %p71
      %p74 = scmp.ne.s32.totalorder %s59, %s73
      %p75 = scmp.eq.s32.totalorder %s28, 0
      %p76 = por %p74, %p75
      %s78 = sadd.s32 %s77, 1
      %p81 = scmp.eq.s32.totalorder %s22, 1
      %p82 = scmp.ne.s32.totalorder %s77, %s79
      %p83 = scmp.eq.s32.totalorder %s22, 0
      %p84 = por %p82, %p83
      %p85 = scmp.ne.s32.totalorder %s77, %s79
      %p86 = scmp.eq.s32.totalorder %s27, 1
      %p87 = por %p85, %p86
      %p88 = scmp.ne.s32.totalorder %s79, %s80
      %p89 = scmp.eq.s32.totalorder %s27, 0
      %p90 = por %p88, %p89
      %p91 = scmp.ne.s32.totalorder %s79, %s80
      %p92 = scmp.eq.s32.totalorder %s28, 1
      %p93 = por %p91, %p92
      %p95 = scmp.ne.s32.totalorder %s80, %s94
      %p96 = scmp.eq.s32.totalorder %s28, 0
      %p97 = por %p95, %p96
      %s99 = sadd.s32 %s98, 1
      %p102 = scmp.eq.s32.totalorder %s22, 1
      %p103 = scmp.ne.s32.totalorder %s98, %s100
      %p104 = scmp.eq.s32.totalorder %s22, 0
      %p105 = por %p103, %p104
      %p106 = scmp.ne.s32.totalorder %s98, %s100
      %p107 = scmp.eq.s32.totalorder %s27, 1
      %p108 = por %p106, %p107
      %p109 = scmp.ne.s32.totalorder %s100, %s101
      %p110 = scmp.eq.s32.totalorder %s27, 0
      %p111 = por %p109, %p110
      %p112 = scmp.ne.s32.totalorder %s100, %s101
      %p113 = scmp.eq.s32.totalorder %s28, 1
      %p114 = por %p112, %p113
      %p116 = scmp.ne.s32.totalorder %s101, %s115
      %p117 = scmp.eq.s32.totalorder %s28, 0
      %p118 = por %p116, %p117
      %s120 = sadd.s32 %s119, 1
      %p123 = scmp.eq.s32.totalorder %s22, 1
      %p124 = scmp.ne.s32.totalorder %s119, %s121
      %p125 = scmp.eq.s32.totalorder %s22, 0
      %p126 = por %p124, %p125
      %p127 = scmp.ne.s32.totalorder %s119, %s121
      %p128 = scmp.eq.s32.totalorder %s27, 1
      %p129 = por %p127, %p128
      %p130 = scmp.ne.s32.totalorder %s121, %s122
      %p131 = scmp.eq.s32.totalorder %s27, 0
      %p132 = por %p130, %p131
      %p133 = scmp.ne.s32.totalorder %s121, %s122
      %p134 = scmp.eq.s32.totalorder %s28, 1
      %p135 = por %p133, %p134
      %p137 = scmp.ne.s32.totalorder %s122, %s136
      %p138 = scmp.eq.s32.totalorder %s28, 0
      %p139 = por %p137, %p138
      %s141 = sadd.s32 %s140, 1
      %p144 = scmp.eq.s32.totalorder %s22, 1
      %p145 = scmp.ne.s32.totalorder %s140, %s142
      %p146 = scmp.eq.s32.totalorder %s22, 0
      %p147 = por %p145, %p146
      %p148 = scmp.ne.s32.totalorder %s140, %s142
      %p149 = scmp.eq.s32.totalorder %s27, 1
      %p150 = por %p148, %p149
      %p151 = scmp.ne.s32.totalorder %s142, %s143
      %p152 = scmp.eq.s32.totalorder %s27, 0
      %p153 = por %p151, %p152
      %p154 = scmp.ne.s32.totalorder %s142, %s143
      %p155 = scmp.eq.s32.totalorder %s28, 1
      %p156 = por %p154, %p155
      %p158 = scmp.ne.s32.totalorder %s143, %s157
      %p159 = scmp.eq.s32.totalorder %s28, 0
      %p160 = por %p158, %p159
      %s162 = sadd.s32 %s161, 1
      %p165 = scmp.eq.s32.totalorder %s22, 1
      %p166 = scmp.ne.s32.totalorder %s161, %s163
      %p167 = scmp.eq.s32.totalorder %s22, 0
      %p168 = por %p166, %p167
      %p169 = scmp.ne.s32.totalorder %s161, %s163
      %p170 = scmp.eq.s32.totalorder %s27, 1
      %p171 = por %p169, %p170
      %p172 = scmp.ne.s32.totalorder %s163, %s164
      %p173 = scmp.eq.s32.totalorder %s27, 0
      %p174 = por %p172, %p173
      %p175 = scmp.ne.s32.totalorder %s163, %s164
      %p176 = scmp.eq.s32.totalorder %s28, 1
      %p177 = por %p175, %p176
      %p179 = scmp.ne.s32.totalorder %s164, %s178
      %p180 = scmp.eq.s32.totalorder %s28, 0
      %p181 = por %p179, %p180
      %s183 = sadd.s32 %s182, 1
      %p186 = scmp.eq.s32.totalorder %s22, 1
      %p187 = scmp.ne.s32.totalorder %s182, %s184
      %p188 = scmp.eq.s32.totalorder %s22, 0
      %p189 = por %p187, %p188
      %p190 = scmp.ne.s32.totalorder %s182, %s184
      %p191 = scmp.eq.s32.totalorder %s27, 1
      %p192 = por %p190, %p191
      %p193 = scmp.ne.s32.totalorder %s184, %s185
      %p194 = scmp.eq.s32.totalorder %s27, 0
      %p195 = por %p193, %p194
      %p196 = scmp.ne.s32.totalorder %s184, %s185
      %p197 = scmp.eq.s32.totalorder %s28, 1
      %p198 = por %p196, %p197
      %p200 = scmp.ne.s32.totalorder %s185, %s199
      %p201 = scmp.eq.s32.totalorder %s28, 0
      %p202 = por %p200, %p201
      %s204 = sadd.s32 %s203, 1
      %p207 = scmp.eq.s32.totalorder %s22, 1
      %p208 = scmp.ne.s32.totalorder %s203, %s205
      %p209 = scmp.eq.s32.totalorder %s22, 0
      %p210 = por %p208, %p209
      %p211 = scmp.ne.s32.totalorder %s203, %s205
      %p212 = scmp.eq.s32.totalorder %s27, 1
      %p213 = por %p211, %p212
      %p214 = scmp.ne.s32.totalorder %s205, %s206
      %p215 = scmp.eq.s32.totalorder %s27, 0
      %p216 = por %p214, %p215
      %p217 = scmp.ne.s32.totalorder %s205, %s206
      %p218 = scmp.eq.s32.totalorder %s28, 1
      %p219 = por %p217, %p218
      %p221 = scmp.ne.s32.totalorder %s206, %s220
      %p222 = scmp.eq.s32.totalorder %s28, 0
      %p223 = por %p221, %p222
      %s225 = sadd.s32 %s224, 1
      %p228 = scmp.eq.s32.totalorder %s22, 1
      %p229 = scmp.ne.s32.totalorder %s224, %s226
      %p230 = scmp.eq.s32.totalorder %s22, 0
      %p231 = por %p229, %p230
      %p232 = scmp.ne.s32.totalorder %s224, %s226
      %p233 = scmp.eq.s32.totalorder %s27, 1
      %p234 = por %p232, %p233
      %p235 = scmp.ne.s32.totalorder %s226, %s227
      %p236 = scmp.eq.s32.totalorder %s27, 0
      %p237 = por %p235, %p236
      %p238 = scmp.ne.s32.totalorder %s226, %s227
      %p239 = scmp.eq.s32.totalorder %s28, 1
      %p240 = por %p238, %p239
      %p242 = scmp.ne.s32.totalorder %s227, %s241
      %p243 = scmp.eq.s32.totalorder %s28, 0
      %p244 = por %p242, %p243
      %s246 = sadd.s32 %s245, 1
      %p249 = scmp.eq.s32.totalorder %s22, 1
      %p250 = scmp.ne.s32.totalorder %s245, %s247
      %p251 = scmp.eq.s32.totalorder %s22, 0
      %p252 = por %p250, %p251
      %p253 = scmp.ne.s32.totalorder %s245, %s247
      %p254 = scmp.eq.s32.totalorder %s27, 1
      %p255 = por %p253, %p254
      %p256 = scmp.ne.s32.totalorder %s247, %s248
      %p257 = scmp.eq.s32.totalorder %s27, 0
      %p258 = por %p256, %p257
      %p259 = scmp.ne.s32.totalorder %s247, %s248
      %p260 = scmp.eq.s32.totalorder %s28, 1
      %p261 = por %p259, %p260
      %p263 = scmp.ne.s32.totalorder %s248, %s262
      %p264 = scmp.eq.s32.totalorder %s28, 0
      %p265 = por %p263, %p264
      %s267 = sadd.s32 %s266, 1
      %p270 = scmp.eq.s32.totalorder %s22, 1
      %p271 = scmp.ne.s32.totalorder %s266, %s268
      %p272 = scmp.eq.s32.totalorder %s22, 0
      %p273 = por %p271, %p272
      %p274 = scmp.ne.s32.totalorder %s266, %s268
      %p275 = scmp.eq.s32.totalorder %s27, 1
      %p276 = por %p274, %p275
      %p277 = scmp.ne.s32.totalorder %s268, %s269
      %p278 = scmp.eq.s32.totalorder %s27, 0
      %p279 = por %p277, %p278
      %p280 = scmp.ne.s32.totalorder %s268, %s269
      %p281 = scmp.eq.s32.totalorder %s28, 1
      %p282 = por %p280, %p281
      %p284 = scmp.ne.s32.totalorder %s269, %s283
      %p285 = scmp.eq.s32.totalorder %s28, 0
      %p286 = por %p284, %p285
      %s288 = sadd.s32 %s287, 1
      %p291 = scmp.eq.s32.totalorder %s22, 1
      %p292 = scmp.ne.s32.totalorder %s287, %s289
      %p293 = scmp.eq.s32.totalorder %s22, 0
      %p294 = por %p292, %p293
      %p295 = scmp.ne.s32.totalorder %s287, %s289
      %p296 = scmp.eq.s32.totalorder %s27, 1
      %p297 = por %p295, %p296
      %p298 = scmp.ne.s32.totalorder %s289, %s290
      %p299 = scmp.eq.s32.totalorder %s27, 0
      %p300 = por %p298, %p299
      %p301 = scmp.ne.s32.totalorder %s289, %s290
      %p302 = scmp.eq.s32.totalorder %s28, 1
      %p303 = por %p301, %p302
      %p305 = scmp.ne.s32.totalorder %s290, %s304
      %p306 = scmp.eq.s32.totalorder %s28, 0
      %p307 = por %p305, %p306
      %s308 = ssub.s32 %s22, %s29
      %p309 = scmp.eq.s32.totalorder %s308, 0
      %s311 = sadd.s32 %s310, 1
      %s312 = scalar_select %p309, %s310, %s311
      %p315 = pneg %p309
      %p316 = scmp.eq.s32.totalorder %s22, 1
      %p317 = por %p315, %p316
      %p318 = scmp.ne.s32.totalorder %s310, %s313
      %p319 = scmp.eq.s32.totalorder %s22, 0
      %p320 = por %p318, %p319
      %p321 = scmp.ne.s32.totalorder %s310, %s313
      %p322 = scmp.eq.s32.totalorder %s27, 1
      %p323 = por %p321, %p322
      %p324 = scmp.ne.s32.totalorder %s313, %s314
      %p325 = scmp.eq.s32.totalorder %s27, 0
      %p326 = por %p324, %p325
      %p327 = scmp.ne.s32.totalorder %s313, %s314
      %p328 = scmp.eq.s32.totalorder %s28, 1
      %p329 = por %p327, %p328
      %p331 = scmp.ne.s32.totalorder %s314, %s330
      %p332 = scmp.eq.s32.totalorder %s28, 0
      %p333 = por %p331, %p332
      %p334 = scmp.le.s32.totalorder 1, %s22
      %p335 = scmp.lt.s32.totalorder %s22, 3
      %p336 = pnand %p334, %p335
      %p337 = pneg %p336
      // Predicated region
      $region9: #{tpu_custom_call.1} parent=5 // pred_check
        _
      $region10: #{tpu_custom_call.1} parent=5 // pred_check_branch
        %339 = sbr.rel (%p336) target = $region12
      $region11: #{tpu_custom_call.1} parent=5 // pred_region
        %s340 = ssub.s32 %s22, 1
        // Predicated region
        $region13: #{tpu_custom_call.1} parent=11 // pred_check
          %p341 = pneg %p69
        $region14: #{tpu_custom_call.1} parent=11 // pred_check_branch
          %343 = sbr.rel (%p341) target = $region16
        $region15: #{tpu_custom_call.1} parent=11 // pred_region
          _
        $region16: #{tpu_custom_call.1} parent=11 // pred_fallthru
          _
        // Predicated region
        $region17: #{tpu_custom_call.1} parent=11 // pred_check
          %p344 = pneg %p90
        $region18: #{tpu_custom_call.1} parent=11 // pred_check_branch
          %346 = sbr.rel (%p344) target = $region20
        $region19: #{tpu_custom_call.1} parent=11 // pred_region
          _
        $region20: #{tpu_custom_call.1} parent=11 // pred_fallthru
          _
        // Predicated region
        $region21: #{tpu_custom_call.1} parent=11 // pred_check
          %p347 = pneg %p111
        $region22: #{tpu_custom_call.1} parent=11 // pred_check_branch
          %349 = sbr.rel (%p347) target = $region24
        $region23: #{tpu_custom_call.1} parent=11 // pred_region
          _
        $region24: #{tpu_custom_call.1} parent=11 // pred_fallthru
          _
        // Predicated region
        $region25: #{tpu_custom_call.1} parent=11 // pred_check
          %p350 = pneg %p132
        $region26: #{tpu_custom_call.1} parent=11 // pred_check_branch
          %352 = sbr.rel (%p350) target = $region28
        $region27: #{tpu_custom_call.1} parent=11 // pred_region
          _
        $region28: #{tpu_custom_call.1} parent=11 // pred_fallthru
          _
        // Predicated region
        $region29: #{tpu_custom_call.1} parent=11 // pred_check
          %p353 = pneg %p153
        $region30: #{tpu_custom_call.1} parent=11 // pred_check_branch
          %355 = sbr.rel (%p353) target = $region32
        $region31: #{tpu_custom_call.1} parent=11 // pred_region
          _
        $region32: #{tpu_custom_call.1} parent=11 // pred_fallthru
          _
        // Predicated region
        $region33: #{tpu_custom_call.1} parent=11 // pred_check
          %p356 = pneg %p174
        $region34: #{tpu_custom_call.1} parent=11 // pred_check_branch
          %358 = sbr.rel (%p356) target = $region36
        $region35: #{tpu_custom_call.1} parent=11 // pred_region
          _
        $region36: #{tpu_custom_call.1} parent=11 // pred_fallthru
          _
        // Predicated region
        $region37: #{tpu_custom_call.1} parent=11 // pred_check
          %p359 = pneg %p195
        $region38: #{tpu_custom_call.1} parent=11 // pred_check_branch
          %361 = sbr.rel (%p359) target = $region40
        $region39: #{tpu_custom_call.1} parent=11 // pred_region
          _
        $region40: #{tpu_custom_call.1} parent=11 // pred_fallthru
          _
        // Predicated region
        $region41: #{tpu_custom_call.1} parent=11 // pred_check
          %p362 = pneg %p216
        $region42: #{tpu_custom_call.1} parent=11 // pred_check_branch
          %364 = sbr.rel (%p362) target = $region44
        $region43: #{tpu_custom_call.1} parent=11 // pred_region
          _
        $region44: #{tpu_custom_call.1} parent=11 // pred_fallthru
          _
        // Predicated region
        $region45: #{tpu_custom_call.1} parent=11 // pred_check
          %p365 = pneg %p237
        $region46: #{tpu_custom_call.1} parent=11 // pred_check_branch
          %367 = sbr.rel (%p365) target = $region48
        $region47: #{tpu_custom_call.1} parent=11 // pred_region
          _
        $region48: #{tpu_custom_call.1} parent=11 // pred_fallthru
          _
        // Predicated region
        $region49: #{tpu_custom_call.1} parent=11 // pred_check
          %p368 = pneg %p258
        $region50: #{tpu_custom_call.1} parent=11 // pred_check_branch
          %370 = sbr.rel (%p368) target = $region52
        $region51: #{tpu_custom_call.1} parent=11 // pred_region
          _
        $region52: #{tpu_custom_call.1} parent=11 // pred_fallthru
          _
        // Predicated region
        $region53: #{tpu_custom_call.1} parent=11 // pred_check
          %p371 = pneg %p279
        $region54: #{tpu_custom_call.1} parent=11 // pred_check_branch
          %373 = sbr.rel (%p371) target = $region56
        $region55: #{tpu_custom_call.1} parent=11 // pred_region
          _
        $region56: #{tpu_custom_call.1} parent=11 // pred_fallthru
          _
        // Predicated region
        $region57: #{tpu_custom_call.1} parent=11 // pred_check
          %p374 = pneg %p300
        $region58: #{tpu_custom_call.1} parent=11 // pred_check_branch
          %376 = sbr.rel (%p374) target = $region60
        $region59: #{tpu_custom_call.1} parent=11 // pred_region
          _
        $region60: #{tpu_custom_call.1} parent=11 // pred_fallthru
          _
      $region12: #{tpu_custom_call.1} parent=5 // pred_fallthru
        _
      %p377 = scmp.lt.s32.totalorder %s22, 2
      // Predicated region
      $region61: #{tpu_custom_call.1} parent=5 // pred_check
        %p378 = pneg %p377
      $region62: #{tpu_custom_call.1} parent=5 // pred_check_branch
        %380 = sbr.rel (%p378) target = $region64
      $region63: #{tpu_custom_call.1} parent=5 // pred_region
        // Predicated region
        $region65: #{tpu_custom_call.1} parent=63 // pred_check
          %p381 = pneg %p42
        $region66: #{tpu_custom_call.1} parent=63 // pred_check_branch
          %383 = sbr.rel (%p381) target = $region68
        $region67: #{tpu_custom_call.1} parent=63 // pred_region
          %p384 = scmp.lt.s32.totalorder %s22, 1
          %s385 = scalar_select %p384, %s22, 1
          %s386 = smul.addr %s385, 4
          %s387 = scalar_lea.vmem %s0, %s386
        $region68: #{tpu_custom_call.1} parent=63 // pred_fallthru
          _
      $region64: #{tpu_custom_call.1} parent=5 // pred_fallthru
        _
      %p388 = scmp.le.s32.totalorder 1, %s22
      %p389 = scmp.lt.s32.totalorder %s22, 3
      %p390 = pnand %p388, %p389
      %p391 = pneg %p390
      // Predicated region
      $region69: #{tpu_custom_call.1} parent=5 // pred_check
        _
      $region70: #{tpu_custom_call.1} parent=5 // pred_check_branch
        %393 = sbr.rel (%p390) target = $region72
      $region71: #{tpu_custom_call.1} parent=5 // pred_region
        %s394 = ssub.s32 %s22, 1
        %p395 = scmp.lt.s32.totalorder %s27, 1
        %s396 = scalar_select %p395, %s27, 1
        %s397 = smul.addr %s396, 4
        %s398 = scalar_lea.vmem %s0, %s397
        %p399 = pneg %p48
        %p400 = pneg %p45
        %p401 = pneg %p69
        %p402 = pneg %p66
        %p403 = pneg %p90
        %p404 = pneg %p87
        %p405 = pneg %p111
        %p406 = pneg %p108
        %p407 = pneg %p132
        %p408 = pneg %p129
        %p409 = pneg %p153
        %p410 = pneg %p150
        %p411 = pneg %p174
        %p412 = pneg %p171
        %p413 = pneg %p195
        %p414 = pneg %p192
        %p415 = pneg %p216
        %p416 = pneg %p213
        %p417 = pneg %p237
        %p418 = pneg %p234
        %p419 = pneg %p258
        %p420 = pneg %p255
        %p421 = pneg %p279
        %p422 = pneg %p276
        %p423 = pneg %p300
        %p424 = pneg %p297
        %p425 = pneg %p326
        %p426 = pneg %p323
        %s427 = sand.u32 %s313, 1
        %s428 = scalar_lea.sflag [#allocation3], %s427
        %s429 = sand.u32 %s313, 1
        %s430 = scalar_lea.vmem [#allocation2], %s429
        %p431 = scmp.lt.s32.totalorder %s27, 1
        %s432 = scalar_select %p431, %s27, 1
        %s433 = smul.addr %s432, 4
        %s434 = scalar_lea.vmem %s0, %s433
        %v435 = vld [vmem:[%s434] sm:$0xf]
        %v436 = vld [vmem:[%s5] sm:$0xff]
        %v437 = vld [vmem:[%s5 + $0x8] sm:$0xff]
        %v438 = vld [vmem:[%s5 + $0x10] sm:$0xff]
        %v439 = vld [vmem:[%s5 + $0x18] sm:$0xff]
        %v440 = vld [vmem:[%s5 + $0x20] sm:$0xff]
        %v441 = vld [vmem:[%s5 + $0x28] sm:$0xff]
        %v442 = vld [vmem:[%s5 + $0x30] sm:$0xff]
        %v443 = vld [vmem:[%s5 + $0x38] sm:$0xff]
        %vm444 = vcmask 523264
        %v446 = vsel %vm444, %v435, 0
        %448 = vmatprep.subr.mxu0 0.0
        %449 = vmatpush1.msra.mxu0 %v436
        %450 = vmatprep.subr.mxu0 0.0
        %451 = vmatpush1.msra.mxu0 %v437
        %452 = vmatprep.subr.mxu0 0.0
        %453 = vmatpush1.msra.mxu0 %v438
        %454 = vmatprep.subr.mxu0 0.0
        %455 = vmatpush1.msra.mxu0 %v439
        %456 = vmatprep.subr.mxu0 0.0
        %457 = vmatpush1.msra.mxu0 %v440
        %458 = vmatprep.subr.mxu0 0.0
        %459 = vmatpush1.msra.mxu0 %v441
        %460 = vmatprep.subr.mxu0 0.0
        %461 = vmatpush1.msra.mxu0 %v442
        %462 = vmatprep.subr.mxu0 0.0
        %463 = vmatpush1.msra.mxu0 %v443
        %464 = vmatprep.subr.mxu0 0.0
        %465 = vmatpush1.msra.mxu0 0.0
        %466 = vmatprep.subr.mxu0 0.0
        %467 = vmatpush1.msra.mxu0 0.0
        %468 = vmatprep.subr.mxu0 0.0
        %469 = vmatpush1.msra.mxu0 0.0
        %470 = vmatprep.subr.mxu0 0.0
        %471 = vmatpush1.msra.mxu0 0.0
        %472 = vmatprep.subr.mxu0 0.0
        %473 = vmatpush1.msra.mxu0 0.0
        %474 = vmatprep.subr.mxu0 0.0
        %475 = vmatpush1.msra.mxu0 0.0
        %476 = vmatprep.subr.mxu0 0.0
        %477 = vmatpush1.msra.mxu0 0.0
        %478 = vmatprep.subr.mxu0 0.0
        %479 = vmatpush1.msra.mxu0 0.0
        %480 = vmatprep.subr.mxu0 0.0
        %481 = vmatpush1.msra.mxu0 0.0
        %482 = vmatprep.subr.mxu0 0.0
        %483 = vmatpush1.msra.mxu0 0.0
        %484 = vmatprep.subr.mxu0 0.0
        %485 = vmatpush1.msra.mxu0 0.0
        %486 = vmatprep.subr.mxu0 0.0
        %487 = vmatpush1.msra.mxu0 0.0
        %488 = vmatprep.subr.mxu0 0.0
        %489 = vmatpush1.msra.mxu0 0.0
        %490 = vmatprep.subr.mxu0 0.0
        %491 = vmatpush1.msra.mxu0 0.0
        %492 = vmatprep.subr.mxu0 0.0
        %493 = vmatpush1.msra.mxu0 0.0
        %494 = vmatprep.subr.mxu0 0.0
        %495 = vmatpush1.msra.mxu0 0.0
        %496 = vmatprep.subr.mxu0 0.0
        %497 = vmatpush1.msra.mxu0 0.0
        %498 = vmatprep.subr.mxu0 0.0
        %499 = vmatpush1.msra.mxu0 0.0
        %500 = vmatprep.subr.mxu0 0.0
        %501 = vmatpush1.msra.mxu0 0.0
        %502 = vmatprep.subr.mxu0 0.0
        %503 = vmatpush1.msra.mxu0 0.0
        %504 = vmatprep.subr.mxu0 0.0
        %505 = vmatpush1.msra.mxu0 0.0
        %506 = vmatprep.subr.mxu0 0.0
        %507 = vmatpush1.msra.mxu0 0.0
        %508 = vmatprep.subr.mxu0 0.0
        %509 = vmatpush1.msra.mxu0 0.0
        %510 = vmatprep.subr.mxu0 0.0
        %511 = vmatpush1.msra.mxu0 0.0
        %512 = vmatprep.mubr.f32.mxu0 0.0
        %513 = vmatmul.mubr.f32.gmra.mrb[0].mxu0 %v446
        %v514 = vpop.f32.mrb[0].mxu0
        %v515 = vadd.f32 0.0, %v514
        %v516 = vpop.f32.mrb[0].mxu0
        %517 = vdwg.mxu0
        %s518 = scalar_lea.vmem %s5, 64
        %v519 = vld [vmem:[%s518] sm:$0xff]
        %v520 = vld [vmem:[%s518 + $0x8] sm:$0xff]
        %v521 = vld [vmem:[%s518 + $0x10] sm:$0xff]
        %v522 = vld [vmem:[%s518 + $0x18] sm:$0xff]
        %v523 = vld [vmem:[%s518 + $0x20] sm:$0xff]
        %v524 = vld [vmem:[%s518 + $0x28] sm:$0xff]
        %v525 = vld [vmem:[%s518 + $0x30] sm:$0xff]
        %v526 = vld [vmem:[%s518 + $0x38] sm:$0xff]
        %527 = vmatprep.subr.mxu0 0.0
        %528 = vmatpush1.msra.mxu0 %v519
        %529 = vmatprep.subr.mxu0 0.0
        %530 = vmatpush1.msra.mxu0 %v520
        %531 = vmatprep.subr.mxu0 0.0
        %532 = vmatpush1.msra.mxu0 %v521
        %533 = vmatprep.subr.mxu0 0.0
        %534 = vmatpush1.msra.mxu0 %v522
        %535 = vmatprep.subr.mxu0 0.0
        %536 = vmatpush1.msra.mxu0 %v523
        %537 = vmatprep.subr.mxu0 0.0
        %538 = vmatpush1.msra.mxu0 %v524
        %539 = vmatprep.subr.mxu0 0.0
        %540 = vmatpush1.msra.mxu0 %v525
        %541 = vmatprep.subr.mxu0 0.0
        %542 = vmatpush1.msra.mxu0 %v526
        %543 = vmatprep.subr.mxu0 0.0
        %544 = vmatpush1.msra.mxu0 0.0
        %545 = vmatprep.subr.mxu0 0.0
        %546 = vmatpush1.msra.mxu0 0.0
        %547 = vmatprep.subr.mxu0 0.0
        %548 = vmatpush1.msra.mxu0 0.0
        %549 = vmatprep.subr.mxu0 0.0
        %550 = vmatpush1.msra.mxu0 0.0
        %551 = vmatprep.subr.mxu0 0.0
        %552 = vmatpush1.msra.mxu0 0.0
        %553 = vmatprep.subr.mxu0 0.0
        %554 = vmatpush1.msra.mxu0 0.0
        %555 = vmatprep.subr.mxu0 0.0
        %556 = vmatpush1.msra.mxu0 0.0
        %557 = vmatprep.subr.mxu0 0.0
        %558 = vmatpush1.msra.mxu0 0.0
        %559 = vmatprep.subr.mxu0 0.0
        %560 = vmatpush1.msra.mxu0 0.0
        %561 = vmatprep.subr.mxu0 0.0
        %562 = vmatpush1.msra.mxu0 0.0
        %563 = vmatprep.subr.mxu0 0.0
        %564 = vmatpush1.msra.mxu0 0.0
        %565 = vmatprep.subr.mxu0 0.0
        %566 = vmatpush1.msra.mxu0 0.0
        %567 = vmatprep.subr.mxu0 0.0
        %568 = vmatpush1.msra.mxu0 0.0
        %569 = vmatprep.subr.mxu0 0.0
        %570 = vmatpush1.msra.mxu0 0.0
        %571 = vmatprep.subr.mxu0 0.0
        %572 = vmatpush1.msra.mxu0 0.0
        %573 = vmatprep.subr.mxu0 0.0
        %574 = vmatpush1.msra.mxu0 0.0
        %575 = vmatprep.subr.mxu0 0.0
        %576 = vmatpush1.msra.mxu0 0.0
        %577 = vmatprep.subr.mxu0 0.0
        %578 = vmatpush1.msra.mxu0 0.0
        %579 = vmatprep.subr.mxu0 0.0
        %580 = vmatpush1.msra.mxu0 0.0
        %581 = vmatprep.subr.mxu0 0.0
        %582 = vmatpush1.msra.mxu0 0.0
        %583 = vmatprep.subr.mxu0 0.0
        %584 = vmatpush1.msra.mxu0 0.0
        %585 = vmatprep.subr.mxu0 0.0
        %586 = vmatpush1.msra.mxu0 0.0
        %587 = vmatprep.subr.mxu0 0.0
        %588 = vmatpush1.msra.mxu0 0.0
        %589 = vmatprep.subr.mxu0 0.0
        %590 = vmatpush1.msra.mxu0 0.0
        %591 = vmatprep.mubr.f32.mxu0 0.0
        %592 = vmatmul.mubr.f32.gmra.mrb[0].mxu0 %v446
        %v593 = vpop.f32.mrb[0].mxu0
        %v594 = vadd.f32 0.0, %v593
        %v595 = vpop.f32.mrb[0].mxu0
        %596 = vdwg.mxu0
        %s597 = scalar_lea.vmem %s5, 128
        %v598 = vld [vmem:[%s597] sm:$0xff]
        %v599 = vld [vmem:[%s597 + $0x8] sm:$0xff]
        %v600 = vld [vmem:[%s597 + $0x10] sm:$0xff]
        %v601 = vld [vmem:[%s597 + $0x18] sm:$0xff]
        %v602 = vld [vmem:[%s597 + $0x20] sm:$0xff]
        %v603 = vld [vmem:[%s597 + $0x28] sm:$0xff]
        %v604 = vld [vmem:[%s597 + $0x30] sm:$0xff]
        %v605 = vld [vmem:[%s597 + $0x38] sm:$0xff]
        %606 = vmatprep.subr.mxu0 0.0
        %607 = vmatpush1.msra.mxu0 %v598
        %608 = vmatprep.subr.mxu0 0.0
        %609 = vmatpush1.msra.mxu0 %v599
        %610 = vmatprep.subr.mxu0 0.0
        %611 = vmatpush1.msra.mxu0 %v600
        %612 = vmatprep.subr.mxu0 0.0
        %613 = vmatpush1.msra.mxu0 %v601
        %614 = vmatprep.subr.mxu0 0.0
        %615 = vmatpush1.msra.mxu0 %v602
        %616 = vmatprep.subr.mxu0 0.0
        %617 = vmatpush1.msra.mxu0 %v603
        %618 = vmatprep.subr.mxu0 0.0
        %619 = vmatpush1.msra.mxu0 %v604
        %620 = vmatprep.subr.mxu0 0.0
        %621 = vmatpush1.msra.mxu0 %v605
        %622 = vmatprep.subr.mxu0 0.0
        %623 = vmatpush1.msra.mxu0 0.0
        %624 = vmatprep.subr.mxu0 0.0
        %625 = vmatpush1.msra.mxu0 0.0
        %626 = vmatprep.subr.mxu0 0.0
        %627 = vmatpush1.msra.mxu0 0.0
        %628 = vmatprep.subr.mxu0 0.0
        %629 = vmatpush1.msra.mxu0 0.0
        %630 = vmatprep.subr.mxu0 0.0
        %631 = vmatpush1.msra.mxu0 0.0
        %632 = vmatprep.subr.mxu0 0.0
        %633 = vmatpush1.msra.mxu0 0.0
        %634 = vmatprep.subr.mxu0 0.0
        %635 = vmatpush1.msra.mxu0 0.0
        %636 = vmatprep.subr.mxu0 0.0
        %637 = vmatpush1.msra.mxu0 0.0
        %638 = vmatprep.subr.mxu0 0.0
        %639 = vmatpush1.msra.mxu0 0.0
        %640 = vmatprep.subr.mxu0 0.0
        %641 = vmatpush1.msra.mxu0 0.0
        %642 = vmatprep.subr.mxu0 0.0
        %643 = vmatpush1.msra.mxu0 0.0
        %644 = vmatprep.subr.mxu0 0.0
        %645 = vmatpush1.msra.mxu0 0.0
        %646 = vmatprep.subr.mxu0 0.0
        %647 = vmatpush1.msra.mxu0 0.0
        %648 = vmatprep.subr.mxu0 0.0
        %649 = vmatpush1.msra.mxu0 0.0
        %650 = vmatprep.subr.mxu0 0.0
        %651 = vmatpush1.msra.mxu0 0.0
        %652 = vmatprep.subr.mxu0 0.0
        %653 = vmatpush1.msra.mxu0 0.0
        %654 = vmatprep.subr.mxu0 0.0
        %655 = vmatpush1.msra.mxu0 0.0
        %656 = vmatprep.subr.mxu0 0.0
        %657 = vmatpush1.msra.mxu0 0.0
        %658 = vmatprep.subr.mxu0 0.0
        %659 = vmatpush1.msra.mxu0 0.0
        %660 = vmatprep.subr.mxu0 0.0
        %661 = vmatpush1.msra.mxu0 0.0
        %662 = vmatprep.subr.mxu0 0.0
        %663 = vmatpush1.msra.mxu0 0.0
        %664 = vmatprep.subr.mxu0 0.0
        %665 = vmatpush1.msra.mxu0 0.0
        %666 = vmatprep.subr.mxu0 0.0
        %667 = vmatpush1.msra.mxu0 0.0
        %668 = vmatprep.subr.mxu0 0.0
        %669 = vmatpush1.msra.mxu0 0.0
        %670 = vmatprep.mubr.f32.mxu0 0.0
        %671 = vmatmul.mubr.f32.gmra.mrb[0].mxu0 %v446
        %v672 = vpop.f32.mrb[0].mxu0
        %v673 = vadd.f32 0.0, %v672
        %v674 = vpop.f32.mrb[0].mxu0
        %675 = vdwg.mxu0
        %v676 = vld [vmem:[%s1] sm:$0xff]
        %s677 = scalar_lea.vmem %s1, 8
        %v678 = vld [vmem:[%s677] sm:$0xff]
        %vm679 = vcmask 31744
        %v681 = vsel %vm679, %v678, 0
        %vm683 = vcmask 1043456
        %v685 = vsel %vm683, %v594, 0
        %687 = vmatprep.subr.mxu0 0.0
        %688 = vmatpush1.msra.mxu0 %v685
        %689 = vmatprep.subr.mxu0 0.0
        %690 = vmatpush1.msra.mxu0 0.0
        %691 = vmatprep.subr.mxu0 0.0
        %692 = vmatpush1.msra.mxu0 0.0
        %693 = vmatprep.subr.mxu0 0.0
        %694 = vmatpush1.msra.mxu0 0.0
        %695 = vmatprep.subr.mxu0 0.0
        %696 = vmatpush1.msra.mxu0 0.0
        %697 = vmatprep.subr.mxu0 0.0
        %698 = vmatpush1.msra.mxu0 0.0
        %699 = vmatprep.subr.mxu0 0.0
        %700 = vmatpush1.msra.mxu0 0.0
        %701 = vmatprep.subr.mxu0 0.0
        %702 = vmatpush1.msra.mxu0 0.0
        %703 = vmatprep.subr.mxu0 0.0
        %704 = vmatpush1.msra.mxu0 0.0
        %705 = vmatprep.subr.mxu0 0.0
        %706 = vmatpush1.msra.mxu0 0.0
        %707 = vmatprep.subr.mxu0 0.0
        %708 = vmatpush1.msra.mxu0 0.0
        %709 = vmatprep.subr.mxu0 0.0
        %710 = vmatpush1.msra.mxu0 0.0
        %711 = vmatprep.subr.mxu0 0.0
        %712 = vmatpush1.msra.mxu0 0.0
        %713 = vmatprep.subr.mxu0 0.0
        %714 = vmatpush1.msra.mxu0 0.0
        %715 = vmatprep.subr.mxu0 0.0
        %716 = vmatpush1.msra.mxu0 0.0
        %717 = vmatprep.subr.mxu0 0.0
        %718 = vmatpush1.msra.mxu0 0.0
        %719 = vmatprep.subr.mxu0 0.0
        %720 = vmatpush1.msra.mxu0 0.0
        %721 = vmatprep.subr.mxu0 0.0
        %722 = vmatpush1.msra.mxu0 0.0
        %723 = vmatprep.subr.mxu0 0.0
        %724 = vmatpush1.msra.mxu0 0.0
        %725 = vmatprep.subr.mxu0 0.0
        %726 = vmatpush1.msra.mxu0 0.0
        %727 = vmatprep.subr.mxu0 0.0
        %728 = vmatpush1.msra.mxu0 0.0
        %729 = vmatprep.subr.mxu0 0.0
        %730 = vmatpush1.msra.mxu0 0.0
        %731 = vmatprep.subr.mxu0 0.0
        %732 = vmatpush1.msra.mxu0 0.0
        %733 = vmatprep.subr.mxu0 0.0
        %734 = vmatpush1.msra.mxu0 0.0
        %735 = vmatprep.subr.mxu0 0.0
        %736 = vmatpush1.msra.mxu0 0.0
        %737 = vmatprep.subr.mxu0 0.0
        %738 = vmatpush1.msra.mxu0 0.0
        %739 = vmatprep.subr.mxu0 0.0
        %740 = vmatpush1.msra.mxu0 0.0
        %741 = vmatprep.subr.mxu0 0.0
        %742 = vmatpush1.msra.mxu0 0.0
        %743 = vmatprep.subr.mxu0 0.0
        %744 = vmatpush1.msra.mxu0 0.0
        %745 = vmatprep.subr.mxu0 0.0
        %746 = vmatpush1.msra.mxu0 0.0
        %747 = vmatprep.subr.mxu0 0.0
        %748 = vmatpush1.msra.mxu0 0.0
        %749 = vmatprep.subr.mxu0 0.0
        %750 = vmatpush1.msra.mxu0 0.0
        %751 = vmatprep.mubr.f32.mxu0 0.0
        %752 = vmatmul.mubr.f32.gmra.mrb[0].mxu0 %v681
        %v753 = vpop.f32.mrb[0].mxu0
        %v754 = vadd.f32 0.0, %v753
        %v755 = vpop.f32.mrb[0].mxu0
        %756 = vdwg.mxu0
        %v758 = vsel %vm679, %v676, 0
        %v761 = vsel %vm683, %v515, 0
        %763 = vmatprep.subr.mxu0 0.0
        %764 = vmatpush1.msra.mxu0 %v761
        %765 = vmatprep.subr.mxu0 0.0
        %766 = vmatpush1.msra.mxu0 0.0
        %767 = vmatprep.subr.mxu0 0.0
        %768 = vmatpush1.msra.mxu0 0.0
        %769 = vmatprep.subr.mxu0 0.0
        %770 = vmatpush1.msra.mxu0 0.0
        %771 = vmatprep.subr.mxu0 0.0
        %772 = vmatpush1.msra.mxu0 0.0
        %773 = vmatprep.subr.mxu0 0.0
        %774 = vmatpush1.msra.mxu0 0.0
        %775 = vmatprep.subr.mxu0 0.0
        %776 = vmatpush1.msra.mxu0 0.0
        %777 = vmatprep.subr.mxu0 0.0
        %778 = vmatpush1.msra.mxu0 0.0
        %779 = vmatprep.subr.mxu0 0.0
        %780 = vmatpush1.msra.mxu0 0.0
        %781 = vmatprep.subr.mxu0 0.0
        %782 = vmatpush1.msra.mxu0 0.0
        %783 = vmatprep.subr.mxu0 0.0
        %784 = vmatpush1.msra.mxu0 0.0
        %785 = vmatprep.subr.mxu0 0.0
        %786 = vmatpush1.msra.mxu0 0.0
        %787 = vmatprep.subr.mxu0 0.0
        %788 = vmatpush1.msra.mxu0 0.0
        %789 = vmatprep.subr.mxu0 0.0
        %790 = vmatpush1.msra.mxu0 0.0
        %791 = vmatprep.subr.mxu0 0.0
        %792 = vmatpush1.msra.mxu0 0.0
        %793 = vmatprep.subr.mxu0 0.0
        %794 = vmatpush1.msra.mxu0 0.0
        %795 = vmatprep.subr.mxu0 0.0
        %796 = vmatpush1.msra.mxu0 0.0
        %797 = vmatprep.subr.mxu0 0.0
        %798 = vmatpush1.msra.mxu0 0.0
        %799 = vmatprep.subr.mxu0 0.0
        %800 = vmatpush1.msra.mxu0 0.0
        %801 = vmatprep.subr.mxu0 0.0
        %802 = vmatpush1.msra.mxu0 0.0
        %803 = vmatprep.subr.mxu0 0.0
        %804 = vmatpush1.msra.mxu0 0.0
        %805 = vmatprep.subr.mxu0 0.0
        %806 = vmatpush1.msra.mxu0 0.0
        %807 = vmatprep.subr.mxu0 0.0
        %808 = vmatpush1.msra.mxu0 0.0
        %809 = vmatprep.subr.mxu0 0.0
        %810 = vmatpush1.msra.mxu0 0.0
        %811 = vmatprep.subr.mxu0 0.0
        %812 = vmatpush1.msra.mxu0 0.0
        %813 = vmatprep.subr.mxu0 0.0
        %814 = vmatpush1.msra.mxu0 0.0
        %815 = vmatprep.subr.mxu0 0.0
        %816 = vmatpush1.msra.mxu0 0.0
        %817 = vmatprep.subr.mxu0 0.0
        %818 = vmatpush1.msra.mxu0 0.0
        %819 = vmatprep.subr.mxu0 0.0
        %820 = vmatpush1.msra.mxu0 0.0
        %821 = vmatprep.subr.mxu0 0.0
        %822 = vmatpush1.msra.mxu0 0.0
        %823 = vmatprep.subr.mxu0 0.0
        %824 = vmatpush1.msra.mxu0 0.0
        %825 = vmatprep.subr.mxu0 0.0
        %826 = vmatpush1.msra.mxu0 0.0
        %827 = vmatprep.mubr.f32.mxu0 0.0
        %828 = vmatmul.mubr.f32.gmra.mrb[0].mxu0 %v758
        %v829 = vpop.f32.mrb[0].mxu0
        %v830 = vadd.f32 %v754, %v829
        %v831 = vpop.f32.mrb[0].mxu0
        %832 = vdwg.mxu0
        %s833 = scalar_lea.vmem %s1, 16
        %v834 = vld [vmem:[%s833] sm:$0xff]
        %v836 = vsel %vm679, %v834, 0
        %v839 = vsel %vm683, %v673, 0
        %841 = vmatprep.subr.mxu0 0.0
        %842 = vmatpush1.msra.mxu0 %v839
        %843 = vmatprep.subr.mxu0 0.0
        %844 = vmatpush1.msra.mxu0 0.0
        %845 = vmatprep.subr.mxu0 0.0
        %846 = vmatpush1.msra.mxu0 0.0
        %847 = vmatprep.subr.mxu0 0.0
        %848 = vmatpush1.msra.mxu0 0.0
        %849 = vmatprep.subr.mxu0 0.0
        %850 = vmatpush1.msra.mxu0 0.0
        %851 = vmatprep.subr.mxu0 0.0
        %852 = vmatpush1.msra.mxu0 0.0
        %853 = vmatprep.subr.mxu0 0.0
        %854 = vmatpush1.msra.mxu0 0.0
        %855 = vmatprep.subr.mxu0 0.0
        %856 = vmatpush1.msra.mxu0 0.0
        %857 = vmatprep.subr.mxu0 0.0
        %858 = vmatpush1.msra.mxu0 0.0
        %859 = vmatprep.subr.mxu0 0.0
        %860 = vmatpush1.msra.mxu0 0.0
        %861 = vmatprep.subr.mxu0 0.0
        %862 = vmatpush1.msra.mxu0 0.0
        %863 = vmatprep.subr.mxu0 0.0
        %864 = vmatpush1.msra.mxu0 0.0
        %865 = vmatprep.subr.mxu0 0.0
        %866 = vmatpush1.msra.mxu0 0.0
        %867 = vmatprep.subr.mxu0 0.0
        %868 = vmatpush1.msra.mxu0 0.0
        %869 = vmatprep.subr.mxu0 0.0
        %870 = vmatpush1.msra.mxu0 0.0
        %871 = vmatprep.subr.mxu0 0.0
        %872 = vmatpush1.msra.mxu0 0.0
        %873 = vmatprep.subr.mxu0 0.0
        %874 = vmatpush1.msra.mxu0 0.0
        %875 = vmatprep.subr.mxu0 0.0
        %876 = vmatpush1.msra.mxu0 0.0
        %877 = vmatprep.subr.mxu0 0.0
        %878 = vmatpush1.msra.mxu0 0.0
        %879 = vmatprep.subr.mxu0 0.0
        %880 = vmatpush1.msra.mxu0 0.0
        %881 = vmatprep.subr.mxu0 0.0
        %882 = vmatpush1.msra.mxu0 0.0
        %883 = vmatprep.subr.mxu0 0.0
        %884 = vmatpush1.msra.mxu0 0.0
        %885 = vmatprep.subr.mxu0 0.0
        %886 = vmatpush1.msra.mxu0 0.0
        %887 = vmatprep.subr.mxu0 0.0
        %888 = vmatpush1.msra.mxu0 0.0
        %889 = vmatprep.subr.mxu0 0.0
        %890 = vmatpush1.msra.mxu0 0.0
        %891 = vmatprep.subr.mxu0 0.0
        %892 = vmatpush1.msra.mxu0 0.0
        %893 = vmatprep.subr.mxu0 0.0
        %894 = vmatpush1.msra.mxu0 0.0
        %895 = vmatprep.subr.mxu0 0.0
        %896 = vmatpush1.msra.mxu0 0.0
        %897 = vmatprep.subr.mxu0 0.0
        %898 = vmatpush1.msra.mxu0 0.0
        %899 = vmatprep.subr.mxu0 0.0
        %900 = vmatpush1.msra.mxu0 0.0
        %901 = vmatprep.subr.mxu0 0.0
        %902 = vmatpush1.msra.mxu0 0.0
        %903 = vmatprep.subr.mxu0 0.0
        %904 = vmatpush1.msra.mxu0 0.0
        %905 = vmatprep.mubr.f32.mxu0 0.0
        %906 = vmatmul.mubr.f32.gmra.mrb[0].mxu0 %v836
        %v907 = vpop.f32.mrb[0].mxu0
        %v908 = vadd.f32 0.0, %v907
        %v909 = vpop.f32.mrb[0].mxu0
        %910 = vdwg.mxu0
        %v911 = vadd.f32 %v830, %v908
        %v912 = vld [vmem:[%s4] sm:$0xff]
        %914 = vset.pattern.permute.xlu0 0
        %915 = vperm.xlu0 %914, %v912
        %v916 = vpop.permute.xlu0 %915
        %v918 = vmul.f32 %v911, %v916
        %s919 = scalar_lea.vmem %s4, 8
        %v920 = vld [vmem:[%s919] sm:$0xff]
        %922 = vset.pattern.permute.xlu0 0
        %923 = vperm.xlu0 %922, %v920
        %v924 = vpop.permute.xlu0 %923
        %v926 = vadd.f32 %v918, %v924
        %v927 = vmax.f32 %v926, 0.0
        %v928 = vld [vmem:[%s2] sm:$0xff]
        %s929 = scalar_lea.vmem %s2, 8
        %v930 = vld [vmem:[%s929] sm:$0xff]
        %v932 = vsel %vm679, %v930, 0
        %934 = vmatprep.subr.mxu0 0.0
        %935 = vmatpush1.msra.mxu0 %v685
        %936 = vmatprep.subr.mxu0 0.0
        %937 = vmatpush1.msra.mxu0 0.0
        %938 = vmatprep.subr.mxu0 0.0
        %939 = vmatpush1.msra.mxu0 0.0
        %940 = vmatprep.subr.mxu0 0.0
        %941 = vmatpush1.msra.mxu0 0.0
        %942 = vmatprep.subr.mxu0 0.0
        %943 = vmatpush1.msra.mxu0 0.0
        %944 = vmatprep.subr.mxu0 0.0
        %945 = vmatpush1.msra.mxu0 0.0
        %946 = vmatprep.subr.mxu0 0.0
        %947 = vmatpush1.msra.mxu0 0.0
        %948 = vmatprep.subr.mxu0 0.0
        %949 = vmatpush1.msra.mxu0 0.0
        %950 = vmatprep.subr.mxu0 0.0
        %951 = vmatpush1.msra.mxu0 0.0
        %952 = vmatprep.subr.mxu0 0.0
        %953 = vmatpush1.msra.mxu0 0.0
        %954 = vmatprep.subr.mxu0 0.0
        %955 = vmatpush1.msra.mxu0 0.0
        %956 = vmatprep.subr.mxu0 0.0
        %957 = vmatpush1.msra.mxu0 0.0
        %958 = vmatprep.subr.mxu0 0.0
        %959 = vmatpush1.msra.mxu0 0.0
        %960 = vmatprep.subr.mxu0 0.0
        %961 = vmatpush1.msra.mxu0 0.0
        %962 = vmatprep.subr.mxu0 0.0
        %963 = vmatpush1.msra.mxu0 0.0
        %964 = vmatprep.subr.mxu0 0.0
        %965 = vmatpush1.msra.mxu0 0.0
        %966 = vmatprep.subr.mxu0 0.0
        %967 = vmatpush1.msra.mxu0 0.0
        %968 = vmatprep.subr.mxu0 0.0
        %969 = vmatpush1.msra.mxu0 0.0
        %970 = vmatprep.subr.mxu0 0.0
        %971 = vmatpush1.msra.mxu0 0.0
        %972 = vmatprep.subr.mxu0 0.0
        %973 = vmatpush1.msra.mxu0 0.0
        %974 = vmatprep.subr.mxu0 0.0
        %975 = vmatpush1.msra.mxu0 0.0
        %976 = vmatprep.subr.mxu0 0.0
        %977 = vmatpush1.msra.mxu0 0.0
        %978 = vmatprep.subr.mxu0 0.0
        %979 = vmatpush1.msra.mxu0 0.0
        %980 = vmatprep.subr.mxu0 0.0
        %981 = vmatpush1.msra.mxu0 0.0
        %982 = vmatprep.subr.mxu0 0.0
        %983 = vmatpush1.msra.mxu0 0.0
        %984 = vmatprep.subr.mxu0 0.0
        %985 = vmatpush1.msra.mxu0 0.0
        %986 = vmatprep.subr.mxu0 0.0
        %987 = vmatpush1.msra.mxu0 0.0
        %988 = vmatprep.subr.mxu0 0.0
        %989 = vmatpush1.msra.mxu0 0.0
        %990 = vmatprep.subr.mxu0 0.0
        %991 = vmatpush1.msra.mxu0 0.0
        %992 = vmatprep.subr.mxu0 0.0
        %993 = vmatpush1.msra.mxu0 0.0
        %994 = vmatprep.subr.mxu0 0.0
        %995 = vmatpush1.msra.mxu0 0.0
        %996 = vmatprep.subr.mxu0 0.0
        %997 = vmatpush1.msra.mxu0 0.0
        %998 = vmatprep.mubr.f32.mxu0 0.0
        %999 = vmatmul.mubr.f32.gmra.mrb[0].mxu0 %v932
        %v1000 = vpop.f32.mrb[0].mxu0
        %v1001 = vadd.f32 0.0, %v1000
        %v1002 = vpop.f32.mrb[0].mxu0
        %1003 = vdwg.mxu0
        %v1005 = vsel %vm679, %v928, 0
        %1007 = vmatprep.subr.mxu0 0.0
        %1008 = vmatpush1.msra.mxu0 %v761
        %1009 = vmatprep.subr.mxu0 0.0
        %1010 = vmatpush1.msra.mxu0 0.0
        %1011 = vmatprep.subr.mxu0 0.0
        %1012 = vmatpush1.msra.mxu0 0.0
        %1013 = vmatprep.subr.mxu0 0.0
        %1014 = vmatpush1.msra.mxu0 0.0
        %1015 = vmatprep.subr.mxu0 0.0
        %1016 = vmatpush1.msra.mxu0 0.0
        %1017 = vmatprep.subr.mxu0 0.0
        %1018 = vmatpush1.msra.mxu0 0.0
        %1019 = vmatprep.subr.mxu0 0.0
        %1020 = vmatpush1.msra.mxu0 0.0
        %1021 = vmatprep.subr.mxu0 0.0
        %1022 = vmatpush1.msra.mxu0 0.0
        %1023 = vmatprep.subr.mxu0 0.0
        %1024 = vmatpush1.msra.mxu0 0.0
        %1025 = vmatprep.subr.mxu0 0.0
        %1026 = vmatpush1.msra.mxu0 0.0
        %1027 = vmatprep.subr.mxu0 0.0
        %1028 = vmatpush1.msra.mxu0 0.0
        %1029 = vmatprep.subr.mxu0 0.0
        %1030 = vmatpush1.msra.mxu0 0.0
        %1031 = vmatprep.subr.mxu0 0.0
        %1032 = vmatpush1.msra.mxu0 0.0
        %1033 = vmatprep.subr.mxu0 0.0
        %1034 = vmatpush1.msra.mxu0 0.0
        %1035 = vmatprep.subr.mxu0 0.0
        %1036 = vmatpush1.msra.mxu0 0.0
        %1037 = vmatprep.subr.mxu0 0.0
        %1038 = vmatpush1.msra.mxu0 0.0
        %1039 = vmatprep.subr.mxu0 0.0
        %1040 = vmatpush1.msra.mxu0 0.0
        %1041 = vmatprep.subr.mxu0 0.0
        %1042 = vmatpush1.msra.mxu0 0.0
        %1043 = vmatprep.subr.mxu0 0.0
        %1044 = vmatpush1.msra.mxu0 0.0
        %1045 = vmatprep.subr.mxu0 0.0
        %1046 = vmatpush1.msra.mxu0 0.0
        %1047 = vmatprep.subr.mxu0 0.0
        %1048 = vmatpush1.msra.mxu0 0.0
        %1049 = vmatprep.subr.mxu0 0.0
        %1050 = vmatpush1.msra.mxu0 0.0
        %1051 = vmatprep.subr.mxu0 0.0
        %1052 = vmatpush1.msra.mxu0 0.0
        %1053 = vmatprep.subr.mxu0 0.0
        %1054 = vmatpush1.msra.mxu0 0.0
        %1055 = vmatprep.subr.mxu0 0.0
        %1056 = vmatpush1.msra.mxu0 0.0
        %1057 = vmatprep.subr.mxu0 0.0
        %1058 = vmatpush1.msra.mxu0 0.0
        %1059 = vmatprep.subr.mxu0 0.0
        %1060 = vmatpush1.msra.mxu0 0.0
        %1061 = vmatprep.subr.mxu0 0.0
        %1062 = vmatpush1.msra.mxu0 0.0
        %1063 = vmatprep.subr.mxu0 0.0
        %1064 = vmatpush1.msra.mxu0 0.0
        %1065 = vmatprep.subr.mxu0 0.0
        %1066 = vmatpush1.msra.mxu0 0.0
        %1067 = vmatprep.subr.mxu0 0.0
        %1068 = vmatpush1.msra.mxu0 0.0
        %1069 = vmatprep.subr.mxu0 0.0
        %1070 = vmatpush1.msra.mxu0 0.0
        %1071 = vmatprep.mubr.f32.mxu0 0.0
        %1072 = vmatmul.mubr.f32.gmra.mrb[0].mxu0 %v1005
        %v1073 = vpop.f32.mrb[0].mxu0
        %v1074 = vadd.f32 %v1001, %v1073
        %v1075 = vpop.f32.mrb[0].mxu0
        %1076 = vdwg.mxu0
        %s1077 = scalar_lea.vmem %s2, 16
        %v1078 = vld [vmem:[%s1077] sm:$0xff]
        %v1080 = vsel %vm679, %v1078, 0
        %1082 = vmatprep.subr.mxu0 0.0
        %1083 = vmatpush1.msra.mxu0 %v839
        %1084 = vmatprep.subr.mxu0 0.0
        %1085 = vmatpush1.msra.mxu0 0.0
        %1086 = vmatprep.subr.mxu0 0.0
        %1087 = vmatpush1.msra.mxu0 0.0
        %1088 = vmatprep.subr.mxu0 0.0
        %1089 = vmatpush1.msra.mxu0 0.0
        %1090 = vmatprep.subr.mxu0 0.0
        %1091 = vmatpush1.msra.mxu0 0.0
        %1092 = vmatprep.subr.mxu0 0.0
        %1093 = vmatpush1.msra.mxu0 0.0
        %1094 = vmatprep.subr.mxu0 0.0
        %1095 = vmatpush1.msra.mxu0 0.0
        %1096 = vmatprep.subr.mxu0 0.0
        %1097 = vmatpush1.msra.mxu0 0.0
        %1098 = vmatprep.subr.mxu0 0.0
        %1099 = vmatpush1.msra.mxu0 0.0
        %1100 = vmatprep.subr.mxu0 0.0
        %1101 = vmatpush1.msra.mxu0 0.0
        %1102 = vmatprep.subr.mxu0 0.0
        %1103 = vmatpush1.msra.mxu0 0.0
        %1104 = vmatprep.subr.mxu0 0.0
        %1105 = vmatpush1.msra.mxu0 0.0
        %1106 = vmatprep.subr.mxu0 0.0
        %1107 = vmatpush1.msra.mxu0 0.0
        %1108 = vmatprep.subr.mxu0 0.0
        %1109 = vmatpush1.msra.mxu0 0.0
        %1110 = vmatprep.subr.mxu0 0.0
        %1111 = vmatpush1.msra.mxu0 0.0
        %1112 = vmatprep.subr.mxu0 0.0
        %1113 = vmatpush1.msra.mxu0 0.0
        %1114 = vmatprep.subr.mxu0 0.0
        %1115 = vmatpush1.msra.mxu0 0.0
        %1116 = vmatprep.subr.mxu0 0.0
        %1117 = vmatpush1.msra.mxu0 0.0
        %1118 = vmatprep.subr.mxu0 0.0
        %1119 = vmatpush1.msra.mxu0 0.0
        %1120 = vmatprep.subr.mxu0 0.0
        %1121 = vmatpush1.msra.mxu0 0.0
        %1122 = vmatprep.subr.mxu0 0.0
        %1123 = vmatpush1.msra.mxu0 0.0
        %1124 = vmatprep.subr.mxu0 0.0
        %1125 = vmatpush1.msra.mxu0 0.0
        %1126 = vmatprep.subr.mxu0 0.0
        %1127 = vmatpush1.msra.mxu0 0.0
        %1128 = vmatprep.subr.mxu0 0.0
        %1129 = vmatpush1.msra.mxu0 0.0
        %1130 = vmatprep.subr.mxu0 0.0
        %1131 = vmatpush1.msra.mxu0 0.0
        %1132 = vmatprep.subr.mxu0 0.0
        %1133 = vmatpush1.msra.mxu0 0.0
        %1134 = vmatprep.subr.mxu0 0.0
        %1135 = vmatpush1.msra.mxu0 0.0
        %1136 = vmatprep.subr.mxu0 0.0
        %1137 = vmatpush1.msra.mxu0 0.0
        %1138 = vmatprep.subr.mxu0 0.0
        %1139 = vmatpush1.msra.mxu0 0.0
        %1140 = vmatprep.subr.mxu0 0.0
        %1141 = vmatpush1.msra.mxu0 0.0
        %1142 = vmatprep.subr.mxu0 0.0
        %1143 = vmatpush1.msra.mxu0 0.0
        %1144 = vmatprep.subr.mxu0 0.0
        %1145 = vmatpush1.msra.mxu0 0.0
        %1146 = vmatprep.mubr.f32.mxu0 0.0
        %1147 = vmatmul.mubr.f32.gmra.mrb[0].mxu0 %v1080
        %v1148 = vpop.f32.mrb[0].mxu0
        %v1149 = vadd.f32 0.0, %v1148
        %v1150 = vpop.f32.mrb[0].mxu0
        %1151 = vdwg.mxu0
        %v1152 = vadd.f32 %v1074, %v1149
        %s1153 = scalar_lea.vmem %s4, 16
        %v1154 = vld [vmem:[%s1153] sm:$0xff]
        %1156 = vset.pattern.permute.xlu0 0
        %1157 = vperm.xlu0 %1156, %v1154
        %v1158 = vpop.permute.xlu0 %1157
        %v1160 = vmul.f32 %v1152, %v1158
        %s1161 = scalar_lea.vmem %s4, 24
        %v1162 = vld [vmem:[%s1161] sm:$0xff]
        %1164 = vset.pattern.permute.xlu0 0
        %1165 = vperm.xlu0 %1164, %v1162
        %v1166 = vpop.permute.xlu0 %1165
        %v1168 = vadd.f32 %v1160, %v1166
        %v1169 = vld [vmem:[%s6] sm:$0xff]
        %v1170 = vld [vmem:[%s6 + $0x8] sm:$0xff]
        %v1171 = vld [vmem:[%s6 + $0x10] sm:$0xff]
        %v1172 = vld [vmem:[%s6 + $0x18] sm:$0xff]
        %vm1173 = vcmask 261120
        %v1175 = vsel %vm1173, %v927, 0
        %1177 = vmatprep.subr.mxu0 0.0
        %1178 = vmatpush1.msra.mxu0 %v1169
        %1179 = vmatprep.subr.mxu0 0.0
        %1180 = vmatpush1.msra.mxu0 %v1170
        %1181 = vmatprep.subr.mxu0 0.0
        %1182 = vmatpush1.msra.mxu0 %v1171
        %1183 = vmatprep.subr.mxu0 0.0
        %1184 = vmatpush1.msra.mxu0 %v1172
        %1185 = vmatprep.subr.mxu0 0.0
        %1186 = vmatpush1.msra.mxu0 0.0
        %1187 = vmatprep.subr.mxu0 0.0
        %1188 = vmatpush1.msra.mxu0 0.0
        %1189 = vmatprep.subr.mxu0 0.0
        %1190 = vmatpush1.msra.mxu0 0.0
        %1191 = vmatprep.subr.mxu0 0.0
        %1192 = vmatpush1.msra.mxu0 0.0
        %1193 = vmatprep.subr.mxu0 0.0
        %1194 = vmatpush1.msra.mxu0 0.0
        %1195 = vmatprep.subr.mxu0 0.0
        %1196 = vmatpush1.msra.mxu0 0.0
        %1197 = vmatprep.subr.mxu0 0.0
        %1198 = vmatpush1.msra.mxu0 0.0
        %1199 = vmatprep.subr.mxu0 0.0
        %1200 = vmatpush1.msra.mxu0 0.0
        %1201 = vmatprep.subr.mxu0 0.0
        %1202 = vmatpush1.msra.mxu0 0.0
        %1203 = vmatprep.subr.mxu0 0.0
        %1204 = vmatpush1.msra.mxu0 0.0
        %1205 = vmatprep.subr.mxu0 0.0
        %1206 = vmatpush1.msra.mxu0 0.0
        %1207 = vmatprep.subr.mxu0 0.0
        %1208 = vmatpush1.msra.mxu0 0.0
        %1209 = vmatprep.subr.mxu0 0.0
        %1210 = vmatpush1.msra.mxu0 0.0
        %1211 = vmatprep.subr.mxu0 0.0
        %1212 = vmatpush1.msra.mxu0 0.0
        %1213 = vmatprep.subr.mxu0 0.0
        %1214 = vmatpush1.msra.mxu0 0.0
        %1215 = vmatprep.subr.mxu0 0.0
        %1216 = vmatpush1.msra.mxu0 0.0
        %1217 = vmatprep.subr.mxu0 0.0
        %1218 = vmatpush1.msra.mxu0 0.0
        %1219 = vmatprep.subr.mxu0 0.0
        %1220 = vmatpush1.msra.mxu0 0.0
        %1221 = vmatprep.subr.mxu0 0.0
        %1222 = vmatpush1.msra.mxu0 0.0
        %1223 = vmatprep.subr.mxu0 0.0
        %1224 = vmatpush1.msra.mxu0 0.0
        %1225 = vmatprep.subr.mxu0 0.0
        %1226 = vmatpush1.msra.mxu0 0.0
        %1227 = vmatprep.subr.mxu0 0.0
        %1228 = vmatpush1.msra.mxu0 0.0
        %1229 = vmatprep.subr.mxu0 0.0
        %1230 = vmatpush1.msra.mxu0 0.0
        %1231 = vmatprep.subr.mxu0 0.0
        %1232 = vmatpush1.msra.mxu0 0.0
        %1233 = vmatprep.subr.mxu0 0.0
        %1234 = vmatpush1.msra.mxu0 0.0
        %1235 = vmatprep.subr.mxu0 0.0
        %1236 = vmatpush1.msra.mxu0 0.0
        %1237 = vmatprep.subr.mxu0 0.0
        %1238 = vmatpush1.msra.mxu0 0.0
        %1239 = vmatprep.subr.mxu0 0.0
        %1240 = vmatpush1.msra.mxu0 0.0
        %1241 = vmatprep.mubr.f32.mxu0 0.0
        %1242 = vmatmul.mubr.f32.gmra.mrb[0].mxu0 %v1175
        %v1243 = vpop.f32.mrb[0].mxu0
        %v1244 = vadd.f32 0.0, %v1243
        %v1245 = vpop.f32.mrb[0].mxu0
        %1246 = vdwg.mxu0
        %s1247 = scalar_lea.vmem %s6, 32
        %v1248 = vld [vmem:[%s1247] sm:$0xff]
        %v1249 = vld [vmem:[%s1247 + $0x8] sm:$0xff]
        %v1250 = vld [vmem:[%s1247 + $0x10] sm:$0xff]
        %v1251 = vld [vmem:[%s1247 + $0x18] sm:$0xff]
        %1252 = vmatprep.subr.mxu0 0.0
        %1253 = vmatpush1.msra.mxu0 %v1248
        %1254 = vmatprep.subr.mxu0 0.0
        %1255 = vmatpush1.msra.mxu0 %v1249
        %1256 = vmatprep.subr.mxu0 0.0
        %1257 = vmatpush1.msra.mxu0 %v1250
        %1258 = vmatprep.subr.mxu0 0.0
        %1259 = vmatpush1.msra.mxu0 %v1251
        %1260 = vmatprep.subr.mxu0 0.0
        %1261 = vmatpush1.msra.mxu0 0.0
        %1262 = vmatprep.subr.mxu0 0.0
        %1263 = vmatpush1.msra.mxu0 0.0
        %1264 = vmatprep.subr.mxu0 0.0
        %1265 = vmatpush1.msra.mxu0 0.0
        %1266 = vmatprep.subr.mxu0 0.0
        %1267 = vmatpush1.msra.mxu0 0.0
        %1268 = vmatprep.subr.mxu0 0.0
        %1269 = vmatpush1.msra.mxu0 0.0
        %1270 = vmatprep.subr.mxu0 0.0
        %1271 = vmatpush1.msra.mxu0 0.0
        %1272 = vmatprep.subr.mxu0 0.0
        %1273 = vmatpush1.msra.mxu0 0.0
        %1274 = vmatprep.subr.mxu0 0.0
        %1275 = vmatpush1.msra.mxu0 0.0
        %1276 = vmatprep.subr.mxu0 0.0
        %1277 = vmatpush1.msra.mxu0 0.0
        %1278 = vmatprep.subr.mxu0 0.0
        %1279 = vmatpush1.msra.mxu0 0.0
        %1280 = vmatprep.subr.mxu0 0.0
        %1281 = vmatpush1.msra.mxu0 0.0
        %1282 = vmatprep.subr.mxu0 0.0
        %1283 = vmatpush1.msra.mxu0 0.0
        %1284 = vmatprep.subr.mxu0 0.0
        %1285 = vmatpush1.msra.mxu0 0.0
        %1286 = vmatprep.subr.mxu0 0.0
        %1287 = vmatpush1.msra.mxu0 0.0
        %1288 = vmatprep.subr.mxu0 0.0
        %1289 = vmatpush1.msra.mxu0 0.0
        %1290 = vmatprep.subr.mxu0 0.0
        %1291 = vmatpush1.msra.mxu0 0.0
        %1292 = vmatprep.subr.mxu0 0.0
        %1293 = vmatpush1.msra.mxu0 0.0
        %1294 = vmatprep.subr.mxu0 0.0
        %1295 = vmatpush1.msra.mxu0 0.0
        %1296 = vmatprep.subr.mxu0 0.0
        %1297 = vmatpush1.msra.mxu0 0.0
        %1298 = vmatprep.subr.mxu0 0.0
        %1299 = vmatpush1.msra.mxu0 0.0
        %1300 = vmatprep.subr.mxu0 0.0
        %1301 = vmatpush1.msra.mxu0 0.0
        %1302 = vmatprep.subr.mxu0 0.0
        %1303 = vmatpush1.msra.mxu0 0.0
        %1304 = vmatprep.subr.mxu0 0.0
        %1305 = vmatpush1.msra.mxu0 0.0
        %1306 = vmatprep.subr.mxu0 0.0
        %1307 = vmatpush1.msra.mxu0 0.0
        %1308 = vmatprep.subr.mxu0 0.0
        %1309 = vmatpush1.msra.mxu0 0.0
        %1310 = vmatprep.subr.mxu0 0.0
        %1311 = vmatpush1.msra.mxu0 0.0
        %1312 = vmatprep.subr.mxu0 0.0
        %1313 = vmatpush1.msra.mxu0 0.0
        %1314 = vmatprep.subr.mxu0 0.0
        %1315 = vmatpush1.msra.mxu0 0.0
        %1316 = vmatprep.mubr.f32.mxu0 0.0
        %1317 = vmatmul.mubr.f32.gmra.mrb[0].mxu0 %v1175
        %v1318 = vpop.f32.mrb[0].mxu0
        %v1319 = vadd.f32 0.0, %v1318
        %v1320 = vpop.f32.mrb[0].mxu0
        %1321 = vdwg.mxu0
        %s1322 = scalar_lea.vmem %s6, 64
        %v1323 = vld [vmem:[%s1322] sm:$0xff]
        %v1324 = vld [vmem:[%s1322 + $0x8] sm:$0xff]
        %v1325 = vld [vmem:[%s1322 + $0x10] sm:$0xff]
        %v1326 = vld [vmem:[%s1322 + $0x18] sm:$0xff]
        %1327 = vmatprep.subr.mxu0 0.0
        %1328 = vmatpush1.msra.mxu0 %v1323
        %1329 = vmatprep.subr.mxu0 0.0
        %1330 = vmatpush1.msra.mxu0 %v1324
        %1331 = vmatprep.subr.mxu0 0.0
        %1332 = vmatpush1.msra.mxu0 %v1325
        %1333 = vmatprep.subr.mxu0 0.0
        %1334 = vmatpush1.msra.mxu0 %v1326
        %1335 = vmatprep.subr.mxu0 0.0
        %1336 = vmatpush1.msra.mxu0 0.0
        %1337 = vmatprep.subr.mxu0 0.0
        %1338 = vmatpush1.msra.mxu0 0.0
        %1339 = vmatprep.subr.mxu0 0.0
        %1340 = vmatpush1.msra.mxu0 0.0
        %1341 = vmatprep.subr.mxu0 0.0
        %1342 = vmatpush1.msra.mxu0 0.0
        %1343 = vmatprep.subr.mxu0 0.0
        %1344 = vmatpush1.msra.mxu0 0.0
        %1345 = vmatprep.subr.mxu0 0.0
        %1346 = vmatpush1.msra.mxu0 0.0
        %1347 = vmatprep.subr.mxu0 0.0
        %1348 = vmatpush1.msra.mxu0 0.0
        %1349 = vmatprep.subr.mxu0 0.0
        %1350 = vmatpush1.msra.mxu0 0.0
        %1351 = vmatprep.subr.mxu0 0.0
        %1352 = vmatpush1.msra.mxu0 0.0
        %1353 = vmatprep.subr.mxu0 0.0
        %1354 = vmatpush1.msra.mxu0 0.0
        %1355 = vmatprep.subr.mxu0 0.0
        %1356 = vmatpush1.msra.mxu0 0.0
        %1357 = vmatprep.subr.mxu0 0.0
        %1358 = vmatpush1.msra.mxu0 0.0
        %1359 = vmatprep.subr.mxu0 0.0
        %1360 = vmatpush1.msra.mxu0 0.0
        %1361 = vmatprep.subr.mxu0 0.0
        %1362 = vmatpush1.msra.mxu0 0.0
        %1363 = vmatprep.subr.mxu0 0.0
        %1364 = vmatpush1.msra.mxu0 0.0
        %1365 = vmatprep.subr.mxu0 0.0
        %1366 = vmatpush1.msra.mxu0 0.0
        %1367 = vmatprep.subr.mxu0 0.0
        %1368 = vmatpush1.msra.mxu0 0.0
        %1369 = vmatprep.subr.mxu0 0.0
        %1370 = vmatpush1.msra.mxu0 0.0
        %1371 = vmatprep.subr.mxu0 0.0
        %1372 = vmatpush1.msra.mxu0 0.0
        %1373 = vmatprep.subr.mxu0 0.0
        %1374 = vmatpush1.msra.mxu0 0.0
        %1375 = vmatprep.subr.mxu0 0.0
        %1376 = vmatpush1.msra.mxu0 0.0
        %1377 = vmatprep.subr.mxu0 0.0
        %1378 = vmatpush1.msra.mxu0 0.0
        %1379 = vmatprep.subr.mxu0 0.0
        %1380 = vmatpush1.msra.mxu0 0.0
        %1381 = vmatprep.subr.mxu0 0.0
        %1382 = vmatpush1.msra.mxu0 0.0
        %1383 = vmatprep.subr.mxu0 0.0
        %1384 = vmatpush1.msra.mxu0 0.0
        %1385 = vmatprep.subr.mxu0 0.0
        %1386 = vmatpush1.msra.mxu0 0.0
        %1387 = vmatprep.subr.mxu0 0.0
        %1388 = vmatpush1.msra.mxu0 0.0
        %1389 = vmatprep.subr.mxu0 0.0
        %1390 = vmatpush1.msra.mxu0 0.0
        %1391 = vmatprep.mubr.f32.mxu0 0.0
        %1392 = vmatmul.mubr.f32.gmra.mrb[0].mxu0 %v1175
        %v1393 = vpop.f32.mrb[0].mxu0
        %v1394 = vadd.f32 0.0, %v1393
        %v1395 = vpop.f32.mrb[0].mxu0
        %1396 = vdwg.mxu0
        %v1397 = vld [vmem:[%s3] sm:$0xff]
        %s1398 = scalar_lea.vmem %s3, 8
        %v1399 = vld [vmem:[%s1398] sm:$0xff]
        %vm1400 = vcmask 64512
        %v1402 = vsel %vm1400, %v1399, 0
        %1404 = vmatprep.subr.mxu0 0.0
        %1405 = vmatpush1.msra.mxu0 %v1319
        %1406 = vmatprep.subr.mxu0 0.0
        %1407 = vmatpush1.msra.mxu0 0.0
        %1408 = vmatprep.subr.mxu0 0.0
        %1409 = vmatpush1.msra.mxu0 0.0
        %1410 = vmatprep.subr.mxu0 0.0
        %1411 = vmatpush1.msra.mxu0 0.0
        %1412 = vmatprep.subr.mxu0 0.0
        %1413 = vmatpush1.msra.mxu0 0.0
        %1414 = vmatprep.subr.mxu0 0.0
        %1415 = vmatpush1.msra.mxu0 0.0
        %1416 = vmatprep.subr.mxu0 0.0
        %1417 = vmatpush1.msra.mxu0 0.0
        %1418 = vmatprep.subr.mxu0 0.0
        %1419 = vmatpush1.msra.mxu0 0.0
        %1420 = vmatprep.subr.mxu0 0.0
        %1421 = vmatpush1.msra.mxu0 0.0
        %1422 = vmatprep.subr.mxu0 0.0
        %1423 = vmatpush1.msra.mxu0 0.0
        %1424 = vmatprep.subr.mxu0 0.0
        %1425 = vmatpush1.msra.mxu0 0.0
        %1426 = vmatprep.subr.mxu0 0.0
        %1427 = vmatpush1.msra.mxu0 0.0
        %1428 = vmatprep.subr.mxu0 0.0
        %1429 = vmatpush1.msra.mxu0 0.0
        %1430 = vmatprep.subr.mxu0 0.0
        %1431 = vmatpush1.msra.mxu0 0.0
        %1432 = vmatprep.subr.mxu0 0.0
        %1433 = vmatpush1.msra.mxu0 0.0
        %1434 = vmatprep.subr.mxu0 0.0
        %1435 = vmatpush1.msra.mxu0 0.0
        %1436 = vmatprep.subr.mxu0 0.0
        %1437 = vmatpush1.msra.mxu0 0.0
        %1438 = vmatprep.subr.mxu0 0.0
        %1439 = vmatpush1.msra.mxu0 0.0
        %1440 = vmatprep.subr.mxu0 0.0
        %1441 = vmatpush1.msra.mxu0 0.0
        %1442 = vmatprep.subr.mxu0 0.0
        %1443 = vmatpush1.msra.mxu0 0.0
        %1444 = vmatprep.subr.mxu0 0.0
        %1445 = vmatpush1.msra.mxu0 0.0
        %1446 = vmatprep.subr.mxu0 0.0
        %1447 = vmatpush1.msra.mxu0 0.0
        %1448 = vmatprep.subr.mxu0 0.0
        %1449 = vmatpush1.msra.mxu0 0.0
        %1450 = vmatprep.subr.mxu0 0.0
        %1451 = vmatpush1.msra.mxu0 0.0
        %1452 = vmatprep.subr.mxu0 0.0
        %1453 = vmatpush1.msra.mxu0 0.0
        %1454 = vmatprep.subr.mxu0 0.0
        %1455 = vmatpush1.msra.mxu0 0.0
        %1456 = vmatprep.subr.mxu0 0.0
        %1457 = vmatpush1.msra.mxu0 0.0
        %1458 = vmatprep.subr.mxu0 0.0
        %1459 = vmatpush1.msra.mxu0 0.0
        %1460 = vmatprep.subr.mxu0 0.0
        %1461 = vmatpush1.msra.mxu0 0.0
        %1462 = vmatprep.subr.mxu0 0.0
        %1463 = vmatpush1.msra.mxu0 0.0
        %1464 = vmatprep.subr.mxu0 0.0
        %1465 = vmatpush1.msra.mxu0 0.0
        %1466 = vmatprep.subr.mxu0 0.0
        %1467 = vmatpush1.msra.mxu0 0.0
        %1468 = vmatprep.mubr.f32.mxu0 0.0
        %1469 = vmatmul.mubr.f32.gmra.mrb[0].mxu0 %v1402
        %v1470 = vpop.f32.mrb[0].mxu0
        %v1471 = vadd.f32 0.0, %v1470
        %v1472 = vpop.f32.mrb[0].mxu0
        %1473 = vdwg.mxu0
        %v1475 = vsel %vm1400, %v1397, 0
        %1477 = vmatprep.subr.mxu0 0.0
        %1478 = vmatpush1.msra.mxu0 %v1244
        %1479 = vmatprep.subr.mxu0 0.0
        %1480 = vmatpush1.msra.mxu0 0.0
        %1481 = vmatprep.subr.mxu0 0.0
        %1482 = vmatpush1.msra.mxu0 0.0
        %1483 = vmatprep.subr.mxu0 0.0
        %1484 = vmatpush1.msra.mxu0 0.0
        %1485 = vmatprep.subr.mxu0 0.0
        %1486 = vmatpush1.msra.mxu0 0.0
        %1487 = vmatprep.subr.mxu0 0.0
        %1488 = vmatpush1.msra.mxu0 0.0
        %1489 = vmatprep.subr.mxu0 0.0
        %1490 = vmatpush1.msra.mxu0 0.0
        %1491 = vmatprep.subr.mxu0 0.0
        %1492 = vmatpush1.msra.mxu0 0.0
        %1493 = vmatprep.subr.mxu0 0.0
        %1494 = vmatpush1.msra.mxu0 0.0
        %1495 = vmatprep.subr.mxu0 0.0
        %1496 = vmatpush1.msra.mxu0 0.0
        %1497 = vmatprep.subr.mxu0 0.0
        %1498 = vmatpush1.msra.mxu0 0.0
        %1499 = vmatprep.subr.mxu0 0.0
        %1500 = vmatpush1.msra.mxu0 0.0
        %1501 = vmatprep.subr.mxu0 0.0
        %1502 = vmatpush1.msra.mxu0 0.0
        %1503 = vmatprep.subr.mxu0 0.0
        %1504 = vmatpush1.msra.mxu0 0.0
        %1505 = vmatprep.subr.mxu0 0.0
        %1506 = vmatpush1.msra.mxu0 0.0
        %1507 = vmatprep.subr.mxu0 0.0
        %1508 = vmatpush1.msra.mxu0 0.0
        %1509 = vmatprep.subr.mxu0 0.0
        %1510 = vmatpush1.msra.mxu0 0.0
        %1511 = vmatprep.subr.mxu0 0.0
        %1512 = vmatpush1.msra.mxu0 0.0
        %1513 = vmatprep.subr.mxu0 0.0
        %1514 = vmatpush1.msra.mxu0 0.0
        %1515 = vmatprep.subr.mxu0 0.0
        %1516 = vmatpush1.msra.mxu0 0.0
        %1517 = vmatprep.subr.mxu0 0.0
        %1518 = vmatpush1.msra.mxu0 0.0
        %1519 = vmatprep.subr.mxu0 0.0
        %1520 = vmatpush1.msra.mxu0 0.0
        %1521 = vmatprep.subr.mxu0 0.0
        %1522 = vmatpush1.msra.mxu0 0.0
        %1523 = vmatprep.subr.mxu0 0.0
        %1524 = vmatpush1.msra.mxu0 0.0
        %1525 = vmatprep.subr.mxu0 0.0
        %1526 = vmatpush1.msra.mxu0 0.0
        %1527 = vmatprep.subr.mxu0 0.0
        %1528 = vmatpush1.msra.mxu0 0.0
        %1529 = vmatprep.subr.mxu0 0.0
        %1530 = vmatpush1.msra.mxu0 0.0
        %1531 = vmatprep.subr.mxu0 0.0
        %1532 = vmatpush1.msra.mxu0 0.0
        %1533 = vmatprep.subr.mxu0 0.0
        %1534 = vmatpush1.msra.mxu0 0.0
        %1535 = vmatprep.subr.mxu0 0.0
        %1536 = vmatpush1.msra.mxu0 0.0
        %1537 = vmatprep.subr.mxu0 0.0
        %1538 = vmatpush1.msra.mxu0 0.0
        %1539 = vmatprep.subr.mxu0 0.0
        %1540 = vmatpush1.msra.mxu0 0.0
        %1541 = vmatprep.mubr.f32.mxu0 0.0
        %1542 = vmatmul.mubr.f32.gmra.mrb[0].mxu0 %v1475
        %v1543 = vpop.f32.mrb[0].mxu0
        %v1544 = vadd.f32 %v1471, %v1543
        %v1545 = vpop.f32.mrb[0].mxu0
        %1546 = vdwg.mxu0
        %s1547 = scalar_lea.vmem %s3, 16
        %v1548 = vld [vmem:[%s1547] sm:$0xff]
        %v1550 = vsel %vm1400, %v1548, 0
        %1552 = vmatprep.subr.mxu0 0.0
        %1553 = vmatpush1.msra.mxu0 %v1394
        %1554 = vmatprep.subr.mxu0 0.0
        %1555 = vmatpush1.msra.mxu0 0.0
        %1556 = vmatprep.subr.mxu0 0.0
        %1557 = vmatpush1.msra.mxu0 0.0
        %1558 = vmatprep.subr.mxu0 0.0
        %1559 = vmatpush1.msra.mxu0 0.0
        %1560 = vmatprep.subr.mxu0 0.0
        %1561 = vmatpush1.msra.mxu0 0.0
        %1562 = vmatprep.subr.mxu0 0.0
        %1563 = vmatpush1.msra.mxu0 0.0
        %1564 = vmatprep.subr.mxu0 0.0
        %1565 = vmatpush1.msra.mxu0 0.0
        %1566 = vmatprep.subr.mxu0 0.0
        %1567 = vmatpush1.msra.mxu0 0.0
        %1568 = vmatprep.subr.mxu0 0.0
        %1569 = vmatpush1.msra.mxu0 0.0
        %1570 = vmatprep.subr.mxu0 0.0
        %1571 = vmatpush1.msra.mxu0 0.0
        %1572 = vmatprep.subr.mxu0 0.0
        %1573 = vmatpush1.msra.mxu0 0.0
        %1574 = vmatprep.subr.mxu0 0.0
        %1575 = vmatpush1.msra.mxu0 0.0
        %1576 = vmatprep.subr.mxu0 0.0
        %1577 = vmatpush1.msra.mxu0 0.0
        %1578 = vmatprep.subr.mxu0 0.0
        %1579 = vmatpush1.msra.mxu0 0.0
        %1580 = vmatprep.subr.mxu0 0.0
        %1581 = vmatpush1.msra.mxu0 0.0
        %1582 = vmatprep.subr.mxu0 0.0
        %1583 = vmatpush1.msra.mxu0 0.0
        %1584 = vmatprep.subr.mxu0 0.0
        %1585 = vmatpush1.msra.mxu0 0.0
        %1586 = vmatprep.subr.mxu0 0.0
        %1587 = vmatpush1.msra.mxu0 0.0
        %1588 = vmatprep.subr.mxu0 0.0
        %1589 = vmatpush1.msra.mxu0 0.0
        %1590 = vmatprep.subr.mxu0 0.0
        %1591 = vmatpush1.msra.mxu0 0.0
        %1592 = vmatprep.subr.mxu0 0.0
        %1593 = vmatpush1.msra.mxu0 0.0
        %1594 = vmatprep.subr.mxu0 0.0
        %1595 = vmatpush1.msra.mxu0 0.0
        %1596 = vmatprep.subr.mxu0 0.0
        %1597 = vmatpush1.msra.mxu0 0.0
        %1598 = vmatprep.subr.mxu0 0.0
        %1599 = vmatpush1.msra.mxu0 0.0
        %1600 = vmatprep.subr.mxu0 0.0
        %1601 = vmatpush1.msra.mxu0 0.0
        %1602 = vmatprep.subr.mxu0 0.0
        %1603 = vmatpush1.msra.mxu0 0.0
        %1604 = vmatprep.subr.mxu0 0.0
        %1605 = vmatpush1.msra.mxu0 0.0
        %1606 = vmatprep.subr.mxu0 0.0
        %1607 = vmatpush1.msra.mxu0 0.0
        %1608 = vmatprep.subr.mxu0 0.0
        %1609 = vmatpush1.msra.mxu0 0.0
        %1610 = vmatprep.subr.mxu0 0.0
        %1611 = vmatpush1.msra.mxu0 0.0
        %1612 = vmatprep.subr.mxu0 0.0
        %1613 = vmatpush1.msra.mxu0 0.0
        %1614 = vmatprep.subr.mxu0 0.0
        %1615 = vmatpush1.msra.mxu0 0.0
        %1616 = vmatprep.mubr.f32.mxu0 0.0
        %1617 = vmatmul.mubr.f32.gmra.mrb[0].mxu0 %v1550
        %v1618 = vpop.f32.mrb[0].mxu0
        %v1619 = vadd.f32 0.0, %v1618
        %v1620 = vpop.f32.mrb[0].mxu0
        %1621 = vdwg.mxu0
        %v1622 = vadd.f32 %v1544, %v1619
        %s1623 = scalar_lea.vmem %s4, 32
        %v1624 = vld [vmem:[%s1623] sm:$0xff]
        %1626 = vset.pattern.permute.xlu0 0
        %1627 = vperm.xlu0 %1626, %v1624
        %v1628 = vpop.permute.xlu0 %1627
        %v1630 = vmul.f32 %v1622, %v1628
        %s1631 = scalar_lea.vmem %s4, 40
        %v1632 = vld [vmem:[%s1631] sm:$0xff]
        %1634 = vset.pattern.permute.xlu0 0
        %1635 = vperm.xlu0 %1634, %v1632
        %v1636 = vpop.permute.xlu0 %1635
        %v1638 = vadd.f32 %v1630, %v1636
        %v1639 = vadd.f32 %v1638, %v1168
        %v1640 = vmax.f32 %v1639, 0.0
        %v1641 = vld [vmem:[%s11] sm:$0xff]
        %v1642 = vld [vmem:[%s11 + $0x8] sm:$0xff]
        %v1643 = vld [vmem:[%s11 + $0x10] sm:$0xff]
        %v1644 = vld [vmem:[%s11 + $0x18] sm:$0xff]
        %v1646 = vsel %vm1173, %v1640, 0
        %1648 = vmatprep.subr.mxu0 0.0
        %1649 = vmatpush1.msra.mxu0 %v1641
        %1650 = vmatprep.subr.mxu0 0.0
        %1651 = vmatpush1.msra.mxu0 %v1642
        %1652 = vmatprep.subr.mxu0 0.0
        %1653 = vmatpush1.msra.mxu0 %v1643
        %1654 = vmatprep.subr.mxu0 0.0
        %1655 = vmatpush1.msra.mxu0 %v1644
        %1656 = vmatprep.subr.mxu0 0.0
        %1657 = vmatpush1.msra.mxu0 0.0
        %1658 = vmatprep.subr.mxu0 0.0
        %1659 = vmatpush1.msra.mxu0 0.0
        %1660 = vmatprep.subr.mxu0 0.0
        %1661 = vmatpush1.msra.mxu0 0.0
        %1662 = vmatprep.subr.mxu0 0.0
        %1663 = vmatpush1.msra.mxu0 0.0
        %1664 = vmatprep.subr.mxu0 0.0
        %1665 = vmatpush1.msra.mxu0 0.0
        %1666 = vmatprep.subr.mxu0 0.0
        %1667 = vmatpush1.msra.mxu0 0.0
        %1668 = vmatprep.subr.mxu0 0.0
        %1669 = vmatpush1.msra.mxu0 0.0
        %1670 = vmatprep.subr.mxu0 0.0
        %1671 = vmatpush1.msra.mxu0 0.0
        %1672 = vmatprep.subr.mxu0 0.0
        %1673 = vmatpush1.msra.mxu0 0.0
        %1674 = vmatprep.subr.mxu0 0.0
        %1675 = vmatpush1.msra.mxu0 0.0
        %1676 = vmatprep.subr.mxu0 0.0
        %1677 = vmatpush1.msra.mxu0 0.0
        %1678 = vmatprep.subr.mxu0 0.0
        %1679 = vmatpush1.msra.mxu0 0.0
        %1680 = vmatprep.subr.mxu0 0.0
        %1681 = vmatpush1.msra.mxu0 0.0
        %1682 = vmatprep.subr.mxu0 0.0
        %1683 = vmatpush1.msra.mxu0 0.0
        %1684 = vmatprep.subr.mxu0 0.0
        %1685 = vmatpush1.msra.mxu0 0.0
        %1686 = vmatprep.subr.mxu0 0.0
        %1687 = vmatpush1.msra.mxu0 0.0
        %1688 = vmatprep.subr.mxu0 0.0
        %1689 = vmatpush1.msra.mxu0 0.0
        %1690 = vmatprep.subr.mxu0 0.0
        %1691 = vmatpush1.msra.mxu0 0.0
        %1692 = vmatprep.subr.mxu0 0.0
        %1693 = vmatpush1.msra.mxu0 0.0
        %1694 = vmatprep.subr.mxu0 0.0
        %1695 = vmatpush1.msra.mxu0 0.0
        %1696 = vmatprep.subr.mxu0 0.0
        %1697 = vmatpush1.msra.mxu0 0.0
        %1698 = vmatprep.subr.mxu0 0.0
        %1699 = vmatpush1.msra.mxu0 0.0
        %1700 = vmatprep.subr.mxu0 0.0
        %1701 = vmatpush1.msra.mxu0 0.0
        %1702 = vmatprep.subr.mxu0 0.0
        %1703 = vmatpush1.msra.mxu0 0.0
        %1704 = vmatprep.subr.mxu0 0.0
        %1705 = vmatpush1.msra.mxu0 0.0
        %1706 = vmatprep.subr.mxu0 0.0
        %1707 = vmatpush1.msra.mxu0 0.0
        %1708 = vmatprep.subr.mxu0 0.0
        %1709 = vmatpush1.msra.mxu0 0.0
        %1710 = vmatprep.subr.mxu0 0.0
        %1711 = vmatpush1.msra.mxu0 0.0
        %1712 = vmatprep.mubr.f32.mxu0 0.0
        %1713 = vmatmul.mubr.f32.gmra.mrb[0].mxu0 %v1646
        %v1714 = vpop.f32.mrb[0].mxu0
        %v1715 = vadd.f32 0.0, %v1714
        %v1716 = vpop.f32.mrb[0].mxu0
        %1717 = vdwg.mxu0
        %s1718 = scalar_lea.vmem %s11, 32
        %v1719 = vld [vmem:[%s1718] sm:$0xff]
        %v1720 = vld [vmem:[%s1718 + $0x8] sm:$0xff]
        %v1721 = vld [vmem:[%s1718 + $0x10] sm:$0xff]
        %v1722 = vld [vmem:[%s1718 + $0x18] sm:$0xff]
        %1723 = vmatprep.subr.mxu0 0.0
        %1724 = vmatpush1.msra.mxu0 %v1719
        %1725 = vmatprep.subr.mxu0 0.0
        %1726 = vmatpush1.msra.mxu0 %v1720
        %1727 = vmatprep.subr.mxu0 0.0
        %1728 = vmatpush1.msra.mxu0 %v1721
        %1729 = vmatprep.subr.mxu0 0.0
        %1730 = vmatpush1.msra.mxu0 %v1722
        %1731 = vmatprep.subr.mxu0 0.0
        %1732 = vmatpush1.msra.mxu0 0.0
        %1733 = vmatprep.subr.mxu0 0.0
        %1734 = vmatpush1.msra.mxu0 0.0
        %1735 = vmatprep.subr.mxu0 0.0
        %1736 = vmatpush1.msra.mxu0 0.0
        %1737 = vmatprep.subr.mxu0 0.0
        %1738 = vmatpush1.msra.mxu0 0.0
        %1739 = vmatprep.subr.mxu0 0.0
        %1740 = vmatpush1.msra.mxu0 0.0
        %1741 = vmatprep.subr.mxu0 0.0
        %1742 = vmatpush1.msra.mxu0 0.0
        %1743 = vmatprep.subr.mxu0 0.0
        %1744 = vmatpush1.msra.mxu0 0.0
        %1745 = vmatprep.subr.mxu0 0.0
        %1746 = vmatpush1.msra.mxu0 0.0
        %1747 = vmatprep.subr.mxu0 0.0
        %1748 = vmatpush1.msra.mxu0 0.0
        %1749 = vmatprep.subr.mxu0 0.0
        %1750 = vmatpush1.msra.mxu0 0.0
        %1751 = vmatprep.subr.mxu0 0.0
        %1752 = vmatpush1.msra.mxu0 0.0
        %1753 = vmatprep.subr.mxu0 0.0
        %1754 = vmatpush1.msra.mxu0 0.0
        %1755 = vmatprep.subr.mxu0 0.0
        %1756 = vmatpush1.msra.mxu0 0.0
        %1757 = vmatprep.subr.mxu0 0.0
        %1758 = vmatpush1.msra.mxu0 0.0
        %1759 = vmatprep.subr.mxu0 0.0
        %1760 = vmatpush1.msra.mxu0 0.0
        %1761 = vmatprep.subr.mxu0 0.0
        %1762 = vmatpush1.msra.mxu0 0.0
        %1763 = vmatprep.subr.mxu0 0.0
        %1764 = vmatpush1.msra.mxu0 0.0
        %1765 = vmatprep.subr.mxu0 0.0
        %1766 = vmatpush1.msra.mxu0 0.0
        %1767 = vmatprep.subr.mxu0 0.0
        %1768 = vmatpush1.msra.mxu0 0.0
        %1769 = vmatprep.subr.mxu0 0.0
        %1770 = vmatpush1.msra.mxu0 0.0
        %1771 = vmatprep.subr.mxu0 0.0
        %1772 = vmatpush1.msra.mxu0 0.0
        %1773 = vmatprep.subr.mxu0 0.0
        %1774 = vmatpush1.msra.mxu0 0.0
        %1775 = vmatprep.subr.mxu0 0.0
        %1776 = vmatpush1.msra.mxu0 0.0
        %1777 = vmatprep.subr.mxu0 0.0
        %1778 = vmatpush1.msra.mxu0 0.0
        %1779 = vmatprep.subr.mxu0 0.0
        %1780 = vmatpush1.msra.mxu0 0.0
        %1781 = vmatprep.subr.mxu0 0.0
        %1782 = vmatpush1.msra.mxu0 0.0
        %1783 = vmatprep.subr.mxu0 0.0
        %1784 = vmatpush1.msra.mxu0 0.0
        %1785 = vmatprep.subr.mxu0 0.0
        %1786 = vmatpush1.msra.mxu0 0.0
        %1787 = vmatprep.mubr.f32.mxu0 0.0
        %1788 = vmatmul.mubr.f32.gmra.mrb[0].mxu0 %v1646
        %v1789 = vpop.f32.mrb[0].mxu0
        %v1790 = vadd.f32 0.0, %v1789
        %v1791 = vpop.f32.mrb[0].mxu0
        %1792 = vdwg.mxu0
        %s1793 = scalar_lea.vmem %s11, 64
        %v1794 = vld [vmem:[%s1793] sm:$0xff]
        %v1795 = vld [vmem:[%s1793 + $0x8] sm:$0xff]
        %v1796 = vld [vmem:[%s1793 + $0x10] sm:$0xff]
        %v1797 = vld [vmem:[%s1793 + $0x18] sm:$0xff]
        %1798 = vmatprep.subr.mxu0 0.0
        %1799 = vmatpush1.msra.mxu0 %v1794
        %1800 = vmatprep.subr.mxu0 0.0
        %1801 = vmatpush1.msra.mxu0 %v1795
        %1802 = vmatprep.subr.mxu0 0.0
        %1803 = vmatpush1.msra.mxu0 %v1796
        %1804 = vmatprep.subr.mxu0 0.0
        %1805 = vmatpush1.msra.mxu0 %v1797
        %1806 = vmatprep.subr.mxu0 0.0
        %1807 = vmatpush1.msra.mxu0 0.0
        %1808 = vmatprep.subr.mxu0 0.0
        %1809 = vmatpush1.msra.mxu0 0.0
        %1810 = vmatprep.subr.mxu0 0.0
        %1811 = vmatpush1.msra.mxu0 0.0
        %1812 = vmatprep.subr.mxu0 0.0
        %1813 = vmatpush1.msra.mxu0 0.0
        %1814 = vmatprep.subr.mxu0 0.0
        %1815 = vmatpush1.msra.mxu0 0.0
        %1816 = vmatprep.subr.mxu0 0.0
        %1817 = vmatpush1.msra.mxu0 0.0
        %1818 = vmatprep.subr.mxu0 0.0
        %1819 = vmatpush1.msra.mxu0 0.0
        %1820 = vmatprep.subr.mxu0 0.0
        %1821 = vmatpush1.msra.mxu0 0.0
        %1822 = vmatprep.subr.mxu0 0.0
        %1823 = vmatpush1.msra.mxu0 0.0
        %1824 = vmatprep.subr.mxu0 0.0
        %1825 = vmatpush1.msra.mxu0 0.0
        %1826 = vmatprep.subr.mxu0 0.0
        %1827 = vmatpush1.msra.mxu0 0.0
        %1828 = vmatprep.subr.mxu0 0.0
        %1829 = vmatpush1.msra.mxu0 0.0
        %1830 = vmatprep.subr.mxu0 0.0
        %1831 = vmatpush1.msra.mxu0 0.0
        %1832 = vmatprep.subr.mxu0 0.0
        %1833 = vmatpush1.msra.mxu0 0.0
        %1834 = vmatprep.subr.mxu0 0.0
        %1835 = vmatpush1.msra.mxu0 0.0
        %1836 = vmatprep.subr.mxu0 0.0
        %1837 = vmatpush1.msra.mxu0 0.0
        %1838 = vmatprep.subr.mxu0 0.0
        %1839 = vmatpush1.msra.mxu0 0.0
        %1840 = vmatprep.subr.mxu0 0.0
        %1841 = vmatpush1.msra.mxu0 0.0
        %1842 = vmatprep.subr.mxu0 0.0
        %1843 = vmatpush1.msra.mxu0 0.0
        %1844 = vmatprep.subr.mxu0 0.0
        %1845 = vmatpush1.msra.mxu0 0.0
        %1846 = vmatprep.subr.mxu0 0.0
        %1847 = vmatpush1.msra.mxu0 0.0
        %1848 = vmatprep.subr.mxu0 0.0
        %1849 = vmatpush1.msra.mxu0 0.0
        %1850 = vmatprep.subr.mxu0 0.0
        %1851 = vmatpush1.msra.mxu0 0.0
        %1852 = vmatprep.subr.mxu0 0.0
        %1853 = vmatpush1.msra.mxu0 0.0
        %1854 = vmatprep.subr.mxu0 0.0
        %1855 = vmatpush1.msra.mxu0 0.0
        %1856 = vmatprep.subr.mxu0 0.0
        %1857 = vmatpush1.msra.mxu0 0.0
        %1858 = vmatprep.subr.mxu0 0.0
        %1859 = vmatpush1.msra.mxu0 0.0
        %1860 = vmatprep.subr.mxu0 0.0
        %1861 = vmatpush1.msra.mxu0 0.0
        %1862 = vmatprep.mubr.f32.mxu0 0.0
        %1863 = vmatmul.mubr.f32.gmra.mrb[0].mxu0 %v1646
        %v1864 = vpop.f32.mrb[0].mxu0
        %v1865 = vadd.f32 0.0, %v1864
        %v1866 = vpop.f32.mrb[0].mxu0
        %1867 = vdwg.mxu0
        %v1868 = vld [vmem:[%s7] sm:$0xff]
        %v1869 = vld [vmem:[%s7 + $0x8] sm:$0xff]
        %s1870 = scalar_lea.vmem %s7, 16
        %v1871 = vld [vmem:[%s1870] sm:$0xff]
        %v1872 = vld [vmem:[%s1870 + $0x8] sm:$0xff]
        %v1874 = vsel %vm1400, %v1871, 0
        %v1877 = vsel %vm1400, %v1872, 0
        %1879 = vmatprep.subr.mxu0 0.0
        %1880 = vmatpush1.msra.mxu0 %v1790
        %1881 = vmatprep.subr.mxu0 0.0
        %1882 = vmatpush1.msra.mxu0 0.0
        %1883 = vmatprep.subr.mxu0 0.0
        %1884 = vmatpush1.msra.mxu0 0.0
        %1885 = vmatprep.subr.mxu0 0.0
        %1886 = vmatpush1.msra.mxu0 0.0
        %1887 = vmatprep.subr.mxu0 0.0
        %1888 = vmatpush1.msra.mxu0 0.0
        %1889 = vmatprep.subr.mxu0 0.0
        %1890 = vmatpush1.msra.mxu0 0.0
        %1891 = vmatprep.subr.mxu0 0.0
        %1892 = vmatpush1.msra.mxu0 0.0
        %1893 = vmatprep.subr.mxu0 0.0
        %1894 = vmatpush1.msra.mxu0 0.0
        %1895 = vmatprep.subr.mxu0 0.0
        %1896 = vmatpush1.msra.mxu0 0.0
        %1897 = vmatprep.subr.mxu0 0.0
        %1898 = vmatpush1.msra.mxu0 0.0
        %1899 = vmatprep.subr.mxu0 0.0
        %1900 = vmatpush1.msra.mxu0 0.0
        %1901 = vmatprep.subr.mxu0 0.0
        %1902 = vmatpush1.msra.mxu0 0.0
        %1903 = vmatprep.subr.mxu0 0.0
        %1904 = vmatpush1.msra.mxu0 0.0
        %1905 = vmatprep.subr.mxu0 0.0
        %1906 = vmatpush1.msra.mxu0 0.0
        %1907 = vmatprep.subr.mxu0 0.0
        %1908 = vmatpush1.msra.mxu0 0.0
        %1909 = vmatprep.subr.mxu0 0.0
        %1910 = vmatpush1.msra.mxu0 0.0
        %1911 = vmatprep.subr.mxu0 0.0
        %1912 = vmatpush1.msra.mxu0 0.0
        %1913 = vmatprep.subr.mxu0 0.0
        %1914 = vmatpush1.msra.mxu0 0.0
        %1915 = vmatprep.subr.mxu0 0.0
        %1916 = vmatpush1.msra.mxu0 0.0
        %1917 = vmatprep.subr.mxu0 0.0
        %1918 = vmatpush1.msra.mxu0 0.0
        %1919 = vmatprep.subr.mxu0 0.0
        %1920 = vmatpush1.msra.mxu0 0.0
        %1921 = vmatprep.subr.mxu0 0.0
        %1922 = vmatpush1.msra.mxu0 0.0
        %1923 = vmatprep.subr.mxu0 0.0
        %1924 = vmatpush1.msra.mxu0 0.0
        %1925 = vmatprep.subr.mxu0 0.0
        %1926 = vmatpush1.msra.mxu0 0.0
        %1927 = vmatprep.subr.mxu0 0.0
        %1928 = vmatpush1.msra.mxu0 0.0
        %1929 = vmatprep.subr.mxu0 0.0
        %1930 = vmatpush1.msra.mxu0 0.0
        %1931 = vmatprep.subr.mxu0 0.0
        %1932 = vmatpush1.msra.mxu0 0.0
        %1933 = vmatprep.subr.mxu0 0.0
        %1934 = vmatpush1.msra.mxu0 0.0
        %1935 = vmatprep.subr.mxu0 0.0
        %1936 = vmatpush1.msra.mxu0 0.0
        %1937 = vmatprep.subr.mxu0 0.0
        %1938 = vmatpush1.msra.mxu0 0.0
        %1939 = vmatprep.subr.mxu0 0.0
        %1940 = vmatpush1.msra.mxu0 0.0
        %1941 = vmatprep.subr.mxu0 0.0
        %1942 = vmatpush1.msra.mxu0 0.0
        %1943 = vmatprep.mubr.f32.mxu0 0.0
        %1944 = vmatmul.mubr.f32.gmra.mrb[0].mxu0 %v1874
        %v1945 = vpop.f32.mrb[0].mxu0
        %v1946 = vadd.f32 0.0, %v1945
        %v1947 = vpop.f32.mrb[0].mxu0
        %1948 = vmatprep.mubr.f32.mxu0 0.0
        %1949 = vmatmul.mubr.f32.gmra.mrb[0].mxu0 %v1877
        %v1950 = vpop.f32.mrb[0].mxu0
        %v1951 = vadd.f32 0.0, %v1950
        %v1952 = vpop.f32.mrb[0].mxu0
        %1953 = vdwg.mxu0
        %v1955 = vsel %vm1400, %v1868, 0
        %v1958 = vsel %vm1400, %v1869, 0
        %1960 = vmatprep.subr.mxu0 0.0
        %1961 = vmatpush1.msra.mxu0 %v1715
        %1962 = vmatprep.subr.mxu0 0.0
        %1963 = vmatpush1.msra.mxu0 0.0
        %1964 = vmatprep.subr.mxu0 0.0
        %1965 = vmatpush1.msra.mxu0 0.0
        %1966 = vmatprep.subr.mxu0 0.0
        %1967 = vmatpush1.msra.mxu0 0.0
        %1968 = vmatprep.subr.mxu0 0.0
        %1969 = vmatpush1.msra.mxu0 0.0
        %1970 = vmatprep.subr.mxu0 0.0
        %1971 = vmatpush1.msra.mxu0 0.0
        %1972 = vmatprep.subr.mxu0 0.0
        %1973 = vmatpush1.msra.mxu0 0.0
        %1974 = vmatprep.subr.mxu0 0.0
        %1975 = vmatpush1.msra.mxu0 0.0
        %1976 = vmatprep.subr.mxu0 0.0
        %1977 = vmatpush1.msra.mxu0 0.0
        %1978 = vmatprep.subr.mxu0 0.0
        %1979 = vmatpush1.msra.mxu0 0.0
        %1980 = vmatprep.subr.mxu0 0.0
        %1981 = vmatpush1.msra.mxu0 0.0
        %1982 = vmatprep.subr.mxu0 0.0
        %1983 = vmatpush1.msra.mxu0 0.0
        %1984 = vmatprep.subr.mxu0 0.0
        %1985 = vmatpush1.msra.mxu0 0.0
        %1986 = vmatprep.subr.mxu0 0.0
        %1987 = vmatpush1.msra.mxu0 0.0
        %1988 = vmatprep.subr.mxu0 0.0
        %1989 = vmatpush1.msra.mxu0 0.0
        %1990 = vmatprep.subr.mxu0 0.0
        %1991 = vmatpush1.msra.mxu0 0.0
        %1992 = vmatprep.subr.mxu0 0.0
        %1993 = vmatpush1.msra.mxu0 0.0
        %1994 = vmatprep.subr.mxu0 0.0
        %1995 = vmatpush1.msra.mxu0 0.0
        %1996 = vmatprep.subr.mxu0 0.0
        %1997 = vmatpush1.msra.mxu0 0.0
        %1998 = vmatprep.subr.mxu0 0.0
        %1999 = vmatpush1.msra.mxu0 0.0
        %2000 = vmatprep.subr.mxu0 0.0
        %2001 = vmatpush1.msra.mxu0 0.0
        %2002 = vmatprep.subr.mxu0 0.0
        %2003 = vmatpush1.msra.mxu0 0.0
        %2004 = vmatprep.subr.mxu0 0.0
        %2005 = vmatpush1.msra.mxu0 0.0
        %2006 = vmatprep.subr.mxu0 0.0
        %2007 = vmatpush1.msra.mxu0 0.0
        %2008 = vmatprep.subr.mxu0 0.0
        %2009 = vmatpush1.msra.mxu0 0.0
        %2010 = vmatprep.subr.mxu0 0.0
        %2011 = vmatpush1.msra.mxu0 0.0
        %2012 = vmatprep.subr.mxu0 0.0
        %2013 = vmatpush1.msra.mxu0 0.0
        %2014 = vmatprep.subr.mxu0 0.0
        %2015 = vmatpush1.msra.mxu0 0.0
        %2016 = vmatprep.subr.mxu0 0.0
        %2017 = vmatpush1.msra.mxu0 0.0
        %2018 = vmatprep.subr.mxu0 0.0
        %2019 = vmatpush1.msra.mxu0 0.0
        %2020 = vmatprep.subr.mxu0 0.0
        %2021 = vmatpush1.msra.mxu0 0.0
        %2022 = vmatprep.subr.mxu0 0.0
        %2023 = vmatpush1.msra.mxu0 0.0
        %2024 = vmatprep.mubr.f32.mxu0 0.0
        %2025 = vmatmul.mubr.f32.gmra.mrb[0].mxu0 %v1955
        %v2026 = vpop.f32.mrb[0].mxu0
        %v2027 = vadd.f32 %v1946, %v2026
        %v2028 = vpop.f32.mrb[0].mxu0
        %2029 = vmatprep.mubr.f32.mxu0 0.0
        %2030 = vmatmul.mubr.f32.gmra.mrb[0].mxu0 %v1958
        %v2031 = vpop.f32.mrb[0].mxu0
        %v2032 = vadd.f32 %v1951, %v2031
        %v2033 = vpop.f32.mrb[0].mxu0
        %2034 = vdwg.mxu0
        %s2035 = scalar_lea.vmem %s7, 32
        %v2036 = vld [vmem:[%s2035] sm:$0xff]
        %v2037 = vld [vmem:[%s2035 + $0x8] sm:$0xff]
        %v2039 = vsel %vm1400, %v2036, 0
        %v2042 = vsel %vm1400, %v2037, 0
        %2044 = vmatprep.subr.mxu0 0.0
        %2045 = vmatpush1.msra.mxu0 %v1865
        %2046 = vmatprep.subr.mxu0 0.0
        %2047 = vmatpush1.msra.mxu0 0.0
        %2048 = vmatprep.subr.mxu0 0.0
        %2049 = vmatpush1.msra.mxu0 0.0
        %2050 = vmatprep.subr.mxu0 0.0
        %2051 = vmatpush1.msra.mxu0 0.0
        %2052 = vmatprep.subr.mxu0 0.0
        %2053 = vmatpush1.msra.mxu0 0.0
        %2054 = vmatprep.subr.mxu0 0.0
        %2055 = vmatpush1.msra.mxu0 0.0
        %2056 = vmatprep.subr.mxu0 0.0
        %2057 = vmatpush1.msra.mxu0 0.0
        %2058 = vmatprep.subr.mxu0 0.0
        %2059 = vmatpush1.msra.mxu0 0.0
        %2060 = vmatprep.subr.mxu0 0.0
        %2061 = vmatpush1.msra.mxu0 0.0
        %2062 = vmatprep.subr.mxu0 0.0
        %2063 = vmatpush1.msra.mxu0 0.0
        %2064 = vmatprep.subr.mxu0 0.0
        %2065 = vmatpush1.msra.mxu0 0.0
        %2066 = vmatprep.subr.mxu0 0.0
        %2067 = vmatpush1.msra.mxu0 0.0
        %2068 = vmatprep.subr.mxu0 0.0
        %2069 = vmatpush1.msra.mxu0 0.0
        %2070 = vmatprep.subr.mxu0 0.0
        %2071 = vmatpush1.msra.mxu0 0.0
        %2072 = vmatprep.subr.mxu0 0.0
        %2073 = vmatpush1.msra.mxu0 0.0
        %2074 = vmatprep.subr.mxu0 0.0
        %2075 = vmatpush1.msra.mxu0 0.0
        %2076 = vmatprep.subr.mxu0 0.0
        %2077 = vmatpush1.msra.mxu0 0.0
        %2078 = vmatprep.subr.mxu0 0.0
        %2079 = vmatpush1.msra.mxu0 0.0
        %2080 = vmatprep.subr.mxu0 0.0
        %2081 = vmatpush1.msra.mxu0 0.0
        %2082 = vmatprep.subr.mxu0 0.0
        %2083 = vmatpush1.msra.mxu0 0.0
        %2084 = vmatprep.subr.mxu0 0.0
        %2085 = vmatpush1.msra.mxu0 0.0
        %2086 = vmatprep.subr.mxu0 0.0
        %2087 = vmatpush1.msra.mxu0 0.0
        %2088 = vmatprep.subr.mxu0 0.0
        %2089 = vmatpush1.msra.mxu0 0.0
        %2090 = vmatprep.subr.mxu0 0.0
        %2091 = vmatpush1.msra.mxu0 0.0
        %2092 = vmatprep.subr.mxu0 0.0
        %2093 = vmatpush1.msra.mxu0 0.0
        %2094 = vmatprep.subr.mxu0 0.0
        %2095 = vmatpush1.msra.mxu0 0.0
        %2096 = vmatprep.subr.mxu0 0.0
        %2097 = vmatpush1.msra.mxu0 0.0
        %2098 = vmatprep.subr.mxu0 0.0
        %2099 = vmatpush1.msra.mxu0 0.0
        %2100 = vmatprep.subr.mxu0 0.0
        %2101 = vmatpush1.msra.mxu0 0.0
        %2102 = vmatprep.subr.mxu0 0.0
        %2103 = vmatpush1.msra.mxu0 0.0
        %2104 = vmatprep.subr.mxu0 0.0
        %2105 = vmatpush1.msra.mxu0 0.0
        %2106 = vmatprep.subr.mxu0 0.0
        %2107 = vmatpush1.msra.mxu0 0.0
        %2108 = vmatprep.mubr.f32.mxu0 0.0
        %2109 = vmatmul.mubr.f32.gmra.mrb[0].mxu0 %v2039
        %v2110 = vpop.f32.mrb[0].mxu0
        %v2111 = vadd.f32 0.0, %v2110
        %v2112 = vpop.f32.mrb[0].mxu0
        %2113 = vmatprep.mubr.f32.mxu0 0.0
        %2114 = vmatmul.mubr.f32.gmra.mrb[0].mxu0 %v2042
        %v2115 = vpop.f32.mrb[0].mxu0
        %v2116 = vadd.f32 0.0, %v2115
        %v2117 = vpop.f32.mrb[0].mxu0
        %2118 = vdwg.mxu0
        %v2119 = vadd.f32 %v2027, %v2111
        %v2120 = vadd.f32 %v2032, %v2116
        %v2121 = vld [vmem:[%s10] sm:$0xff]
        %v2122 = vld [vmem:[%s10 + $0x8] sm:$0xff]
        %2124 = vset.pattern.permute.xlu0 0
        %2125 = vperm.xlu0 %2124, %v2121
        %v2126 = vpop.permute.xlu0 %2125
        %2129 = vset.pattern.permute.xlu0 0
        %2130 = vperm.xlu0 %2129, %v2122
        %v2131 = vpop.permute.xlu0 %2130
        %v2133 = vmul.f32 %v2119, %v2126
        %v2134 = vmul.f32 %v2120, %v2131
        %s2135 = scalar_lea.vmem %s10, 16
        %v2136 = vld [vmem:[%s2135] sm:$0xff]
        %v2137 = vld [vmem:[%s2135 + $0x8] sm:$0xff]
        %2139 = vset.pattern.permute.xlu0 0
        %2140 = vperm.xlu0 %2139, %v2136
        %v2141 = vpop.permute.xlu0 %2140
        %2144 = vset.pattern.permute.xlu0 0
        %2145 = vperm.xlu0 %2144, %v2137
        %v2146 = vpop.permute.xlu0 %2145
        %v2148 = vadd.f32 %v2133, %v2141
        %v2149 = vadd.f32 %v2134, %v2146
        %v2150 = vmax.f32 %v2148, 0.0
        %v2151 = vmax.f32 %v2149, 0.0
        %v2152 = vld [vmem:[%s8] sm:$0xff]
        %v2153 = vld [vmem:[%s8 + $0x8] sm:$0xff]
        %s2154 = scalar_lea.vmem %s8, 16
        %v2155 = vld [vmem:[%s2154] sm:$0xff]
        %v2156 = vld [vmem:[%s2154 + $0x8] sm:$0xff]
        %v2158 = vsel %vm1400, %v2155, 0
        %v2161 = vsel %vm1400, %v2156, 0
        %2163 = vmatprep.subr.mxu0 0.0
        %2164 = vmatpush1.msra.mxu0 %v1790
        %2165 = vmatprep.subr.mxu0 0.0
        %2166 = vmatpush1.msra.mxu0 0.0
        %2167 = vmatprep.subr.mxu0 0.0
        %2168 = vmatpush1.msra.mxu0 0.0
        %2169 = vmatprep.subr.mxu0 0.0
        %2170 = vmatpush1.msra.mxu0 0.0
        %2171 = vmatprep.subr.mxu0 0.0
        %2172 = vmatpush1.msra.mxu0 0.0
        %2173 = vmatprep.subr.mxu0 0.0
        %2174 = vmatpush1.msra.mxu0 0.0
        %2175 = vmatprep.subr.mxu0 0.0
        %2176 = vmatpush1.msra.mxu0 0.0
        %2177 = vmatprep.subr.mxu0 0.0
        %2178 = vmatpush1.msra.mxu0 0.0
        %2179 = vmatprep.subr.mxu0 0.0
        %2180 = vmatpush1.msra.mxu0 0.0
        %2181 = vmatprep.subr.mxu0 0.0
        %2182 = vmatpush1.msra.mxu0 0.0
        %2183 = vmatprep.subr.mxu0 0.0
        %2184 = vmatpush1.msra.mxu0 0.0
        %2185 = vmatprep.subr.mxu0 0.0
        %2186 = vmatpush1.msra.mxu0 0.0
        %2187 = vmatprep.subr.mxu0 0.0
        %2188 = vmatpush1.msra.mxu0 0.0
        %2189 = vmatprep.subr.mxu0 0.0
        %2190 = vmatpush1.msra.mxu0 0.0
        %2191 = vmatprep.subr.mxu0 0.0
        %2192 = vmatpush1.msra.mxu0 0.0
        %2193 = vmatprep.subr.mxu0 0.0
        %2194 = vmatpush1.msra.mxu0 0.0
        %2195 = vmatprep.subr.mxu0 0.0
        %2196 = vmatpush1.msra.mxu0 0.0
        %2197 = vmatprep.subr.mxu0 0.0
        %2198 = vmatpush1.msra.mxu0 0.0
        %2199 = vmatprep.subr.mxu0 0.0
        %2200 = vmatpush1.msra.mxu0 0.0
        %2201 = vmatprep.subr.mxu0 0.0
        %2202 = vmatpush1.msra.mxu0 0.0
        %2203 = vmatprep.subr.mxu0 0.0
        %2204 = vmatpush1.msra.mxu0 0.0
        %2205 = vmatprep.subr.mxu0 0.0
        %2206 = vmatpush1.msra.mxu0 0.0
        %2207 = vmatprep.subr.mxu0 0.0
        %2208 = vmatpush1.msra.mxu0 0.0
        %2209 = vmatprep.subr.mxu0 0.0
        %2210 = vmatpush1.msra.mxu0 0.0
        %2211 = vmatprep.subr.mxu0 0.0
        %2212 = vmatpush1.msra.mxu0 0.0
        %2213 = vmatprep.subr.mxu0 0.0
        %2214 = vmatpush1.msra.mxu0 0.0
        %2215 = vmatprep.subr.mxu0 0.0
        %2216 = vmatpush1.msra.mxu0 0.0
        %2217 = vmatprep.subr.mxu0 0.0
        %2218 = vmatpush1.msra.mxu0 0.0
        %2219 = vmatprep.subr.mxu0 0.0
        %2220 = vmatpush1.msra.mxu0 0.0
        %2221 = vmatprep.subr.mxu0 0.0
        %2222 = vmatpush1.msra.mxu0 0.0
        %2223 = vmatprep.subr.mxu0 0.0
        %2224 = vmatpush1.msra.mxu0 0.0
        %2225 = vmatprep.subr.mxu0 0.0
        %2226 = vmatpush1.msra.mxu0 0.0
        %2227 = vmatprep.mubr.f32.mxu0 0.0
        %2228 = vmatmul.mubr.f32.gmra.mrb[0].mxu0 %v2158
        %v2229 = vpop.f32.mrb[0].mxu0
        %v2230 = vadd.f32 0.0, %v2229
        %v2231 = vpop.f32.mrb[0].mxu0
        %2232 = vmatprep.mubr.f32.mxu0 0.0
        %2233 = vmatmul.mubr.f32.gmra.mrb[0].mxu0 %v2161
        %v2234 = vpop.f32.mrb[0].mxu0
        %v2235 = vadd.f32 0.0, %v2234
        %v2236 = vpop.f32.mrb[0].mxu0
        %2237 = vdwg.mxu0
        %v2239 = vsel %vm1400, %v2152, 0
        %v2242 = vsel %vm1400, %v2153, 0
        %2244 = vmatprep.subr.mxu0 0.0
        %2245 = vmatpush1.msra.mxu0 %v1715
        %2246 = vmatprep.subr.mxu0 0.0
        %2247 = vmatpush1.msra.mxu0 0.0
        %2248 = vmatprep.subr.mxu0 0.0
        %2249 = vmatpush1.msra.mxu0 0.0
        %2250 = vmatprep.subr.mxu0 0.0
        %2251 = vmatpush1.msra.mxu0 0.0
        %2252 = vmatprep.subr.mxu0 0.0
        %2253 = vmatpush1.msra.mxu0 0.0
        %2254 = vmatprep.subr.mxu0 0.0
        %2255 = vmatpush1.msra.mxu0 0.0
        %2256 = vmatprep.subr.mxu0 0.0
        %2257 = vmatpush1.msra.mxu0 0.0
        %2258 = vmatprep.subr.mxu0 0.0
        %2259 = vmatpush1.msra.mxu0 0.0
        %2260 = vmatprep.subr.mxu0 0.0
        %2261 = vmatpush1.msra.mxu0 0.0
        %2262 = vmatprep.subr.mxu0 0.0
        %2263 = vmatpush1.msra.mxu0 0.0
        %2264 = vmatprep.subr.mxu0 0.0
        %2265 = vmatpush1.msra.mxu0 0.0
        %2266 = vmatprep.subr.mxu0 0.0
        %2267 = vmatpush1.msra.mxu0 0.0
        %2268 = vmatprep.subr.mxu0 0.0
        %2269 = vmatpush1.msra.mxu0 0.0
        %2270 = vmatprep.subr.mxu0 0.0
        %2271 = vmatpush1.msra.mxu0 0.0
        %2272 = vmatprep.subr.mxu0 0.0
        %2273 = vmatpush1.msra.mxu0 0.0
        %2274 = vmatprep.subr.mxu0 0.0
        %2275 = vmatpush1.msra.mxu0 0.0
        %2276 = vmatprep.subr.mxu0 0.0
        %2277 = vmatpush1.msra.mxu0 0.0
        %2278 = vmatprep.subr.mxu0 0.0
        %2279 = vmatpush1.msra.mxu0 0.0
        %2280 = vmatprep.subr.mxu0 0.0
        %2281 = vmatpush1.msra.mxu0 0.0
        %2282 = vmatprep.subr.mxu0 0.0
        %2283 = vmatpush1.msra.mxu0 0.0
        %2284 = vmatprep.subr.mxu0 0.0
        %2285 = vmatpush1.msra.mxu0 0.0
        %2286 = vmatprep.subr.mxu0 0.0
        %2287 = vmatpush1.msra.mxu0 0.0
        %2288 = vmatprep.subr.mxu0 0.0
        %2289 = vmatpush1.msra.mxu0 0.0
        %2290 = vmatprep.subr.mxu0 0.0
        %2291 = vmatpush1.msra.mxu0 0.0
        %2292 = vmatprep.subr.mxu0 0.0
        %2293 = vmatpush1.msra.mxu0 0.0
        %2294 = vmatprep.subr.mxu0 0.0
        %2295 = vmatpush1.msra.mxu0 0.0
        %2296 = vmatprep.subr.mxu0 0.0
        %2297 = vmatpush1.msra.mxu0 0.0
        %2298 = vmatprep.subr.mxu0 0.0
        %2299 = vmatpush1.msra.mxu0 0.0
        %2300 = vmatprep.subr.mxu0 0.0
        %2301 = vmatpush1.msra.mxu0 0.0
        %2302 = vmatprep.subr.mxu0 0.0
        %2303 = vmatpush1.msra.mxu0 0.0
        %2304 = vmatprep.subr.mxu0 0.0
        %2305 = vmatpush1.msra.mxu0 0.0
        %2306 = vmatprep.subr.mxu0 0.0
        %2307 = vmatpush1.msra.mxu0 0.0
        %2308 = vmatprep.mubr.f32.mxu0 0.0
        %2309 = vmatmul.mubr.f32.gmra.mrb[0].mxu0 %v2239
        %v2310 = vpop.f32.mrb[0].mxu0
        %v2311 = vadd.f32 %v2230, %v2310
        %v2312 = vpop.f32.mrb[0].mxu0
        %2313 = vmatprep.mubr.f32.mxu0 0.0
        %2314 = vmatmul.mubr.f32.gmra.mrb[0].mxu0 %v2242
        %v2315 = vpop.f32.mrb[0].mxu0
        %v2316 = vadd.f32 %v2235, %v2315
        %v2317 = vpop.f32.mrb[0].mxu0
        %2318 = vdwg.mxu0
        %s2319 = scalar_lea.vmem %s8, 32
        %v2320 = vld [vmem:[%s2319] sm:$0xff]
        %v2321 = vld [vmem:[%s2319 + $0x8] sm:$0xff]
        %v2323 = vsel %vm1400, %v2320, 0
        %v2326 = vsel %vm1400, %v2321, 0
        %2328 = vmatprep.subr.mxu0 0.0
        %2329 = vmatpush1.msra.mxu0 %v1865
        %2330 = vmatprep.subr.mxu0 0.0
        %2331 = vmatpush1.msra.mxu0 0.0
        %2332 = vmatprep.subr.mxu0 0.0
        %2333 = vmatpush1.msra.mxu0 0.0
        %2334 = vmatprep.subr.mxu0 0.0
        %2335 = vmatpush1.msra.mxu0 0.0
        %2336 = vmatprep.subr.mxu0 0.0
        %2337 = vmatpush1.msra.mxu0 0.0
        %2338 = vmatprep.subr.mxu0 0.0
        %2339 = vmatpush1.msra.mxu0 0.0
        %2340 = vmatprep.subr.mxu0 0.0
        %2341 = vmatpush1.msra.mxu0 0.0
        %2342 = vmatprep.subr.mxu0 0.0
        %2343 = vmatpush1.msra.mxu0 0.0
        %2344 = vmatprep.subr.mxu0 0.0
        %2345 = vmatpush1.msra.mxu0 0.0
        %2346 = vmatprep.subr.mxu0 0.0
        %2347 = vmatpush1.msra.mxu0 0.0
        %2348 = vmatprep.subr.mxu0 0.0
        %2349 = vmatpush1.msra.mxu0 0.0
        %2350 = vmatprep.subr.mxu0 0.0
        %2351 = vmatpush1.msra.mxu0 0.0
        %2352 = vmatprep.subr.mxu0 0.0
        %2353 = vmatpush1.msra.mxu0 0.0
        %2354 = vmatprep.subr.mxu0 0.0
        %2355 = vmatpush1.msra.mxu0 0.0
        %2356 = vmatprep.subr.mxu0 0.0
        %2357 = vmatpush1.msra.mxu0 0.0
        %2358 = vmatprep.subr.mxu0 0.0
        %2359 = vmatpush1.msra.mxu0 0.0
        %2360 = vmatprep.subr.mxu0 0.0
        %2361 = vmatpush1.msra.mxu0 0.0
        %2362 = vmatprep.subr.mxu0 0.0
        %2363 = vmatpush1.msra.mxu0 0.0
        %2364 = vmatprep.subr.mxu0 0.0
        %2365 = vmatpush1.msra.mxu0 0.0
        %2366 = vmatprep.subr.mxu0 0.0
        %2367 = vmatpush1.msra.mxu0 0.0
        %2368 = vmatprep.subr.mxu0 0.0
        %2369 = vmatpush1.msra.mxu0 0.0
        %2370 = vmatprep.subr.mxu0 0.0
        %2371 = vmatpush1.msra.mxu0 0.0
        %2372 = vmatprep.subr.mxu0 0.0
        %2373 = vmatpush1.msra.mxu0 0.0
        %2374 = vmatprep.subr.mxu0 0.0
        %2375 = vmatpush1.msra.mxu0 0.0
        %2376 = vmatprep.subr.mxu0 0.0
        %2377 = vmatpush1.msra.mxu0 0.0
        %2378 = vmatprep.subr.mxu0 0.0
        %2379 = vmatpush1.msra.mxu0 0.0
        %2380 = vmatprep.subr.mxu0 0.0
        %2381 = vmatpush1.msra.mxu0 0.0
        %2382 = vmatprep.subr.mxu0 0.0
        %2383 = vmatpush1.msra.mxu0 0.0
        %2384 = vmatprep.subr.mxu0 0.0
        %2385 = vmatpush1.msra.mxu0 0.0
        %2386 = vmatprep.subr.mxu0 0.0
        %2387 = vmatpush1.msra.mxu0 0.0
        %2388 = vmatprep.subr.mxu0 0.0
        %2389 = vmatpush1.msra.mxu0 0.0
        %2390 = vmatprep.subr.mxu0 0.0
        %2391 = vmatpush1.msra.mxu0 0.0
        %2392 = vmatprep.mubr.f32.mxu0 0.0
        %2393 = vmatmul.mubr.f32.gmra.mrb[0].mxu0 %v2323
        %v2394 = vpop.f32.mrb[0].mxu0
        %v2395 = vadd.f32 0.0, %v2394
        %v2396 = vpop.f32.mrb[0].mxu0
        %2397 = vmatprep.mubr.f32.mxu0 0.0
        %2398 = vmatmul.mubr.f32.gmra.mrb[0].mxu0 %v2326
        %v2399 = vpop.f32.mrb[0].mxu0
        %v2400 = vadd.f32 0.0, %v2399
        %v2401 = vpop.f32.mrb[0].mxu0
        %2402 = vdwg.mxu0
        %v2403 = vadd.f32 %v2311, %v2395
        %v2404 = vadd.f32 %v2316, %v2400
        %s2405 = scalar_lea.vmem %s10, 32
        %v2406 = vld [vmem:[%s2405] sm:$0xff]
        %v2407 = vld [vmem:[%s2405 + $0x8] sm:$0xff]
        %2409 = vset.pattern.permute.xlu0 0
        %2410 = vperm.xlu0 %2409, %v2406
        %v2411 = vpop.permute.xlu0 %2410
        %2414 = vset.pattern.permute.xlu0 0
        %2415 = vperm.xlu0 %2414, %v2407
        %v2416 = vpop.permute.xlu0 %2415
        %v2418 = vmul.f32 %v2403, %v2411
        %v2419 = vmul.f32 %v2404, %v2416
        %s2420 = scalar_lea.vmem %s10, 48
        %v2421 = vld [vmem:[%s2420] sm:$0xff]
        %v2422 = vld [vmem:[%s2420 + $0x8] sm:$0xff]
        %2424 = vset.pattern.permute.xlu0 0
        %2425 = vperm.xlu0 %2424, %v2421
        %v2426 = vpop.permute.xlu0 %2425
        %2429 = vset.pattern.permute.xlu0 0
        %2430 = vperm.xlu0 %2429, %v2422
        %v2431 = vpop.permute.xlu0 %2430
        %v2433 = vadd.f32 %v2418, %v2426
        %v2434 = vadd.f32 %v2419, %v2431
        %v2435 = vld [vmem:[%s12] sm:$0xff]
        %v2436 = vld [vmem:[%s12 + $0x8] sm:$0xff]
        %vm2437 = vcmask 130048
        %v2439 = vsel %vm2437, %v2150, 0
        %v2442 = vsel %vm2437, %v2151, 0
        %2444 = vmatprep.subr.mxu0 0.0
        %2445 = vmatpush1.msra.mxu0 %v2435
        %2446 = vmatprep.subr.mxu0 0.0
        %2447 = vmatpush1.msra.mxu0 %v2436
        %2448 = vmatprep.subr.mxu0 0.0
        %2449 = vmatpush1.msra.mxu0 0.0
        %2450 = vmatprep.subr.mxu0 0.0
        %2451 = vmatpush1.msra.mxu0 0.0
        %2452 = vmatprep.subr.mxu0 0.0
        %2453 = vmatpush1.msra.mxu0 0.0
        %2454 = vmatprep.subr.mxu0 0.0
        %2455 = vmatpush1.msra.mxu0 0.0
        %2456 = vmatprep.subr.mxu0 0.0
        %2457 = vmatpush1.msra.mxu0 0.0
        %2458 = vmatprep.subr.mxu0 0.0
        %2459 = vmatpush1.msra.mxu0 0.0
        %2460 = vmatprep.subr.mxu0 0.0
        %2461 = vmatpush1.msra.mxu0 0.0
        %2462 = vmatprep.subr.mxu0 0.0
        %2463 = vmatpush1.msra.mxu0 0.0
        %2464 = vmatprep.subr.mxu0 0.0
        %2465 = vmatpush1.msra.mxu0 0.0
        %2466 = vmatprep.subr.mxu0 0.0
        %2467 = vmatpush1.msra.mxu0 0.0
        %2468 = vmatprep.subr.mxu0 0.0
        %2469 = vmatpush1.msra.mxu0 0.0
        %2470 = vmatprep.subr.mxu0 0.0
        %2471 = vmatpush1.msra.mxu0 0.0
        %2472 = vmatprep.subr.mxu0 0.0
        %2473 = vmatpush1.msra.mxu0 0.0
        %2474 = vmatprep.subr.mxu0 0.0
        %2475 = vmatpush1.msra.mxu0 0.0
        %2476 = vmatprep.subr.mxu0 0.0
        %2477 = vmatpush1.msra.mxu0 0.0
        %2478 = vmatprep.subr.mxu0 0.0
        %2479 = vmatpush1.msra.mxu0 0.0
        %2480 = vmatprep.subr.mxu0 0.0
        %2481 = vmatpush1.msra.mxu0 0.0
        %2482 = vmatprep.subr.mxu0 0.0
        %2483 = vmatpush1.msra.mxu0 0.0
        %2484 = vmatprep.subr.mxu0 0.0
        %2485 = vmatpush1.msra.mxu0 0.0
        %2486 = vmatprep.subr.mxu0 0.0
        %2487 = vmatpush1.msra.mxu0 0.0
        %2488 = vmatprep.subr.mxu0 0.0
        %2489 = vmatpush1.msra.mxu0 0.0
        %2490 = vmatprep.subr.mxu0 0.0
        %2491 = vmatpush1.msra.mxu0 0.0
        %2492 = vmatprep.subr.mxu0 0.0
        %2493 = vmatpush1.msra.mxu0 0.0
        %2494 = vmatprep.subr.mxu0 0.0
        %2495 = vmatpush1.msra.mxu0 0.0
        %2496 = vmatprep.subr.mxu0 0.0
        %2497 = vmatpush1.msra.mxu0 0.0
        %2498 = vmatprep.subr.mxu0 0.0
        %2499 = vmatpush1.msra.mxu0 0.0
        %2500 = vmatprep.subr.mxu0 0.0
        %2501 = vmatpush1.msra.mxu0 0.0
        %2502 = vmatprep.subr.mxu0 0.0
        %2503 = vmatpush1.msra.mxu0 0.0
        %2504 = vmatprep.subr.mxu0 0.0
        %2505 = vmatpush1.msra.mxu0 0.0
        %2506 = vmatprep.subr.mxu0 0.0
        %2507 = vmatpush1.msra.mxu0 0.0
        %2508 = vmatprep.mubr.f32.mxu0 0.0
        %2509 = vmatmul.mubr.f32.gmra.mrb[0].mxu0 %v2439
        %v2510 = vpop.f32.mrb[0].mxu0
        %v2511 = vadd.f32 0.0, %v2510
        %v2512 = vpop.f32.mrb[0].mxu0
        %2513 = vmatprep.mubr.f32.mxu0 0.0
        %2514 = vmatmul.mubr.f32.gmra.mrb[0].mxu0 %v2442
        %v2515 = vpop.f32.mrb[0].mxu0
        %v2516 = vadd.f32 0.0, %v2515
        %v2517 = vpop.f32.mrb[0].mxu0
        %2518 = vdwg.mxu0
        %s2519 = scalar_lea.vmem %s12, 16
        %v2520 = vld [vmem:[%s2519] sm:$0xff]
        %v2521 = vld [vmem:[%s2519 + $0x8] sm:$0xff]
        %2522 = vmatprep.subr.mxu0 0.0
        %2523 = vmatpush1.msra.mxu0 %v2520
        %2524 = vmatprep.subr.mxu0 0.0
        %2525 = vmatpush1.msra.mxu0 %v2521
        %2526 = vmatprep.subr.mxu0 0.0
        %2527 = vmatpush1.msra.mxu0 0.0
        %2528 = vmatprep.subr.mxu0 0.0
        %2529 = vmatpush1.msra.mxu0 0.0
        %2530 = vmatprep.subr.mxu0 0.0
        %2531 = vmatpush1.msra.mxu0 0.0
        %2532 = vmatprep.subr.mxu0 0.0
        %2533 = vmatpush1.msra.mxu0 0.0
        %2534 = vmatprep.subr.mxu0 0.0
        %2535 = vmatpush1.msra.mxu0 0.0
        %2536 = vmatprep.subr.mxu0 0.0
        %2537 = vmatpush1.msra.mxu0 0.0
        %2538 = vmatprep.subr.mxu0 0.0
        %2539 = vmatpush1.msra.mxu0 0.0
        %2540 = vmatprep.subr.mxu0 0.0
        %2541 = vmatpush1.msra.mxu0 0.0
        %2542 = vmatprep.subr.mxu0 0.0
        %2543 = vmatpush1.msra.mxu0 0.0
        %2544 = vmatprep.subr.mxu0 0.0
        %2545 = vmatpush1.msra.mxu0 0.0
        %2546 = vmatprep.subr.mxu0 0.0
        %2547 = vmatpush1.msra.mxu0 0.0
        %2548 = vmatprep.subr.mxu0 0.0
        %2549 = vmatpush1.msra.mxu0 0.0
        %2550 = vmatprep.subr.mxu0 0.0
        %2551 = vmatpush1.msra.mxu0 0.0
        %2552 = vmatprep.subr.mxu0 0.0
        %2553 = vmatpush1.msra.mxu0 0.0
        %2554 = vmatprep.subr.mxu0 0.0
        %2555 = vmatpush1.msra.mxu0 0.0
        %2556 = vmatprep.subr.mxu0 0.0
        %2557 = vmatpush1.msra.mxu0 0.0
        %2558 = vmatprep.subr.mxu0 0.0
        %2559 = vmatpush1.msra.mxu0 0.0
        %2560 = vmatprep.subr.mxu0 0.0
        %2561 = vmatpush1.msra.mxu0 0.0
        %2562 = vmatprep.subr.mxu0 0.0
        %2563 = vmatpush1.msra.mxu0 0.0
        %2564 = vmatprep.subr.mxu0 0.0
        %2565 = vmatpush1.msra.mxu0 0.0
        %2566 = vmatprep.subr.mxu0 0.0
        %2567 = vmatpush1.msra.mxu0 0.0
        %2568 = vmatprep.subr.mxu0 0.0
        %2569 = vmatpush1.msra.mxu0 0.0
        %2570 = vmatprep.subr.mxu0 0.0
        %2571 = vmatpush1.msra.mxu0 0.0
        %2572 = vmatprep.subr.mxu0 0.0
        %2573 = vmatpush1.msra.mxu0 0.0
        %2574 = vmatprep.subr.mxu0 0.0
        %2575 = vmatpush1.msra.mxu0 0.0
        %2576 = vmatprep.subr.mxu0 0.0
        %2577 = vmatpush1.msra.mxu0 0.0
        %2578 = vmatprep.subr.mxu0 0.0
        %2579 = vmatpush1.msra.mxu0 0.0
        %2580 = vmatprep.subr.mxu0 0.0
        %2581 = vmatpush1.msra.mxu0 0.0
        %2582 = vmatprep.subr.mxu0 0.0
        %2583 = vmatpush1.msra.mxu0 0.0
        %2584 = vmatprep.subr.mxu0 0.0
        %2585 = vmatpush1.msra.mxu0 0.0
        %2586 = vmatprep.mubr.f32.mxu0 0.0
        %2587 = vmatmul.mubr.f32.gmra.mrb[0].mxu0 %v2439
        %v2588 = vpop.f32.mrb[0].mxu0
        %v2589 = vadd.f32 0.0, %v2588
        %v2590 = vpop.f32.mrb[0].mxu0
        %2591 = vmatprep.mubr.f32.mxu0 0.0
        %2592 = vmatmul.mubr.f32.gmra.mrb[0].mxu0 %v2442
        %v2593 = vpop.f32.mrb[0].mxu0
        %v2594 = vadd.f32 0.0, %v2593
        %v2595 = vpop.f32.mrb[0].mxu0
        %2596 = vdwg.mxu0
        %s2597 = scalar_lea.vmem %s12, 32
        %v2598 = vld [vmem:[%s2597] sm:$0xff]
        %v2599 = vld [vmem:[%s2597 + $0x8] sm:$0xff]
        %2600 = vmatprep.subr.mxu0 0.0
        %2601 = vmatpush1.msra.mxu0 %v2598
        %2602 = vmatprep.subr.mxu0 0.0
        %2603 = vmatpush1.msra.mxu0 %v2599
        %2604 = vmatprep.subr.mxu0 0.0
        %2605 = vmatpush1.msra.mxu0 0.0
        %2606 = vmatprep.subr.mxu0 0.0
        %2607 = vmatpush1.msra.mxu0 0.0
        %2608 = vmatprep.subr.mxu0 0.0
        %2609 = vmatpush1.msra.mxu0 0.0
        %2610 = vmatprep.subr.mxu0 0.0
        %2611 = vmatpush1.msra.mxu0 0.0
        %2612 = vmatprep.subr.mxu0 0.0
        %2613 = vmatpush1.msra.mxu0 0.0
        %2614 = vmatprep.subr.mxu0 0.0
        %2615 = vmatpush1.msra.mxu0 0.0
        %2616 = vmatprep.subr.mxu0 0.0
        %2617 = vmatpush1.msra.mxu0 0.0
        %2618 = vmatprep.subr.mxu0 0.0
        %2619 = vmatpush1.msra.mxu0 0.0
        %2620 = vmatprep.subr.mxu0 0.0
        %2621 = vmatpush1.msra.mxu0 0.0
        %2622 = vmatprep.subr.mxu0 0.0
        %2623 = vmatpush1.msra.mxu0 0.0
        %2624 = vmatprep.subr.mxu0 0.0
        %2625 = vmatpush1.msra.mxu0 0.0
        %2626 = vmatprep.subr.mxu0 0.0
        %2627 = vmatpush1.msra.mxu0 0.0
        %2628 = vmatprep.subr.mxu0 0.0
        %2629 = vmatpush1.msra.mxu0 0.0
        %2630 = vmatprep.subr.mxu0 0.0
        %2631 = vmatpush1.msra.mxu0 0.0
        %2632 = vmatprep.subr.mxu0 0.0
        %2633 = vmatpush1.msra.mxu0 0.0
        %2634 = vmatprep.subr.mxu0 0.0
        %2635 = vmatpush1.msra.mxu0 0.0
        %2636 = vmatprep.subr.mxu0 0.0
        %2637 = vmatpush1.msra.mxu0 0.0
        %2638 = vmatprep.subr.mxu0 0.0
        %2639 = vmatpush1.msra.mxu0 0.0
        %2640 = vmatprep.subr.mxu0 0.0
        %2641 = vmatpush1.msra.mxu0 0.0
        %2642 = vmatprep.subr.mxu0 0.0
        %2643 = vmatpush1.msra.mxu0 0.0
        %2644 = vmatprep.subr.mxu0 0.0
        %2645 = vmatpush1.msra.mxu0 0.0
        %2646 = vmatprep.subr.mxu0 0.0
        %2647 = vmatpush1.msra.mxu0 0.0
        %2648 = vmatprep.subr.mxu0 0.0
        %2649 = vmatpush1.msra.mxu0 0.0
        %2650 = vmatprep.subr.mxu0 0.0
        %2651 = vmatpush1.msra.mxu0 0.0
        %2652 = vmatprep.subr.mxu0 0.0
        %2653 = vmatpush1.msra.mxu0 0.0
        %2654 = vmatprep.subr.mxu0 0.0
        %2655 = vmatpush1.msra.mxu0 0.0
        %2656 = vmatprep.subr.mxu0 0.0
        %2657 = vmatpush1.msra.mxu0 0.0
        %2658 = vmatprep.subr.mxu0 0.0
        %2659 = vmatpush1.msra.mxu0 0.0
        %2660 = vmatprep.subr.mxu0 0.0
        %2661 = vmatpush1.msra.mxu0 0.0
        %2662 = vmatprep.subr.mxu0 0.0
        %2663 = vmatpush1.msra.mxu0 0.0
        %2664 = vmatprep.mubr.f32.mxu0 0.0
        %2665 = vmatmul.mubr.f32.gmra.mrb[0].mxu0 %v2439
        %v2666 = vpop.f32.mrb[0].mxu0
        %v2667 = vadd.f32 0.0, %v2666
        %v2668 = vpop.f32.mrb[0].mxu0
        %2669 = vmatprep.mubr.f32.mxu0 0.0
        %2670 = vmatmul.mubr.f32.gmra.mrb[0].mxu0 %v2442
        %v2671 = vpop.f32.mrb[0].mxu0
        %v2672 = vadd.f32 0.0, %v2671
        %v2673 = vpop.f32.mrb[0].mxu0
        %2674 = vdwg.mxu0
        %v2675 = vld [vmem:[%s9] sm:$0xff]
        %v2676 = vld [vmem:[%s9 + $0x8] sm:$0xff]
        %s2677 = scalar_lea.vmem %s9, 16
        %v2678 = vld [vmem:[%s2677] sm:$0xff]
        %v2679 = vld [vmem:[%s2677 + $0x8] sm:$0xff]
        %v2681 = vsel %vm2437, %v2678, 0
        %v2684 = vsel %vm2437, %v2679, 0
        %2686 = vmatprep.subr.mxu0 0.0
        %2687 = vmatpush1.msra.mxu0 %v2589
        %2688 = vmatprep.subr.mxu0 0.0
        %2689 = vmatpush1.msra.mxu0 %v2594
        %2690 = vmatprep.subr.mxu0 0.0
        %2691 = vmatpush1.msra.mxu0 0.0
        %2692 = vmatprep.subr.mxu0 0.0
        %2693 = vmatpush1.msra.mxu0 0.0
        %2694 = vmatprep.subr.mxu0 0.0
        %2695 = vmatpush1.msra.mxu0 0.0
        %2696 = vmatprep.subr.mxu0 0.0
        %2697 = vmatpush1.msra.mxu0 0.0
        %2698 = vmatprep.subr.mxu0 0.0
        %2699 = vmatpush1.msra.mxu0 0.0
        %2700 = vmatprep.subr.mxu0 0.0
        %2701 = vmatpush1.msra.mxu0 0.0
        %2702 = vmatprep.subr.mxu0 0.0
        %2703 = vmatpush1.msra.mxu0 0.0
        %2704 = vmatprep.subr.mxu0 0.0
        %2705 = vmatpush1.msra.mxu0 0.0
        %2706 = vmatprep.subr.mxu0 0.0
        %2707 = vmatpush1.msra.mxu0 0.0
        %2708 = vmatprep.subr.mxu0 0.0
        %2709 = vmatpush1.msra.mxu0 0.0
        %2710 = vmatprep.subr.mxu0 0.0
        %2711 = vmatpush1.msra.mxu0 0.0
        %2712 = vmatprep.subr.mxu0 0.0
        %2713 = vmatpush1.msra.mxu0 0.0
        %2714 = vmatprep.subr.mxu0 0.0
        %2715 = vmatpush1.msra.mxu0 0.0
        %2716 = vmatprep.subr.mxu0 0.0
        %2717 = vmatpush1.msra.mxu0 0.0
        %2718 = vmatprep.subr.mxu0 0.0
        %2719 = vmatpush1.msra.mxu0 0.0
        %2720 = vmatprep.subr.mxu0 0.0
        %2721 = vmatpush1.msra.mxu0 0.0
        %2722 = vmatprep.subr.mxu0 0.0
        %2723 = vmatpush1.msra.mxu0 0.0
        %2724 = vmatprep.subr.mxu0 0.0
        %2725 = vmatpush1.msra.mxu0 0.0
        %2726 = vmatprep.subr.mxu0 0.0
        %2727 = vmatpush1.msra.mxu0 0.0
        %2728 = vmatprep.subr.mxu0 0.0
        %2729 = vmatpush1.msra.mxu0 0.0
        %2730 = vmatprep.subr.mxu0 0.0
        %2731 = vmatpush1.msra.mxu0 0.0
        %2732 = vmatprep.subr.mxu0 0.0
        %2733 = vmatpush1.msra.mxu0 0.0
        %2734 = vmatprep.subr.mxu0 0.0
        %2735 = vmatpush1.msra.mxu0 0.0
        %2736 = vmatprep.subr.mxu0 0.0
        %2737 = vmatpush1.msra.mxu0 0.0
        %2738 = vmatprep.subr.mxu0 0.0
        %2739 = vmatpush1.msra.mxu0 0.0
        %2740 = vmatprep.subr.mxu0 0.0
        %2741 = vmatpush1.msra.mxu0 0.0
        %2742 = vmatprep.subr.mxu0 0.0
        %2743 = vmatpush1.msra.mxu0 0.0
        %2744 = vmatprep.subr.mxu0 0.0
        %2745 = vmatpush1.msra.mxu0 0.0
        %2746 = vmatprep.subr.mxu0 0.0
        %2747 = vmatpush1.msra.mxu0 0.0
        %2748 = vmatprep.subr.mxu0 0.0
        %2749 = vmatpush1.msra.mxu0 0.0
        %2750 = vmatprep.mubr.f32.mxu0 0.0
        %2751 = vmatmul.mubr.f32.gmra.mrb[0].mxu0 %v2681
        %v2752 = vpop.f32.mrb[0].mxu0
        %v2753 = vadd.f32 0.0, %v2752
        %v2754 = vpop.f32.mrb[0].mxu0
        %2755 = vmatprep.mubr.f32.mxu0 0.0
        %2756 = vmatmul.mubr.f32.gmra.mrb[0].mxu0 %v2684
        %v2757 = vpop.f32.mrb[0].mxu0
        %v2758 = vadd.f32 0.0, %v2757
        %v2759 = vpop.f32.mrb[0].mxu0
        %2760 = vdwg.mxu0
        %v2762 = vsel %vm2437, %v2675, 0
        %v2765 = vsel %vm2437, %v2676, 0
        %2767 = vmatprep.subr.mxu0 0.0
        %2768 = vmatpush1.msra.mxu0 %v2511
        %2769 = vmatprep.subr.mxu0 0.0
        %2770 = vmatpush1.msra.mxu0 %v2516
        %2771 = vmatprep.subr.mxu0 0.0
        %2772 = vmatpush1.msra.mxu0 0.0
        %2773 = vmatprep.subr.mxu0 0.0
        %2774 = vmatpush1.msra.mxu0 0.0
        %2775 = vmatprep.subr.mxu0 0.0
        %2776 = vmatpush1.msra.mxu0 0.0
        %2777 = vmatprep.subr.mxu0 0.0
        %2778 = vmatpush1.msra.mxu0 0.0
        %2779 = vmatprep.subr.mxu0 0.0
        %2780 = vmatpush1.msra.mxu0 0.0
        %2781 = vmatprep.subr.mxu0 0.0
        %2782 = vmatpush1.msra.mxu0 0.0
        %2783 = vmatprep.subr.mxu0 0.0
        %2784 = vmatpush1.msra.mxu0 0.0
        %2785 = vmatprep.subr.mxu0 0.0
        %2786 = vmatpush1.msra.mxu0 0.0
        %2787 = vmatprep.subr.mxu0 0.0
        %2788 = vmatpush1.msra.mxu0 0.0
        %2789 = vmatprep.subr.mxu0 0.0
        %2790 = vmatpush1.msra.mxu0 0.0
        %2791 = vmatprep.subr.mxu0 0.0
        %2792 = vmatpush1.msra.mxu0 0.0
        %2793 = vmatprep.subr.mxu0 0.0
        %2794 = vmatpush1.msra.mxu0 0.0
        %2795 = vmatprep.subr.mxu0 0.0
        %2796 = vmatpush1.msra.mxu0 0.0
        %2797 = vmatprep.subr.mxu0 0.0
        %2798 = vmatpush1.msra.mxu0 0.0
        %2799 = vmatprep.subr.mxu0 0.0
        %2800 = vmatpush1.msra.mxu0 0.0
        %2801 = vmatprep.subr.mxu0 0.0
        %2802 = vmatpush1.msra.mxu0 0.0
        %2803 = vmatprep.subr.mxu0 0.0
        %2804 = vmatpush1.msra.mxu0 0.0
        %2805 = vmatprep.subr.mxu0 0.0
        %2806 = vmatpush1.msra.mxu0 0.0
        %2807 = vmatprep.subr.mxu0 0.0
        %2808 = vmatpush1.msra.mxu0 0.0
        %2809 = vmatprep.subr.mxu0 0.0
        %2810 = vmatpush1.msra.mxu0 0.0
        %2811 = vmatprep.subr.mxu0 0.0
        %2812 = vmatpush1.msra.mxu0 0.0
        %2813 = vmatprep.subr.mxu0 0.0
        %2814 = vmatpush1.msra.mxu0 0.0
        %2815 = vmatprep.subr.mxu0 0.0
        %2816 = vmatpush1.msra.mxu0 0.0
        %2817 = vmatprep.subr.mxu0 0.0
        %2818 = vmatpush1.msra.mxu0 0.0
        %2819 = vmatprep.subr.mxu0 0.0
        %2820 = vmatpush1.msra.mxu0 0.0
        %2821 = vmatprep.subr.mxu0 0.0
        %2822 = vmatpush1.msra.mxu0 0.0
        %2823 = vmatprep.subr.mxu0 0.0
        %2824 = vmatpush1.msra.mxu0 0.0
        %2825 = vmatprep.subr.mxu0 0.0
        %2826 = vmatpush1.msra.mxu0 0.0
        %2827 = vmatprep.subr.mxu0 0.0
        %2828 = vmatpush1.msra.mxu0 0.0
        %2829 = vmatprep.subr.mxu0 0.0
        %2830 = vmatpush1.msra.mxu0 0.0
        %2831 = vmatprep.mubr.f32.mxu0 0.0
        %2832 = vmatmul.mubr.f32.gmra.mrb[0].mxu0 %v2762
        %v2833 = vpop.f32.mrb[0].mxu0
        %v2834 = vadd.f32 %v2753, %v2833
        %v2835 = vpop.f32.mrb[0].mxu0
        %2836 = vmatprep.mubr.f32.mxu0 0.0
        %2837 = vmatmul.mubr.f32.gmra.mrb[0].mxu0 %v2765
        %v2838 = vpop.f32.mrb[0].mxu0
        %v2839 = vadd.f32 %v2758, %v2838
        %v2840 = vpop.f32.mrb[0].mxu0
        %2841 = vdwg.mxu0
        %s2842 = scalar_lea.vmem %s9, 32
        %v2843 = vld [vmem:[%s2842] sm:$0xff]
        %v2844 = vld [vmem:[%s2842 + $0x8] sm:$0xff]
        %v2846 = vsel %vm2437, %v2843, 0
        %v2849 = vsel %vm2437, %v2844, 0
        %2851 = vmatprep.subr.mxu0 0.0
        %2852 = vmatpush1.msra.mxu0 %v2667
        %2853 = vmatprep.subr.mxu0 0.0
        %2854 = vmatpush1.msra.mxu0 %v2672
        %2855 = vmatprep.subr.mxu0 0.0
        %2856 = vmatpush1.msra.mxu0 0.0
        %2857 = vmatprep.subr.mxu0 0.0
        %2858 = vmatpush1.msra.mxu0 0.0
        %2859 = vmatprep.subr.mxu0 0.0
        %2860 = vmatpush1.msra.mxu0 0.0
        %2861 = vmatprep.subr.mxu0 0.0
        %2862 = vmatpush1.msra.mxu0 0.0
        %2863 = vmatprep.subr.mxu0 0.0
        %2864 = vmatpush1.msra.mxu0 0.0
        %2865 = vmatprep.subr.mxu0 0.0
        %2866 = vmatpush1.msra.mxu0 0.0
        %2867 = vmatprep.subr.mxu0 0.0
        %2868 = vmatpush1.msra.mxu0 0.0
        %2869 = vmatprep.subr.mxu0 0.0
        %2870 = vmatpush1.msra.mxu0 0.0
        %2871 = vmatprep.subr.mxu0 0.0
        %2872 = vmatpush1.msra.mxu0 0.0
        %2873 = vmatprep.subr.mxu0 0.0
        %2874 = vmatpush1.msra.mxu0 0.0
        %2875 = vmatprep.subr.mxu0 0.0
        %2876 = vmatpush1.msra.mxu0 0.0
        %2877 = vmatprep.subr.mxu0 0.0
        %2878 = vmatpush1.msra.mxu0 0.0
        %2879 = vmatprep.subr.mxu0 0.0
        %2880 = vmatpush1.msra.mxu0 0.0
        %2881 = vmatprep.subr.mxu0 0.0
        %2882 = vmatpush1.msra.mxu0 0.0
        %2883 = vmatprep.subr.mxu0 0.0
        %2884 = vmatpush1.msra.mxu0 0.0
        %2885 = vmatprep.subr.mxu0 0.0
        %2886 = vmatpush1.msra.mxu0 0.0
        %2887 = vmatprep.subr.mxu0 0.0
        %2888 = vmatpush1.msra.mxu0 0.0
        %2889 = vmatprep.subr.mxu0 0.0
        %2890 = vmatpush1.msra.mxu0 0.0
        %2891 = vmatprep.subr.mxu0 0.0
        %2892 = vmatpush1.msra.mxu0 0.0
        %2893 = vmatprep.subr.mxu0 0.0
        %2894 = vmatpush1.msra.mxu0 0.0
        %2895 = vmatprep.subr.mxu0 0.0
        %2896 = vmatpush1.msra.mxu0 0.0
        %2897 = vmatprep.subr.mxu0 0.0
        %2898 = vmatpush1.msra.mxu0 0.0
        %2899 = vmatprep.subr.mxu0 0.0
        %2900 = vmatpush1.msra.mxu0 0.0
        %2901 = vmatprep.subr.mxu0 0.0
        %2902 = vmatpush1.msra.mxu0 0.0
        %2903 = vmatprep.subr.mxu0 0.0
        %2904 = vmatpush1.msra.mxu0 0.0
        %2905 = vmatprep.subr.mxu0 0.0
        %2906 = vmatpush1.msra.mxu0 0.0
        %2907 = vmatprep.subr.mxu0 0.0
        %2908 = vmatpush1.msra.mxu0 0.0
        %2909 = vmatprep.subr.mxu0 0.0
        %2910 = vmatpush1.msra.mxu0 0.0
        %2911 = vmatprep.subr.mxu0 0.0
        %2912 = vmatpush1.msra.mxu0 0.0
        %2913 = vmatprep.subr.mxu0 0.0
        %2914 = vmatpush1.msra.mxu0 0.0
        %2915 = vmatprep.mubr.f32.mxu0 0.0
        %2916 = vmatmul.mubr.f32.gmra.mrb[0].mxu0 %v2846
        %v2917 = vpop.f32.mrb[0].mxu0
        %v2918 = vadd.f32 0.0, %v2917
        %v2919 = vpop.f32.mrb[0].mxu0
        %2920 = vmatprep.mubr.f32.mxu0 0.0
        %2921 = vmatmul.mubr.f32.gmra.mrb[0].mxu0 %v2849
        %v2922 = vpop.f32.mrb[0].mxu0
        %v2923 = vadd.f32 0.0, %v2922
        %v2924 = vpop.f32.mrb[0].mxu0
        %2925 = vdwg.mxu0
        %v2926 = vadd.f32 %v2834, %v2918
        %v2927 = vadd.f32 %v2839, %v2923
        %s2928 = scalar_lea.vmem %s10, 64
        %v2929 = vld [vmem:[%s2928] sm:$0xff]
        %v2930 = vld [vmem:[%s2928 + $0x8] sm:$0xff]
        %2932 = vset.pattern.permute.xlu0 0
        %2933 = vperm.xlu0 %2932, %v2929
        %v2934 = vpop.permute.xlu0 %2933
        %2937 = vset.pattern.permute.xlu0 0
        %2938 = vperm.xlu0 %2937, %v2930
        %v2939 = vpop.permute.xlu0 %2938
        %v2941 = vmul.f32 %v2926, %v2934
        %v2942 = vmul.f32 %v2927, %v2939
        %s2943 = scalar_lea.vmem %s10, 80
        %v2944 = vld [vmem:[%s2943] sm:$0xff]
        %v2945 = vld [vmem:[%s2943 + $0x8] sm:$0xff]
        %2947 = vset.pattern.permute.xlu0 0
        %2948 = vperm.xlu0 %2947, %v2944
        %v2949 = vpop.permute.xlu0 %2948
        %2952 = vset.pattern.permute.xlu0 0
        %2953 = vperm.xlu0 %2952, %v2945
        %v2954 = vpop.permute.xlu0 %2953
        %v2956 = vadd.f32 %v2941, %v2949
        %v2957 = vadd.f32 %v2942, %v2954
        %v2958 = vadd.f32 %v2956, %v2433
        %v2959 = vadd.f32 %v2957, %v2434
        %v2960 = vmax.f32 %v2958, 0.0
        %v2961 = vmax.f32 %v2959, 0.0
        %v2962 = vsel %vm2437, %v2960, 0.0
        %v2963 = vsel %vm2437, %v2961, 0.0
        %v2964 = vadd.f32 %v2962, %v2963
        %v2965 = vrot.slane %v2964, 4
        %v2966 = vadd.f32 %v2964, %v2965
        %v2967 = vrot.slane %v2966, 2
        %v2968 = vadd.f32 %v2966, %v2967
        %v2969 = vrot.slane %v2968, 1
        %v2970 = vadd.f32 %v2968, %v2969
        %v2971 = vrcp.pop 16.0
        %v2972 = vmul.f32 %v2970, %v2971
        %vm2973 = vcmask 122880
        %2974 = vst.msk [vmem:[%s430] sm:$0x1] %vm2973, %v2972
        %s2975 = sand.u32 %s313, 1
        %s2976 = scalar_lea.sflag [#allocation3], %s2975
        %s2977 = sand.u32 %s313, 1
        %s2978 = scalar_lea.vmem [#allocation2], %s2977
        // Predicated region
        $region73: #{tpu_custom_call.1} parent=71 // pred_check
          %p2979 = pneg %p323
        $region74: #{tpu_custom_call.1} parent=71 // pred_check_branch
          %2981 = sbr.rel (%p2979) target = $region76
        $region75: #{tpu_custom_call.1} parent=71 // pred_region
          %s2983 = ssub.s32 16, 16
          %2984 = vsyncadd %s2976, %s2983
          %s2985 = smul.addr %s27, 16
          %s2986 = scalar_lea.hbm %s13, %s2985
          %s2988 = sshll.u32 %s2978, 4
          %s2989 = int_to_ptr.vmem [resolvable:$true] %s2988
          %2991 = dma.vmem_to_hbm [thread:$0]  %s2989, 16, %s2986, %s2976
        $region76: #{tpu_custom_call.1} parent=71 // pred_fallthru
          _
      $region72: #{tpu_custom_call.1} parent=5 // pred_fallthru
        _
      %p2992 = scmp.le.s32.totalorder 2, %s22
      // Predicated region
      $region77: #{tpu_custom_call.1} parent=5 // pred_check
        %p2993 = pneg %p2992
      $region78: #{tpu_custom_call.1} parent=5 // pred_check_branch
        %2995 = sbr.rel (%p2993) target = $region80
      $region79: #{tpu_custom_call.1} parent=5 // pred_region
        %s2996 = ssub.s32 %s22, 2
        // Predicated region
        $region81: #{tpu_custom_call.1} parent=79 // pred_check
          %p2997 = pneg %p329
        $region82: #{tpu_custom_call.1} parent=79 // pred_check_branch
          %2999 = sbr.rel (%p2997) target = $region84
        $region83: #{tpu_custom_call.1} parent=79 // pred_region
          %s3000 = sand.u32 %s314, 1
          %s3001 = scalar_lea.sflag [#allocation3], %s3000
          %s3002 = sand.u32 %s314, 1
          %s3003 = scalar_lea.vmem [#allocation2], %s3002
          %3004 = dma.done %s3001, 16
        $region84: #{tpu_custom_call.1} parent=79 // pred_fallthru
          _
      $region80: #{tpu_custom_call.1} parent=5 // pred_fallthru
        _
    $region6: #{tpu_custom_call.1} parent=1 // loop_footer
      %s26 = sadd.s32 1, %s22
    $region7: #{tpu_custom_call.1} parent=1 // loop_footer_branch
      %21 = sbr.rel target = $region3
    $region8: #{tpu_custom_call.1} parent=1 // loop_exit
      _
    %3005 = vsyncpa [#allocation3], 1
    %s3006 = scalar_lea.sflag [#allocation3], 1
    %3007 = vsyncpa %s3006, 1

</llo_original>
